<compile_context>
chip_gen: v7x
topology: tpu7x:2x2x1
jax: 0.10.0
libtpu: 0.0.40
codegen_flags: <defaults>
</compile_context>

<pallas_src>
import functools

import jax
import jax.numpy as jnp
from jax import lax
from jax.experimental import pallas as pl
from jax.experimental.pallas import tpu as pltpu

K_NEIGHBORS = 4
LANE = 128
COMPUTE_DTYPE = jnp.bfloat16          # storage / MXU operand dtype (accum is f32)
INT32_MIN = -2147483648


# ---------------------------------------------------------------------------
# helpers
# ---------------------------------------------------------------------------
def _round_up(n, m):
    return ((n + m - 1) // m) * m


def _pad_channels(a, mult=LANE):
    c = a.shape[-1]
    cp = max(mult, _round_up(c, mult))
    if cp == c:
        return a
    pad = [(0, 0)] * (a.ndim - 1) + [(0, cp - c)]
    return jnp.pad(a, pad)


def _choose_tile(n, pref):
    """Largest tile <= pref dividing n; prefers multiples of 128, then of 8."""
    pref = min(pref, n)
    if n <= pref:
        return n
    for step in (128, 8):
        t = (pref // step) * step
        while t >= step:
            if n % t == 0:
                return t
            t -= step
    return n


def _choose_tile_128(n, pref=1024):
    """Largest 128-multiple tile dividing n, else the whole axis (lane-dense out)."""
    if n <= pref:
        return n
    t = (min(pref, n) // 128) * 128
    while t >= 128:
        if n % t == 0:
            return t
        t -= 128
    return n  # TODO(synk): pad + mask awkward N instead of one full tile.


def _compiler_params(working_set_bytes):
    limit = int(working_set_bytes) + (8 << 20)
    limit = max(16 << 20, min(limit, 64 << 20))     # v7x-safe VMEM ceiling
    return pltpu.CompilerParams(
        dimension_semantics=("parallel", "parallel"),
        vmem_limit_bytes=limit)


# ---------------------------------------------------------------------------
# Kernel 1: fused pairwise distance + packed-key top-k neighbor indices
# ---------------------------------------------------------------------------
def _knn_kernel(xf_ref, xx_ref, idx_ref):
    """xf_ref: (1, N, Cp) bf16 resident per batch, xx_ref: (1, 1, N) f32 squared
    norms, idx_ref: (1, TN, k) int32 output indices."""
    tn, k = idx_ref.shape[1], idx_ref.shape[2]
    start = pl.multiple_of(pl.program_id(1) * tn, tn)
    xf = xf_ref[0]                                     # (N, Cp)
    xs = xf_ref[0, pl.ds(start, tn), :]                # (TN, Cp) query strip
    # d'[i,j] = 2<x_i,x_j> - ||x_j||^2 ; the -||x_i||^2 term is row-constant and
    # cannot change the per-row top-k result.
    inner = lax.dot_general(xs, xf, (((1,), (1,)), ((), ())),
                            preferred_element_type=jnp.float32)     # (TN, N)
    d = 2.0 * inner - xx_ref[0]                                     # (TN, N) f32
    # Pack (distance, negated lane index) into one monotonic int32 sort key so
    # each top-k step is a single lane max-reduce + one mask pass.
    bits = pltpu.bitcast(d, jnp.int32)
    sortable = bits ^ ((bits >> 31) & jnp.int32(0x7FFFFFFF))        # order-preserving
    lane = lax.broadcasted_iota(jnp.int32, d.shape, 1)
    key = (sortable & jnp.int32(-65536)) | (jnp.int32(65535) - lane)
    cols = []
    for _ in range(k):
        best = jnp.max(key, axis=-1, keepdims=True)                 # (TN, 1)
        cols.append(jnp.int32(65535) - (best & jnp.int32(65535)))   # selected index
        key = jnp.where(key == best, jnp.int32(INT32_MIN), key)     # drop winner
    idx_ref[0] = jnp.concatenate(cols, axis=-1)                     # (TN, k)


def knn_indices(act, xx, k=K_NEIGHBORS):
    """act: (B, N, Cp) bf16, xx: (B, 1, N) f32 -> (B, N, k) int32."""
    B, N, Cp = act.shape
    if N > 65536:
        raise ValueError("packed top-k key supports N <= 65536")
    tn = _choose_tile(N, max(8, min(1024, (12 << 20) // (24 * N))))
    ws = 2 * N * Cp * 2 + 2 * N * 4 + 2 * tn * k * 4 + 8 * tn * N * 4
    cost = pl.CostEstimate(
        flops=int(2 * B * N * N * Cp + 2 * B * N * N * k),
        transcendentals=0,
        bytes_accessed=int(B * (N * Cp * 2 + N * 4 + N * k * 4)))
    return pl.pallas_call(
        _knn_kernel,
        out_shape=jax.ShapeDtypeStruct((B, N, k), jnp.int32),
        grid=(B, N // tn),
        in_specs=[
            pl.BlockSpec((1, N, Cp), lambda b, i: (b, 0, 0)),   # resident per batch
            pl.BlockSpec((1, 1, N), lambda b, i: (b, 0, 0)),
        ],
        out_specs=pl.BlockSpec((1, tn, k), lambda b, i: (b, i, 0)),
        compiler_params=_compiler_params(ws),
        cost_estimate=cost,
    )(act, xx)


# ---------------------------------------------------------------------------
# Kernel 2: edge conv with FUSED in-kernel gather
#   out[n] = max_j relu(W_top @ x[idx[n,j]] + W_bot @ x[n])
# ---------------------------------------------------------------------------
def _edgeconv_kernel(idx_ref, x_ref, wt_ref, wb_ref, out_ref):
    """idx_ref: (1, TN, K) int32, x_ref: (1, N, Cp) bf16 resident per batch,
    w*_ref: (Cp, CoutP) bf16, out_ref: (1, TN, CoutP) bf16."""
    tn = out_ref.shape[1]
    n = x_ref.shape[1]
    k = idx_ref.shape[2]
    start = pl.multiple_of(pl.program_id(1) * tn, tn)
    x = x_ref[0]                                         # (N, Cp) bf16
    cent = x_ref[0, pl.ds(start, tn), :]                 # (TN, Cp) center rows
    wt = wt_ref[...]
    wb = wb_ref[...]
    cterm = jnp.dot(cent, wb, preferred_element_type=jnp.float32)   # (TN, CoutP)
    idx = idx_ref[0]                                     # (TN, K) int32
    col = lax.broadcasted_iota(jnp.int32, (tn, n), 1)
    acc = None
    for j in range(k):
        # One-hot MXU gather of neighbor rows (exact: copies bf16 values).
        onehot = jnp.where(col == idx[:, j:j + 1], 1.0, 0.0).astype(x.dtype)
        gath = jnp.dot(onehot, x,
                       preferred_element_type=jnp.float32).astype(wt.dtype)
        term = jnp.maximum(
            jnp.dot(gath, wt, preferred_element_type=jnp.float32) + cterm, 0.0)
        acc = term if acc is None else jnp.maximum(acc, term)
    out_ref[0] = acc.astype(out_ref.dtype)


def edge_conv(idx, act, w_top, w_bot):
    """idx: (B,N,K) int32, act: (B,N,Cp) bf16 -> (B,N,CoutP) bf16."""
    B, N, Cp = act.shape
    K = idx.shape[2]
    CoutP = w_top.shape[1]
    tn = _choose_tile(N, max(8, min(1024, (12 << 20) // (8 * N))))
    ws = (2 * N * Cp * 2 + 2 * tn * K * 4 + 4 * Cp * CoutP * 2
          + 2 * tn * CoutP * 2 + 4 * tn * N * 2 + 4 * tn * CoutP * 4
          + 2 * tn * Cp * 4)
    cost = pl.CostEstimate(
        flops=int(2 * B * N * (K * N * Cp + (K + 1) * Cp * CoutP)),
        transcendentals=0,
        bytes_accessed=int(B * (N * Cp * 2 + N * K * 4 + N * CoutP * 2)
                           + 2 * Cp * CoutP * 2))
    return pl.pallas_call(
        _edgeconv_kernel,
        out_shape=jax.ShapeDtypeStruct((B, N, CoutP), COMPUTE_DTYPE),
        grid=(B, N // tn),
        in_specs=[
            pl.BlockSpec((1, tn, K), lambda b, i: (b, i, 0)),
            pl.BlockSpec((1, N, Cp), lambda b, i: (b, 0, 0)),   # resident per batch
            pl.BlockSpec((Cp, CoutP), lambda b, i: (0, 0)),
            pl.BlockSpec((Cp, CoutP), lambda b, i: (0, 0)),
        ],
        out_specs=pl.BlockSpec((1, tn, CoutP), lambda b, i: (b, i, 0)),
        compiler_params=_compiler_params(ws),
        cost_estimate=cost,
    )(idx, act, w_top, w_bot)


# ---------------------------------------------------------------------------
# Kernel 3: conv5 (in-kernel channel concat via 4 accumulated matmuls),
#           tanh/relu, and fused output transpose -> (B, emb, N)
# ---------------------------------------------------------------------------
def _conv5_kernel(x1_ref, x2_ref, x3_ref, x4_ref,
                  w1_ref, w2_ref, w3_ref, w4_ref, out_ref, *, act):
    dn = (((1,), (1,)), ((), ()))    # contract channel dims -> (emb, TN) directly
    acc = lax.dot_general(w1_ref[...], x1_ref[0], dn, preferred_element_type=jnp.float32)
    acc = acc + lax.dot_general(w2_ref[...], x2_ref[0], dn, preferred_element_type=jnp.float32)
    acc = acc + lax.dot_general(w3_ref[...], x3_ref[0], dn, preferred_element_type=jnp.float32)
    acc = acc + lax.dot_general(w4_ref[...], x4_ref[0], dn, preferred_element_type=jnp.float32)
    if act == "tanh":
        out_ref[0] = jnp.tanh(acc)
    else:
        out_ref[0] = jnp.maximum(acc, 0.0)


def point_conv5(xs, ws, act="tanh"):
    """xs: 4 x (B,N,Ci) bf16, ws: 4 x (emb,Ci) bf16 -> (B, emb, N) f32."""
    B, N, _ = xs[0].shape
    emb = int(ws[0].shape[0])
    tn = _choose_tile_128(N, 1024)
    cins = [int(w.shape[1]) for w in ws]
    ws_bytes = (2 * sum(tn * c * 2 for c in cins)
                + 2 * sum(emb * c * 2 for c in cins) + 8 * emb * tn * 4)
    cost = pl.CostEstimate(
        flops=int(2 * B * N * sum(cins) * emb),
        transcendentals=int(B * N * emb),
        bytes_accessed=int(B * N * (sum(cins) * 2 + emb * 4)
                           + sum(emb * c * 2 for c in cins)))
    x_specs = [pl.BlockSpec((1, tn, c), lambda b, i: (b, i, 0)) for c in cins]
    w_specs = [pl.BlockSpec((emb, c), lambda b, i: (0, 0)) for c in cins]
    return pl.pallas_call(
        functools.partial(_conv5_kernel, act=act),
        out_shape=jax.ShapeDtypeStruct((B, emb, N), jnp.float32),
        grid=(B, N // tn),
        in_specs=x_specs + w_specs,
        out_specs=pl.BlockSpec((1, emb, tn), lambda b, i: (b, 0, i)),
        compiler_params=_compiler_params(ws_bytes),
        cost_estimate=cost,
    )(*xs, *ws)


# ---------------------------------------------------------------------------
# Parameters (same shapes / xavier_normal_ init / bias=False as the module)
# ---------------------------------------------------------------------------
def _xavier_normal(key, out_c, in_c):
    std = (2.0 / (in_c + out_c)) ** 0.5
    return jax.random.normal(key, (out_c, in_c), jnp.float32) * std


def init_params(key, emb_dims=512):
    ks = jax.random.split(key, 5)
    return {
        "w1": _xavier_normal(ks[0], 64, 6),          # conv1: 6   -> 64
        "w2": _xavier_normal(ks[1], 64, 128),        # conv2: 128 -> 64
        "w3": _xavier_normal(ks[2], 128, 128),       # conv3: 128 -> 128
        "w4": _xavier_normal(ks[3], 256, 256),       # conv4: 256 -> 256
        "w5": _xavier_normal(ks[4], emb_dims, 512),  # conv5: 512 -> emb
    }


def _pad2(w, rows, cols):
    return jnp.pad(w, ((0, rows - w.shape[0]), (0, cols - w.shape[1])))


def prepare_params(params, dtype=COMPUTE_DTYPE):
    """Split [neighbor|center] halves, pad channels to lane multiples, cast bf16."""
    prep = {}
    for name, c in (("w1", 3), ("w2", 64), ("w3", 64), ("w4", 128)):
        w = params[name]                                   # (Cout, 2c)
        cp = max(LANE, _round_up(c, LANE))
        coutp = max(LANE, _round_up(int(w.shape[0]), LANE))
        prep[name] = (_pad2(w[:, :c].T, cp, coutp).astype(dtype),   # neighbor half
                      _pad2(w[:, c:].T, cp, coutp).astype(dtype))   # center half
    w5 = params["w5"]                                      # (emb, 512), kept (out,in)
    splits = ((0, 64, 128), (64, 128, 128), (128, 256, 128), (256, 512, 256))
    prep["w5"] = tuple(_pad2(w5[:, lo:hi], int(w5.shape[0]), cp).astype(dtype)
                       for lo, hi, cp in splits)
    return prep


# ---------------------------------------------------------------------------
# Forward pass (args.if_bn == False branch, if_relu_atlast default False)
# ---------------------------------------------------------------------------
def dgcnn_forward(x, prep, if_relu_atlast=False, k=K_NEIGHBORS):
    """x: (B, 3, N) like the PyTorch module.  Returns (B, emb_dims, N) f32."""
    xt = jnp.transpose(x, (0, 2, 1)).astype(jnp.float32)       # (B, N, 3)
    # TODO(synk): layer 1 still pads 3 -> 128 channels; a dedicated small-channel
    # (channels-on-sublanes) path would shrink its knn reads further.
    xp = _pad_channels(xt).astype(COMPUTE_DTYPE)               # (B, N, 128) bf16

    def sq_norms(a):                                           # (B, 1, N) f32
        return jnp.sum(jnp.square(a.astype(jnp.float32)), axis=-1)[:, None, :]

    def edge_layer(act, wpair):
        idx = knn_indices(act, sq_norms(act), k)               # (B, N, k)    Pallas
        return edge_conv(idx, act, *wpair)                     # (B, N, CoutP) Pallas (gather fused)

    x1 = edge_layer(xp, prep["w1"])                            # (B,N,128) bf16 [64 real]
    x2 = edge_layer(x1, prep["w2"])                            # (B,N,128) bf16 [64 real]
    x3 = edge_layer(x2, prep["w3"])                            # (B,N,128) bf16
    x4 = edge_layer(x3, prep["w4"])                            # (B,N,256) bf16

    act = "relu" if if_relu_atlast else "tanh"
    return point_conv5((x1, x2, x3, x4), prep["w5"], act=act)  # (B, emb, N) f32


# ---------------------------------------------------------------------------
if __name__ == "__main__":
    B, C, N = 2, 3, 16            # conv1 has 6 = 2*3 input channels -> C = 3
    EMB = 512

    key = jax.random.PRNGKey(0)
    k_x, k_p = jax.random.split(key)
    x = jax.random.normal(k_x, (B, C, N), jnp.float32)
    params = init_params(k_p, emb_dims=EMB)
    prep = prepare_params(params)

    fwd = jax.jit(functools.partial(dgcnn_forward, if_relu_atlast=False))
    out = fwd(x, prep)
    jax.block_until_ready(out)
    assert out.shape == (B, EMB, N), out.shape
    assert bool(jnp.all(jnp.isfinite(out)))
    print("KERNEL_OK")
</pallas_src>

<mosaic_0001>
module attributes {stable_mosaic.version = 11 : i64} {
  func.func @_edgeconv_kernel(%arg0: i32, %arg1: i32, %arg2: memref<1x16x4xi32, #tpu.memory_space<vmem>>, %arg3: memref<1x16x128xbf16, #tpu.memory_space<vmem>>, %arg4: memref<128x128xbf16, #tpu.memory_space<vmem>>, %arg5: memref<128x128xbf16, #tpu.memory_space<vmem>>, %arg6: memref<1x16x128xbf16, #tpu.memory_space<vmem>>) attributes {dimension_semantics = [#tpu.dimension_semantics<parallel>, #tpu.dimension_semantics<parallel>], iteration_bounds = array<i64: 2, 1>, scalar_prefetch = 0 : i64, scratch_operands = 0 : i64, tpu.core_type = #tpu.core_type<tc>, window_params = [{transform_indices = @transform_0, window_bounds = array<i64: 1, 16, 4>}, {transform_indices = @transform_1, window_bounds = array<i64: 1, 16, 128>}, {pipeline_mode = #tpu.pipeline_mode<synchronous>, transform_indices = @transform_2, window_bounds = array<i64: 128, 128>}, {pipeline_mode = #tpu.pipeline_mode<synchronous>, transform_indices = @transform_3, window_bounds = array<i64: 128, 128>}, {transform_indices = @transform_4, window_bounds = array<i64: 1, 16, 128>}]} {
    %c16_i32 = arith.constant 16 : i32
    %0 = arith.muli %arg1, %c16_i32 : i32
    %1 = tpu.assume_multiple %0, 16 : i32
    %c0 = arith.constant 0 : index
    %c0_0 = arith.constant 0 : index
    %c0_1 = arith.constant 0 : index
    %2 = vector.load %arg3[%c0, %c0_0, %c0_1] : memref<1x16x128xbf16, #tpu.memory_space<vmem>>, vector<1x16x128xbf16>
    %3 = vector.shape_cast %2 : vector<1x16x128xbf16> to vector<16x128xbf16>
    %c0_2 = arith.constant 0 : index
    %4 = arith.index_cast %1 : i32 to index
    %c0_3 = arith.constant 0 : index
    %5 = vector.load %arg3[%c0_2, %4, %c0_3] : memref<1x16x128xbf16, #tpu.memory_space<vmem>>, vector<1x16x128xbf16>
    %6 = vector.shape_cast %5 : vector<1x16x128xbf16> to vector<16x128xbf16>
    %c0_4 = arith.constant 0 : index
    %c0_5 = arith.constant 0 : index
    %7 = vector.load %arg4[%c0_4, %c0_5] : memref<128x128xbf16, #tpu.memory_space<vmem>>, vector<128x128xbf16>
    %c0_6 = arith.constant 0 : index
    %c0_7 = arith.constant 0 : index
    %8 = vector.load %arg5[%c0_6, %c0_7] : memref<128x128xbf16, #tpu.memory_space<vmem>>, vector<128x128xbf16>
    %cst = arith.constant dense<0.000000e+00> : vector<16x128xf32>
    %9 = tpu.matmul %6, %8, %cst {dimension_numbers = #tpu.dot_dimension_numbers<[1], [0], [0], [1], [0, 0, 1, 1], [], []>} : vector<16x128xbf16>, vector<128x128xbf16>, vector<16x128xf32> -> vector<16x128xf32>
    %c0_8 = arith.constant 0 : index
    %c0_9 = arith.constant 0 : index
    %c0_10 = arith.constant 0 : index
    %10 = vector.load %arg2[%c0_8, %c0_9, %c0_10] : memref<1x16x4xi32, #tpu.memory_space<vmem>>, vector<1x16x4xi32>
    %11 = vector.shape_cast %10 : vector<1x16x4xi32> to vector<16x4xi32>
    %12 = tpu.iota {dimensions = array<i32: 1>} : vector<16x16xi32>
    %13 = vector.extract_strided_slice %11 {offsets = [0, 0], sizes = [16, 1], strides = [1, 1]} : vector<16x4xi32> to vector<16x1xi32>
    %14 = vector.broadcast %13 : vector<16x1xi32> to vector<16x16xi32>
    %15 = arith.cmpi eq, %12, %14 : vector<16x16xi32>
    %cst_11 = arith.constant 1.000000e+00 : f32
    %cst_12 = arith.constant 0.000000e+00 : f32
    %16 = vector.broadcast %cst_11 : f32 to vector<16x16xf32>
    %17 = vector.broadcast %cst_12 : f32 to vector<16x16xf32>
    %18 = arith.select %15, %16, %17 : vector<16x16xi1>, vector<16x16xf32>
    %19 = arith.truncf %18 : vector<16x16xf32> to vector<16x16xbf16>
    %cst_13 = arith.constant dense<0.000000e+00> : vector<16x128xf32>
    %20 = tpu.matmul %19, %3, %cst_13 {dimension_numbers = #tpu.dot_dimension_numbers<[1], [0], [0], [1], [0, 0, 1, 1], [], []>} : vector<16x16xbf16>, vector<16x128xbf16>, vector<16x128xf32> -> vector<16x128xf32>
    %21 = arith.truncf %20 : vector<16x128xf32> to vector<16x128xbf16>
    %cst_14 = arith.constant dense<0.000000e+00> : vector<16x128xf32>
    %22 = tpu.matmul %21, %7, %cst_14 {dimension_numbers = #tpu.dot_dimension_numbers<[1], [0], [0], [1], [0, 0, 1, 1], [], []>} : vector<16x128xbf16>, vector<128x128xbf16>, vector<16x128xf32> -> vector<16x128xf32>
    %23 = arith.addf %22, %9 : vector<16x128xf32>
    %cst_15 = arith.constant 0.000000e+00 : f32
    %24 = vector.broadcast %cst_15 : f32 to vector<16x128xf32>
    %25 = arith.maximumf %23, %24 : vector<16x128xf32>
    %26 = vector.extract_strided_slice %11 {offsets = [0, 1], sizes = [16, 1], strides = [1, 1]} : vector<16x4xi32> to vector<16x1xi32>
    %27 = vector.broadcast %26 : vector<16x1xi32> to vector<16x16xi32>
    %28 = arith.cmpi eq, %12, %27 : vector<16x16xi32>
    %cst_16 = arith.constant 1.000000e+00 : f32
    %cst_17 = arith.constant 0.000000e+00 : f32
    %29 = vector.broadcast %cst_16 : f32 to vector<16x16xf32>
    %30 = vector.broadcast %cst_17 : f32 to vector<16x16xf32>
    %31 = arith.select %28, %29, %30 : vector<16x16xi1>, vector<16x16xf32>
    %32 = arith.truncf %31 : vector<16x16xf32> to vector<16x16xbf16>
    %cst_18 = arith.constant dense<0.000000e+00> : vector<16x128xf32>
    %33 = tpu.matmul %32, %3, %cst_18 {dimension_numbers = #tpu.dot_dimension_numbers<[1], [0], [0], [1], [0, 0, 1, 1], [], []>} : vector<16x16xbf16>, vector<16x128xbf16>, vector<16x128xf32> -> vector<16x128xf32>
    %34 = arith.truncf %33 : vector<16x128xf32> to vector<16x128xbf16>
    %cst_19 = arith.constant dense<0.000000e+00> : vector<16x128xf32>
    %35 = tpu.matmul %34, %7, %cst_19 {dimension_numbers = #tpu.dot_dimension_numbers<[1], [0], [0], [1], [0, 0, 1, 1], [], []>} : vector<16x128xbf16>, vector<128x128xbf16>, vector<16x128xf32> -> vector<16x128xf32>
    %36 = arith.addf %35, %9 : vector<16x128xf32>
    %cst_20 = arith.constant 0.000000e+00 : f32
    %37 = vector.broadcast %cst_20 : f32 to vector<16x128xf32>
    %38 = arith.maximumf %36, %37 : vector<16x128xf32>
    %39 = arith.maximumf %25, %38 : vector<16x128xf32>
    %40 = vector.extract_strided_slice %11 {offsets = [0, 2], sizes = [16, 1], strides = [1, 1]} : vector<16x4xi32> to vector<16x1xi32>
    %41 = vector.broadcast %40 : vector<16x1xi32> to vector<16x16xi32>
    %42 = arith.cmpi eq, %12, %41 : vector<16x16xi32>
    %cst_21 = arith.constant 1.000000e+00 : f32
    %cst_22 = arith.constant 0.000000e+00 : f32
    %43 = vector.broadcast %cst_21 : f32 to vector<16x16xf32>
    %44 = vector.broadcast %cst_22 : f32 to vector<16x16xf32>
    %45 = arith.select %42, %43, %44 : vector<16x16xi1>, vector<16x16xf32>
    %46 = arith.truncf %45 : vector<16x16xf32> to vector<16x16xbf16>
    %cst_23 = arith.constant dense<0.000000e+00> : vector<16x128xf32>
    %47 = tpu.matmul %46, %3, %cst_23 {dimension_numbers = #tpu.dot_dimension_numbers<[1], [0], [0], [1], [0, 0, 1, 1], [], []>} : vector<16x16xbf16>, vector<16x128xbf16>, vector<16x128xf32> -> vector<16x128xf32>
    %48 = arith.truncf %47 : vector<16x128xf32> to vector<16x128xbf16>
    %cst_24 = arith.constant dense<0.000000e+00> : vector<16x128xf32>
    %49 = tpu.matmul %48, %7, %cst_24 {dimension_numbers = #tpu.dot_dimension_numbers<[1], [0], [0], [1], [0, 0, 1, 1], [], []>} : vector<16x128xbf16>, vector<128x128xbf16>, vector<16x128xf32> -> vector<16x128xf32>
    %50 = arith.addf %49, %9 : vector<16x128xf32>
    %cst_25 = arith.constant 0.000000e+00 : f32
    %51 = vector.broadcast %cst_25 : f32 to vector<16x128xf32>
    %52 = arith.maximumf %50, %51 : vector<16x128xf32>
    %53 = arith.maximumf %39, %52 : vector<16x128xf32>
    %54 = vector.extract_strided_slice %11 {offsets = [0, 3], sizes = [16, 1], strides = [1, 1]} : vector<16x4xi32> to vector<16x1xi32>
    %55 = vector.broadcast %54 : vector<16x1xi32> to vector<16x16xi32>
    %56 = arith.cmpi eq, %12, %55 : vector<16x16xi32>
    %cst_26 = arith.constant 1.000000e+00 : f32
    %cst_27 = arith.constant 0.000000e+00 : f32
    %57 = vector.broadcast %cst_26 : f32 to vector<16x16xf32>
    %58 = vector.broadcast %cst_27 : f32 to vector<16x16xf32>
    %59 = arith.select %56, %57, %58 : vector<16x16xi1>, vector<16x16xf32>
    %60 = arith.truncf %59 : vector<16x16xf32> to vector<16x16xbf16>
    %cst_28 = arith.constant dense<0.000000e+00> : vector<16x128xf32>
    %61 = tpu.matmul %60, %3, %cst_28 {dimension_numbers = #tpu.dot_dimension_numbers<[1], [0], [0], [1], [0, 0, 1, 1], [], []>} : vector<16x16xbf16>, vector<16x128xbf16>, vector<16x128xf32> -> vector<16x128xf32>
    %62 = arith.truncf %61 : vector<16x128xf32> to vector<16x128xbf16>
    %cst_29 = arith.constant dense<0.000000e+00> : vector<16x128xf32>
    %63 = tpu.matmul %62, %7, %cst_29 {dimension_numbers = #tpu.dot_dimension_numbers<[1], [0], [0], [1], [0, 0, 1, 1], [], []>} : vector<16x128xbf16>, vector<128x128xbf16>, vector<16x128xf32> -> vector<16x128xf32>
    %64 = arith.addf %63, %9 : vector<16x128xf32>
    %cst_30 = arith.constant 0.000000e+00 : f32
    %65 = vector.broadcast %cst_30 : f32 to vector<16x128xf32>
    %66 = arith.maximumf %64, %65 : vector<16x128xf32>
    %67 = arith.maximumf %53, %66 : vector<16x128xf32>
    %68 = arith.truncf %67 : vector<16x128xf32> to vector<16x128xbf16>
    %c0_31 = arith.constant 0 : index
    %c0_32 = arith.constant 0 : index
    %c0_33 = arith.constant 0 : index
    %69 = vector.load %arg6[%c0_31, %c0_32, %c0_33] : memref<1x16x128xbf16, #tpu.memory_space<vmem>>, vector<1x16x128xbf16>
    %70 = vector.shape_cast %69 : vector<1x16x128xbf16> to vector<16x128xbf16>
    %71 = vector.shape_cast %68 : vector<16x128xbf16> to vector<1x16x128xbf16>
    tpu.vector_store %arg6[%c0_31, %c0_32, %c0_33], %71 {strides = array<i32>} : memref<1x16x128xbf16, #tpu.memory_space<vmem>>, vector<1x16x128xbf16>,
    return
  }
  func.func @transform_0(%arg0: i32, %arg1: i32) -> (i32, i32, i32) {
    %c0_i32 = arith.constant 0 : i32
    %c0_i32_0 = arith.constant 0 : i32
    return %arg0, %arg1, %c0_i32 : i32, i32, i32
  }
  func.func @transform_1(%arg0: i32, %arg1: i32) -> (i32, i32, i32) {
    %c0_i32 = arith.constant 0 : i32
    %c0_i32_0 = arith.constant 0 : i32
    %c0_i32_1 = arith.constant 0 : i32
    return %arg0, %c0_i32, %c0_i32_0 : i32, i32, i32
  }
  func.func @transform_2(%arg0: i32, %arg1: i32) -> (i32, i32) {
    %c0_i32 = arith.constant 0 : i32
    %c0_i32_0 = arith.constant 0 : i32
    %c0_i32_1 = arith.constant 0 : i32
    return %c0_i32, %c0_i32_0 : i32, i32
  }
  func.func @transform_3(%arg0: i32, %arg1: i32) -> (i32, i32) {
    %c0_i32 = arith.constant 0 : i32
    %c0_i32_0 = arith.constant 0 : i32
    %c0_i32_1 = arith.constant 0 : i32
    return %c0_i32, %c0_i32_0 : i32, i32
  }
  func.func @transform_4(%arg0: i32, %arg1: i32) -> (i32, i32, i32) {
    %c0_i32 = arith.constant 0 : i32
    %c0_i32_0 = arith.constant 0 : i32
    return %arg0, %arg1, %c0_i32 : i32, i32, i32
  }
}

module attributes {stable_mosaic.version = 11 : i64} {
  func.func @_knn_kernel(%arg0: i32, %arg1: i32, %arg2: memref<1x16x128xbf16, #tpu.memory_space<vmem>>, %arg3: memref<1x1x16xf32, #tpu.memory_space<vmem>>, %arg4: memref<1x16x4xi32, #tpu.memory_space<vmem>>) attributes {dimension_semantics = [#tpu.dimension_semantics<parallel>, #tpu.dimension_semantics<parallel>], iteration_bounds = array<i64: 2, 1>, scalar_prefetch = 0 : i64, scratch_operands = 0 : i64, tpu.core_type = #tpu.core_type<tc>, window_params = [{transform_indices = @transform_0, window_bounds = array<i64: 1, 16, 128>}, {transform_indices = @transform_1, window_bounds = array<i64: 1, 1, 16>}, {transform_indices = @transform_2, window_bounds = array<i64: 1, 16, 4>}]} {
    %c16_i32 = arith.constant 16 : i32
    %0 = arith.muli %arg1, %c16_i32 : i32
    %1 = tpu.assume_multiple %0, 16 : i32
    %c0 = arith.constant 0 : index
    %c0_0 = arith.constant 0 : index
    %c0_1 = arith.constant 0 : index
    %2 = vector.load %arg2[%c0, %c0_0, %c0_1] : memref<1x16x128xbf16, #tpu.memory_space<vmem>>, vector<1x16x128xbf16>
    %3 = vector.shape_cast %2 : vector<1x16x128xbf16> to vector<16x128xbf16>
    %c0_2 = arith.constant 0 : index
    %4 = arith.index_cast %1 : i32 to index
    %c0_3 = arith.constant 0 : index
    %5 = vector.load %arg2[%c0_2, %4, %c0_3] : memref<1x16x128xbf16, #tpu.memory_space<vmem>>, vector<1x16x128xbf16>
    %6 = vector.shape_cast %5 : vector<1x16x128xbf16> to vector<16x128xbf16>
    %cst = arith.constant dense<0.000000e+00> : vector<16x16xf32>
    %7 = tpu.matmul %6, %3, %cst {dimension_numbers = #tpu.dot_dimension_numbers<[1], [1], [0], [0], [0, 0, 1, 0], [], []>} : vector<16x128xbf16>, vector<16x128xbf16>, vector<16x16xf32> -> vector<16x16xf32>
    %cst_4 = arith.constant 2.000000e+00 : f32
    %8 = vector.broadcast %cst_4 : f32 to vector<16x16xf32>
    %9 = arith.mulf %8, %7 : vector<16x16xf32>
    %c0_5 = arith.constant 0 : index
    %c0_6 = arith.constant 0 : index
    %c0_7 = arith.constant 0 : index
    %10 = vector.load %arg3[%c0_5, %c0_6, %c0_7] : memref<1x1x16xf32, #tpu.memory_space<vmem>>, vector<1x1x16xf32>
    %11 = vector.shape_cast %10 : vector<1x1x16xf32> to vector<1x16xf32>
    %12 = vector.broadcast %11 : vector<1x16xf32> to vector<16x16xf32>
    %13 = arith.subf %9, %12 : vector<16x16xf32>
    %14 = tpu.bitcast %13 : vector<16x16xf32> -> vector<16x16xi32>
    %c31_i32 = arith.constant 31 : i32
    %15 = vector.broadcast %c31_i32 : i32 to vector<16x16xi32>
    %16 = arith.shrsi %14, %15 : vector<16x16xi32>
    %c2147483647_i32 = arith.constant 2147483647 : i32
    %17 = vector.broadcast %c2147483647_i32 : i32 to vector<16x16xi32>
    %18 = arith.andi %16, %17 : vector<16x16xi32>
    %19 = arith.xori %14, %18 : vector<16x16xi32>
    %20 = tpu.iota {dimensions = array<i32: 1>} : vector<16x16xi32>
    %c-65536_i32 = arith.constant -65536 : i32
    %21 = vector.broadcast %c-65536_i32 : i32 to vector<16x16xi32>
    %22 = arith.andi %19, %21 : vector<16x16xi32>
    %c65535_i32 = arith.constant 65535 : i32
    %23 = vector.broadcast %c65535_i32 : i32 to vector<16x16xi32>
    %24 = arith.subi %23, %20 : vector<16x16xi32>
    %25 = arith.ori %22, %24 : vector<16x16xi32>
    %cst_8 = arith.constant dense<-2147483648> : vector<16xi32>
    %26 = vector.multi_reduction <maxsi>, %25, %cst_8 [1] : vector<16x16xi32> to vector<16xi32>
    %27 = vector.shape_cast %26 : vector<16xi32> to vector<16x1xi32>
    %c65535_i32_9 = arith.constant 65535 : i32
    %28 = vector.broadcast %c65535_i32_9 : i32 to vector<16x1xi32>
    %29 = arith.andi %27, %28 : vector<16x1xi32>
    %c65535_i32_10 = arith.constant 65535 : i32
    %30 = vector.broadcast %c65535_i32_10 : i32 to vector<16x1xi32>
    %31 = arith.subi %30, %29 : vector<16x1xi32>
    %32 = vector.broadcast %27 : vector<16x1xi32> to vector<16x16xi32>
    %33 = arith.cmpi eq, %25, %32 : vector<16x16xi32>
    %c-2147483648_i32 = arith.constant -2147483648 : i32
    %34 = vector.broadcast %c-2147483648_i32 : i32 to vector<16x16xi32>
    %35 = arith.select %33, %34, %25 : vector<16x16xi1>, vector<16x16xi32>
    %cst_11 = arith.constant dense<-2147483648> : vector<16xi32>
    %36 = vector.multi_reduction <maxsi>, %35, %cst_11 [1] : vector<16x16xi32> to vector<16xi32>
    %37 = vector.shape_cast %36 : vector<16xi32> to vector<16x1xi32>
    %c65535_i32_12 = arith.constant 65535 : i32
    %38 = vector.broadcast %c65535_i32_12 : i32 to vector<16x1xi32>
    %39 = arith.andi %37, %38 : vector<16x1xi32>
    %c65535_i32_13 = arith.constant 65535 : i32
    %40 = vector.broadcast %c65535_i32_13 : i32 to vector<16x1xi32>
    %41 = arith.subi %40, %39 : vector<16x1xi32>
    %42 = vector.broadcast %37 : vector<16x1xi32> to vector<16x16xi32>
    %43 = arith.cmpi eq, %35, %42 : vector<16x16xi32>
    %c-2147483648_i32_14 = arith.constant -2147483648 : i32
    %44 = vector.broadcast %c-2147483648_i32_14 : i32 to vector<16x16xi32>
    %45 = arith.select %43, %44, %35 : vector<16x16xi1>, vector<16x16xi32>
    %cst_15 = arith.constant dense<-2147483648> : vector<16xi32>
    %46 = vector.multi_reduction <maxsi>, %45, %cst_15 [1] : vector<16x16xi32> to vector<16xi32>
    %47 = vector.shape_cast %46 : vector<16xi32> to vector<16x1xi32>
    %c65535_i32_16 = arith.constant 65535 : i32
    %48 = vector.broadcast %c65535_i32_16 : i32 to vector<16x1xi32>
    %49 = arith.andi %47, %48 : vector<16x1xi32>
    %c65535_i32_17 = arith.constant 65535 : i32
    %50 = vector.broadcast %c65535_i32_17 : i32 to vector<16x1xi32>
    %51 = arith.subi %50, %49 : vector<16x1xi32>
    %52 = vector.broadcast %47 : vector<16x1xi32> to vector<16x16xi32>
    %53 = arith.cmpi eq, %45, %52 : vector<16x16xi32>
    %c-2147483648_i32_18 = arith.constant -2147483648 : i32
    %54 = vector.broadcast %c-2147483648_i32_18 : i32 to vector<16x16xi32>
    %55 = arith.select %53, %54, %45 : vector<16x16xi1>, vector<16x16xi32>
    %cst_19 = arith.constant dense<-2147483648> : vector<16xi32>
    %56 = vector.multi_reduction <maxsi>, %55, %cst_19 [1] : vector<16x16xi32> to vector<16xi32>
    %57 = vector.shape_cast %56 : vector<16xi32> to vector<16x1xi32>
    %c65535_i32_20 = arith.constant 65535 : i32
    %58 = vector.broadcast %c65535_i32_20 : i32 to vector<16x1xi32>
    %59 = arith.andi %57, %58 : vector<16x1xi32>
    %c65535_i32_21 = arith.constant 65535 : i32
    %60 = vector.broadcast %c65535_i32_21 : i32 to vector<16x1xi32>
    %61 = arith.subi %60, %59 : vector<16x1xi32>
    %62 = tpu.concatenate %31, %41, %51, %61 in 1 : vector<16x1xi32>, vector<16x1xi32>, vector<16x1xi32>, vector<16x1xi32> -> vector<16x4xi32>
    %c0_22 = arith.constant 0 : index
    %c0_23 = arith.constant 0 : index
    %c0_24 = arith.constant 0 : index
    %63 = vector.load %arg4[%c0_22, %c0_23, %c0_24] : memref<1x16x4xi32, #tpu.memory_space<vmem>>, vector<1x16x4xi32>
    %64 = vector.shape_cast %63 : vector<1x16x4xi32> to vector<16x4xi32>
    %65 = vector.shape_cast %62 : vector<16x4xi32> to vector<1x16x4xi32>
    tpu.vector_store %arg4[%c0_22, %c0_23, %c0_24], %65 {strides = array<i32>} : memref<1x16x4xi32, #tpu.memory_space<vmem>>, vector<1x16x4xi32>,
    return
  }
  func.func @transform_0(%arg0: i32, %arg1: i32) -> (i32, i32, i32) {
    %c0_i32 = arith.constant 0 : i32
    %c0_i32_0 = arith.constant 0 : i32
    %c0_i32_1 = arith.constant 0 : i32
    return %arg0, %c0_i32, %c0_i32_0 : i32, i32, i32
  }
  func.func @transform_1(%arg0: i32, %arg1: i32) -> (i32, i32, i32) {
    %c0_i32 = arith.constant 0 : i32
    %c0_i32_0 = arith.constant 0 : i32
    %c0_i32_1 = arith.constant 0 : i32
    return %arg0, %c0_i32, %c0_i32_0 : i32, i32, i32
  }
  func.func @transform_2(%arg0: i32, %arg1: i32) -> (i32, i32, i32) {
    %c0_i32 = arith.constant 0 : i32
    %c0_i32_0 = arith.constant 0 : i32
    return %arg0, %arg1, %c0_i32 : i32, i32, i32
  }
}

module attributes {stable_mosaic.version = 11 : i64} {
  func.func @_edgeconv_kernel(%arg0: i32, %arg1: i32, %arg2: memref<1x16x4xi32, #tpu.memory_space<vmem>>, %arg3: memref<1x16x128xbf16, #tpu.memory_space<vmem>>, %arg4: memref<128x256xbf16, #tpu.memory_space<vmem>>, %arg5: memref<128x256xbf16, #tpu.memory_space<vmem>>, %arg6: memref<1x16x256xbf16, #tpu.memory_space<vmem>>) attributes {dimension_semantics = [#tpu.dimension_semantics<parallel>, #tpu.dimension_semantics<parallel>], iteration_bounds = array<i64: 2, 1>, scalar_prefetch = 0 : i64, scratch_operands = 0 : i64, tpu.core_type = #tpu.core_type<tc>, window_params = [{transform_indices = @transform_0, window_bounds = array<i64: 1, 16, 4>}, {transform_indices = @transform_1, window_bounds = array<i64: 1, 16, 128>}, {pipeline_mode = #tpu.pipeline_mode<synchronous>, transform_indices = @transform_2, window_bounds = array<i64: 128, 256>}, {pipeline_mode = #tpu.pipeline_mode<synchronous>, transform_indices = @transform_3, window_bounds = array<i64: 128, 256>}, {transform_indices = @transform_4, window_bounds = array<i64: 1, 16, 256>}]} {
    %c16_i32 = arith.constant 16 : i32
    %0 = arith.muli %arg1, %c16_i32 : i32
    %1 = tpu.assume_multiple %0, 16 : i32
    %c0 = arith.constant 0 : index
    %c0_0 = arith.constant 0 : index
    %c0_1 = arith.constant 0 : index
    %2 = vector.load %arg3[%c0, %c0_0, %c0_1] : memref<1x16x128xbf16, #tpu.memory_space<vmem>>, vector<1x16x128xbf16>
    %3 = vector.shape_cast %2 : vector<1x16x128xbf16> to vector<16x128xbf16>
    %c0_2 = arith.constant 0 : index
    %4 = arith.index_cast %1 : i32 to index
    %c0_3 = arith.constant 0 : index
    %5 = vector.load %arg3[%c0_2, %4, %c0_3] : memref<1x16x128xbf16, #tpu.memory_space<vmem>>, vector<1x16x128xbf16>
    %6 = vector.shape_cast %5 : vector<1x16x128xbf16> to vector<16x128xbf16>
    %c0_4 = arith.constant 0 : index
    %c0_5 = arith.constant 0 : index
    %7 = vector.load %arg4[%c0_4, %c0_5] : memref<128x256xbf16, #tpu.memory_space<vmem>>, vector<128x256xbf16>
    %c0_6 = arith.constant 0 : index
    %c0_7 = arith.constant 0 : index
    %8 = vector.load %arg5[%c0_6, %c0_7] : memref<128x256xbf16, #tpu.memory_space<vmem>>, vector<128x256xbf16>
    %cst = arith.constant dense<0.000000e+00> : vector<16x256xf32>
    %9 = tpu.matmul %6, %8, %cst {dimension_numbers = #tpu.dot_dimension_numbers<[1], [0], [0], [1], [0, 0, 1, 1], [], []>} : vector<16x128xbf16>, vector<128x256xbf16>, vector<16x256xf32> -> vector<16x256xf32>
    %c0_8 = arith.constant 0 : index
    %c0_9 = arith.constant 0 : index
    %c0_10 = arith.constant 0 : index
    %10 = vector.load %arg2[%c0_8, %c0_9, %c0_10] : memref<1x16x4xi32, #tpu.memory_space<vmem>>, vector<1x16x4xi32>
    %11 = vector.shape_cast %10 : vector<1x16x4xi32> to vector<16x4xi32>
    %12 = tpu.iota {dimensions = array<i32: 1>} : vector<16x16xi32>
    %13 = vector.extract_strided_slice %11 {offsets = [0, 0], sizes = [16, 1], strides = [1, 1]} : vector<16x4xi32> to vector<16x1xi32>
    %14 = vector.broadcast %13 : vector<16x1xi32> to vector<16x16xi32>
    %15 = arith.cmpi eq, %12, %14 : vector<16x16xi32>
    %cst_11 = arith.constant 1.000000e+00 : f32
    %cst_12 = arith.constant 0.000000e+00 : f32
    %16 = vector.broadcast %cst_11 : f32 to vector<16x16xf32>
    %17 = vector.broadcast %cst_12 : f32 to vector<16x16xf32>
    %18 = arith.select %15, %16, %17 : vector<16x16xi1>, vector<16x16xf32>
    %19 = arith.truncf %18 : vector<16x16xf32> to vector<16x16xbf16>
    %cst_13 = arith.constant dense<0.000000e+00> : vector<16x128xf32>
    %20 = tpu.matmul %19, %3, %cst_13 {dimension_numbers = #tpu.dot_dimension_numbers<[1], [0], [0], [1], [0, 0, 1, 1], [], []>} : vector<16x16xbf16>, vector<16x128xbf16>, vector<16x128xf32> -> vector<16x128xf32>
    %21 = arith.truncf %20 : vector<16x128xf32> to vector<16x128xbf16>
    %cst_14 = arith.constant dense<0.000000e+00> : vector<16x256xf32>
    %22 = tpu.matmul %21, %7, %cst_14 {dimension_numbers = #tpu.dot_dimension_numbers<[1], [0], [0], [1], [0, 0, 1, 1], [], []>} : vector<16x128xbf16>, vector<128x256xbf16>, vector<16x256xf32> -> vector<16x256xf32>
    %23 = arith.addf %22, %9 : vector<16x256xf32>
    %cst_15 = arith.constant 0.000000e+00 : f32
    %24 = vector.broadcast %cst_15 : f32 to vector<16x256xf32>
    %25 = arith.maximumf %23, %24 : vector<16x256xf32>
    %26 = vector.extract_strided_slice %11 {offsets = [0, 1], sizes = [16, 1], strides = [1, 1]} : vector<16x4xi32> to vector<16x1xi32>
    %27 = vector.broadcast %26 : vector<16x1xi32> to vector<16x16xi32>
    %28 = arith.cmpi eq, %12, %27 : vector<16x16xi32>
    %cst_16 = arith.constant 1.000000e+00 : f32
    %cst_17 = arith.constant 0.000000e+00 : f32
    %29 = vector.broadcast %cst_16 : f32 to vector<16x16xf32>
    %30 = vector.broadcast %cst_17 : f32 to vector<16x16xf32>
    %31 = arith.select %28, %29, %30 : vector<16x16xi1>, vector<16x16xf32>
    %32 = arith.truncf %31 : vector<16x16xf32> to vector<16x16xbf16>
    %cst_18 = arith.constant dense<0.000000e+00> : vector<16x128xf32>
    %33 = tpu.matmul %32, %3, %cst_18 {dimension_numbers = #tpu.dot_dimension_numbers<[1], [0], [0], [1], [0, 0, 1, 1], [], []>} : vector<16x16xbf16>, vector<16x128xbf16>, vector<16x128xf32> -> vector<16x128xf32>
    %34 = arith.truncf %33 : vector<16x128xf32> to vector<16x128xbf16>
    %cst_19 = arith.constant dense<0.000000e+00> : vector<16x256xf32>
    %35 = tpu.matmul %34, %7, %cst_19 {dimension_numbers = #tpu.dot_dimension_numbers<[1], [0], [0], [1], [0, 0, 1, 1], [], []>} : vector<16x128xbf16>, vector<128x256xbf16>, vector<16x256xf32> -> vector<16x256xf32>
    %36 = arith.addf %35, %9 : vector<16x256xf32>
    %cst_20 = arith.constant 0.000000e+00 : f32
    %37 = vector.broadcast %cst_20 : f32 to vector<16x256xf32>
    %38 = arith.maximumf %36, %37 : vector<16x256xf32>
    %39 = arith.maximumf %25, %38 : vector<16x256xf32>
    %40 = vector.extract_strided_slice %11 {offsets = [0, 2], sizes = [16, 1], strides = [1, 1]} : vector<16x4xi32> to vector<16x1xi32>
    %41 = vector.broadcast %40 : vector<16x1xi32> to vector<16x16xi32>
    %42 = arith.cmpi eq, %12, %41 : vector<16x16xi32>
    %cst_21 = arith.constant 1.000000e+00 : f32
    %cst_22 = arith.constant 0.000000e+00 : f32
    %43 = vector.broadcast %cst_21 : f32 to vector<16x16xf32>
    %44 = vector.broadcast %cst_22 : f32 to vector<16x16xf32>
    %45 = arith.select %42, %43, %44 : vector<16x16xi1>, vector<16x16xf32>
    %46 = arith.truncf %45 : vector<16x16xf32> to vector<16x16xbf16>
    %cst_23 = arith.constant dense<0.000000e+00> : vector<16x128xf32>
    %47 = tpu.matmul %46, %3, %cst_23 {dimension_numbers = #tpu.dot_dimension_numbers<[1], [0], [0], [1], [0, 0, 1, 1], [], []>} : vector<16x16xbf16>, vector<16x128xbf16>, vector<16x128xf32> -> vector<16x128xf32>
    %48 = arith.truncf %47 : vector<16x128xf32> to vector<16x128xbf16>
    %cst_24 = arith.constant dense<0.000000e+00> : vector<16x256xf32>
    %49 = tpu.matmul %48, %7, %cst_24 {dimension_numbers = #tpu.dot_dimension_numbers<[1], [0], [0], [1], [0, 0, 1, 1], [], []>} : vector<16x128xbf16>, vector<128x256xbf16>, vector<16x256xf32> -> vector<16x256xf32>
    %50 = arith.addf %49, %9 : vector<16x256xf32>
    %cst_25 = arith.constant 0.000000e+00 : f32
    %51 = vector.broadcast %cst_25 : f32 to vector<16x256xf32>
    %52 = arith.maximumf %50, %51 : vector<16x256xf32>
    %53 = arith.maximumf %39, %52 : vector<16x256xf32>
    %54 = vector.extract_strided_slice %11 {offsets = [0, 3], sizes = [16, 1], strides = [1, 1]} : vector<16x4xi32> to vector<16x1xi32>
    %55 = vector.broadcast %54 : vector<16x1xi32> to vector<16x16xi32>
    %56 = arith.cmpi eq, %12, %55 : vector<16x16xi32>
    %cst_26 = arith.constant 1.000000e+00 : f32
    %cst_27 = arith.constant 0.000000e+00 : f32
    %57 = vector.broadcast %cst_26 : f32 to vector<16x16xf32>
    %58 = vector.broadcast %cst_27 : f32 to vector<16x16xf32>
    %59 = arith.select %56, %57, %58 : vector<16x16xi1>, vector<16x16xf32>
    %60 = arith.truncf %59 : vector<16x16xf32> to vector<16x16xbf16>
    %cst_28 = arith.constant dense<0.000000e+00> : vector<16x128xf32>
    %61 = tpu.matmul %60, %3, %cst_28 {dimension_numbers = #tpu.dot_dimension_numbers<[1], [0], [0], [1], [0, 0, 1, 1], [], []>} : vector<16x16xbf16>, vector<16x128xbf16>, vector<16x128xf32> -> vector<16x128xf32>
    %62 = arith.truncf %61 : vector<16x128xf32> to vector<16x128xbf16>
    %cst_29 = arith.constant dense<0.000000e+00> : vector<16x256xf32>
    %63 = tpu.matmul %62, %7, %cst_29 {dimension_numbers = #tpu.dot_dimension_numbers<[1], [0], [0], [1], [0, 0, 1, 1], [], []>} : vector<16x128xbf16>, vector<128x256xbf16>, vector<16x256xf32> -> vector<16x256xf32>
    %64 = arith.addf %63, %9 : vector<16x256xf32>
    %cst_30 = arith.constant 0.000000e+00 : f32
    %65 = vector.broadcast %cst_30 : f32 to vector<16x256xf32>
    %66 = arith.maximumf %64, %65 : vector<16x256xf32>
    %67 = arith.maximumf %53, %66 : vector<16x256xf32>
    %68 = arith.truncf %67 : vector<16x256xf32> to vector<16x256xbf16>
    %c0_31 = arith.constant 0 : index
    %c0_32 = arith.constant 0 : index
    %c0_33 = arith.constant 0 : index
    %69 = vector.load %arg6[%c0_31, %c0_32, %c0_33] : memref<1x16x256xbf16, #tpu.memory_space<vmem>>, vector<1x16x256xbf16>
    %70 = vector.shape_cast %69 : vector<1x16x256xbf16> to vector<16x256xbf16>
    %71 = vector.shape_cast %68 : vector<16x256xbf16> to vector<1x16x256xbf16>
    tpu.vector_store %arg6[%c0_31, %c0_32, %c0_33], %71 {strides = array<i32>} : memref<1x16x256xbf16, #tpu.memory_space<vmem>>, vector<1x16x256xbf16>,
    return
  }
  func.func @transform_0(%arg0: i32, %arg1: i32) -> (i32, i32, i32) {
    %c0_i32 = arith.constant 0 : i32
    %c0_i32_0 = arith.constant 0 : i32
    return %arg0, %arg1, %c0_i32 : i32, i32, i32
  }
  func.func @transform_1(%arg0: i32, %arg1: i32) -> (i32, i32, i32) {
    %c0_i32 = arith.constant 0 : i32
    %c0_i32_0 = arith.constant 0 : i32
    %c0_i32_1 = arith.constant 0 : i32
    return %arg0, %c0_i32, %c0_i32_0 : i32, i32, i32
  }
  func.func @transform_2(%arg0: i32, %arg1: i32) -> (i32, i32) {
    %c0_i32 = arith.constant 0 : i32
    %c0_i32_0 = arith.constant 0 : i32
    %c0_i32_1 = arith.constant 0 : i32
    return %c0_i32, %c0_i32_0 : i32, i32
  }
  func.func @transform_3(%arg0: i32, %arg1: i32) -> (i32, i32) {
    %c0_i32 = arith.constant 0 : i32
    %c0_i32_0 = arith.constant 0 : i32
    %c0_i32_1 = arith.constant 0 : i32
    return %c0_i32, %c0_i32_0 : i32, i32
  }
  func.func @transform_4(%arg0: i32, %arg1: i32) -> (i32, i32, i32) {
    %c0_i32 = arith.constant 0 : i32
    %c0_i32_0 = arith.constant 0 : i32
    return %arg0, %arg1, %c0_i32 : i32, i32, i32
  }
}

module attributes {stable_mosaic.version = 11 : i64} {
  func.func @_conv5_kernel(%arg0: i32, %arg1: i32, %arg2: memref<1x16x128xbf16, #tpu.memory_space<vmem>>, %arg3: memref<1x16x128xbf16, #tpu.memory_space<vmem>>, %arg4: memref<1x16x128xbf16, #tpu.memory_space<vmem>>, %arg5: memref<1x16x256xbf16, #tpu.memory_space<vmem>>, %arg6: memref<512x128xbf16, #tpu.memory_space<vmem>>, %arg7: memref<512x128xbf16, #tpu.memory_space<vmem>>, %arg8: memref<512x128xbf16, #tpu.memory_space<vmem>>, %arg9: memref<512x256xbf16, #tpu.memory_space<vmem>>, %arg10: memref<1x512x16xf32, #tpu.memory_space<vmem>>) attributes {dimension_semantics = [#tpu.dimension_semantics<parallel>, #tpu.dimension_semantics<parallel>], iteration_bounds = array<i64: 2, 1>, scalar_prefetch = 0 : i64, scratch_operands = 0 : i64, tpu.core_type = #tpu.core_type<tc>, window_params = [{transform_indices = @transform_0, window_bounds = array<i64: 1, 16, 128>}, {transform_indices = @transform_1, window_bounds = array<i64: 1, 16, 128>}, {transform_indices = @transform_2, window_bounds = array<i64: 1, 16, 128>}, {transform_indices = @transform_3, window_bounds = array<i64: 1, 16, 256>}, {pipeline_mode = #tpu.pipeline_mode<synchronous>, transform_indices = @transform_4, window_bounds = array<i64: 512, 128>}, {pipeline_mode = #tpu.pipeline_mode<synchronous>, transform_indices = @transform_5, window_bounds = array<i64: 512, 128>}, {pipeline_mode = #tpu.pipeline_mode<synchronous>, transform_indices = @transform_6, window_bounds = array<i64: 512, 128>}, {pipeline_mode = #tpu.pipeline_mode<synchronous>, transform_indices = @transform_7, window_bounds = array<i64: 512, 256>}, {transform_indices = @transform_8, window_bounds = array<i64: 1, 512, 16>}]} {
    %c0 = arith.constant 0 : index
    %c0_0 = arith.constant 0 : index
    %0 = vector.load %arg6[%c0, %c0_0] : memref<512x128xbf16, #tpu.memory_space<vmem>>, vector<512x128xbf16>
    %c0_1 = arith.constant 0 : index
    %c0_2 = arith.constant 0 : index
    %c0_3 = arith.constant 0 : index
    %1 = vector.load %arg2[%c0_1, %c0_2, %c0_3] : memref<1x16x128xbf16, #tpu.memory_space<vmem>>, vector<1x16x128xbf16>
    %2 = vector.shape_cast %1 : vector<1x16x128xbf16> to vector<16x128xbf16>
    %cst = arith.constant dense<0.000000e+00> : vector<512x16xf32>
    %3 = tpu.matmul %0, %2, %cst {dimension_numbers = #tpu.dot_dimension_numbers<[1], [1], [0], [0], [0, 0, 1, 0], [], []>} : vector<512x128xbf16>, vector<16x128xbf16>, vector<512x16xf32> -> vector<512x16xf32>
    %c0_4 = arith.constant 0 : index
    %c0_5 = arith.constant 0 : index
    %4 = vector.load %arg7[%c0_4, %c0_5] : memref<512x128xbf16, #tpu.memory_space<vmem>>, vector<512x128xbf16>
    %c0_6 = arith.constant 0 : index
    %c0_7 = arith.constant 0 : index
    %c0_8 = arith.constant 0 : index
    %5 = vector.load %arg3[%c0_6, %c0_7, %c0_8] : memref<1x16x128xbf16, #tpu.memory_space<vmem>>, vector<1x16x128xbf16>
    %6 = vector.shape_cast %5 : vector<1x16x128xbf16> to vector<16x128xbf16>
    %cst_9 = arith.constant dense<0.000000e+00> : vector<512x16xf32>
    %7 = tpu.matmul %4, %6, %cst_9 {dimension_numbers = #tpu.dot_dimension_numbers<[1], [1], [0], [0], [0, 0, 1, 0], [], []>} : vector<512x128xbf16>, vector<16x128xbf16>, vector<512x16xf32> -> vector<512x16xf32>
    %8 = arith.addf %3, %7 : vector<512x16xf32>
    %c0_10 = arith.constant 0 : index
    %c0_11 = arith.constant 0 : index
    %9 = vector.load %arg8[%c0_10, %c0_11] : memref<512x128xbf16, #tpu.memory_space<vmem>>, vector<512x128xbf16>
    %c0_12 = arith.constant 0 : index
    %c0_13 = arith.constant 0 : index
    %c0_14 = arith.constant 0 : index
    %10 = vector.load %arg4[%c0_12, %c0_13, %c0_14] : memref<1x16x128xbf16, #tpu.memory_space<vmem>>, vector<1x16x128xbf16>
    %11 = vector.shape_cast %10 : vector<1x16x128xbf16> to vector<16x128xbf16>
    %cst_15 = arith.constant dense<0.000000e+00> : vector<512x16xf32>
    %12 = tpu.matmul %9, %11, %cst_15 {dimension_numbers = #tpu.dot_dimension_numbers<[1], [1], [0], [0], [0, 0, 1, 0], [], []>} : vector<512x128xbf16>, vector<16x128xbf16>, vector<512x16xf32> -> vector<512x16xf32>
    %13 = arith.addf %8, %12 : vector<512x16xf32>
    %c0_16 = arith.constant 0 : index
    %c0_17 = arith.constant 0 : index
    %14 = vector.load %arg9[%c0_16, %c0_17] : memref<512x256xbf16, #tpu.memory_space<vmem>>, vector<512x256xbf16>
    %c0_18 = arith.constant 0 : index
    %c0_19 = arith.constant 0 : index
    %c0_20 = arith.constant 0 : index
    %15 = vector.load %arg5[%c0_18, %c0_19, %c0_20] : memref<1x16x256xbf16, #tpu.memory_space<vmem>>, vector<1x16x256xbf16>
    %16 = vector.shape_cast %15 : vector<1x16x256xbf16> to vector<16x256xbf16>
    %cst_21 = arith.constant dense<0.000000e+00> : vector<512x16xf32>
    %17 = tpu.matmul %14, %16, %cst_21 {dimension_numbers = #tpu.dot_dimension_numbers<[1], [1], [0], [0], [0, 0, 1, 0], [], []>} : vector<512x256xbf16>, vector<16x256xbf16>, vector<512x16xf32> -> vector<512x16xf32>
    %18 = arith.addf %13, %17 : vector<512x16xf32>
    %19 = math.tanh %18 : vector<512x16xf32>
    %c0_22 = arith.constant 0 : index
    %c0_23 = arith.constant 0 : index
    %c0_24 = arith.constant 0 : index
    %20 = vector.load %arg10[%c0_22, %c0_23, %c0_24] : memref<1x512x16xf32, #tpu.memory_space<vmem>>, vector<1x512x16xf32>
    %21 = vector.shape_cast %20 : vector<1x512x16xf32> to vector<512x16xf32>
    %22 = vector.shape_cast %19 : vector<512x16xf32> to vector<1x512x16xf32>
    tpu.vector_store %arg10[%c0_22, %c0_23, %c0_24], %22 {strides = array<i32>} : memref<1x512x16xf32, #tpu.memory_space<vmem>>, vector<1x512x16xf32>,
    return
  }
  func.func @transform_0(%arg0: i32, %arg1: i32) -> (i32, i32, i32) {
    %c0_i32 = arith.constant 0 : i32
    %c0_i32_0 = arith.constant 0 : i32
    return %arg0, %arg1, %c0_i32 : i32, i32, i32
  }
  func.func @transform_1(%arg0: i32, %arg1: i32) -> (i32, i32, i32) {
    %c0_i32 = arith.constant 0 : i32
    %c0_i32_0 = arith.constant 0 : i32
    return %arg0, %arg1, %c0_i32 : i32, i32, i32
  }
  func.func @transform_2(%arg0: i32, %arg1: i32) -> (i32, i32, i32) {
    %c0_i32 = arith.constant 0 : i32
    %c0_i32_0 = arith.constant 0 : i32
    return %arg0, %arg1, %c0_i32 : i32, i32, i32
  }
  func.func @transform_3(%arg0: i32, %arg1: i32) -> (i32, i32, i32) {
    %c0_i32 = arith.constant 0 : i32
    %c0_i32_0 = arith.constant 0 : i32
    return %arg0, %arg1, %c0_i32 : i32, i32, i32
  }
  func.func @transform_4(%arg0: i32, %arg1: i32) -> (i32, i32) {
    %c0_i32 = arith.constant 0 : i32
    %c0_i32_0 = arith.constant 0 : i32
    %c0_i32_1 = arith.constant 0 : i32
    return %c0_i32, %c0_i32_0 : i32, i32
  }
  func.func @transform_5(%arg0: i32, %arg1: i32) -> (i32, i32) {
    %c0_i32 = arith.constant 0 : i32
    %c0_i32_0 = arith.constant 0 : i32
    %c0_i32_1 = arith.constant 0 : i32
    return %c0_i32, %c0_i32_0 : i32, i32
  }
  func.func @transform_6(%arg0: i32, %arg1: i32) -> (i32, i32) {
    %c0_i32 = arith.constant 0 : i32
    %c0_i32_0 = arith.constant 0 : i32
    %c0_i32_1 = arith.constant 0 : i32
    return %c0_i32, %c0_i32_0 : i32, i32
  }
  func.func @transform_7(%arg0: i32, %arg1: i32) -> (i32, i32) {
    %c0_i32 = arith.constant 0 : i32
    %c0_i32_0 = arith.constant 0 : i32
    %c0_i32_1 = arith.constant 0 : i32
    return %c0_i32, %c0_i32_0 : i32, i32
  }
  func.func @transform_8(%arg0: i32, %arg1: i32) -> (i32, i32, i32) {
    %c0_i32 = arith.constant 0 : i32
    %c0_i32_0 = arith.constant 0 : i32
    return %arg0, %c0_i32, %arg1 : i32, i32, i32
  }
}

</mosaic_0001>

<llo_original>
// kernel: dgcnn_forward.9
$region0: #{dgcnn_forward.9}
  #allocation0 [shape = 'u32[]', space=smem, size = 0x4, offset = 0x4, fixed_abs, tag = 'smem constant byte address 0x4 - core index']
  #allocation1 [shape = 'u32[144,128]{1,0:T(1,128)}', space=vmem, size = 0x12000, scoped, tag = 'internal scratch']
  %s0 = inlined_call_operand.vmem [shape: bf16[2,16,128], index: 0, kind: input, shape index: {}]
  %s1 = inlined_call_operand.vmem [shape: f32[2,1,16], index: 1, kind: input, shape index: {}]
  %s2 = inlined_call_operand.vmem [shape: s32[2,16,4], index: 2, kind: output, shape index: {}]
  %s3 = sld [smem:[#allocation0]]
  $region41: #{dgcnn_forward.9} parent=0
    _
  %s5 = ssub.s32 1, %s3
  %s6 = scalar_select 0, %s5, %s3
  loop: start=0, step=1, limit=4
  $region2: #{dgcnn_forward.9} parent=0 // loop_pre_header
    _
  $region3: #{dgcnn_forward.9} parent=0 // loop_header
    %s8 = sphi 0, %s12
    %p9 = scmp.ge.s32.totalorder %s8, 4
    %s15 = sphi 0, %s27
    %s16 = sphi 0, %s23
    %s17 = sphi 0, %s15
    %s18 = sphi 0, %s16
    %s19 = sphi 0, %s17
    %s20 = sphi 0, %s18
    %s30 = sphi 0, %s32
    %s33 = sphi 0, %s30
    %s34 = sphi 0, %s33
    %s50 = sphi 0, %s34
    %s56 = sphi 0, %s58
    %s59 = sphi 0, %s56
    %s60 = sphi 0, %s59
    %s76 = sphi 0, %s60
    %s84 = sphi 0, %s86
    %s87 = sphi 0, %s84
    %s88 = sphi 0, %s87
    %s104 = sphi 0, %s88
  $region4: #{dgcnn_forward.9} parent=0 // loop_header_branch
    %11 = sbr.rel (%p9) target = $region8
  $region5: #{dgcnn_forward.9} parent=0 // loop_body
    %s13 = ssub.s32 %s8, 1
    %s14 = ssub.s32 %s8, 2
    %s21 = sadd.s32 1, %s16
    %p22 = scmp.ge.s32.totalorder %s21, 1
    %s23 = scalar_select %p22, 0, %s21
    %s24 = sadd.s32 1, %s15
    %s25 = scalar_select %p22, %s24, %s15
    %p26 = scmp.ge.s32.totalorder %s25, 2
    %s27 = scalar_select %p26, 0, %s25
    %s28 = ssub.s32 %s15, %s27
    %p29 = scmp.eq.s32.totalorder %s28, 0
    %s31 = sadd.s32 %s30, 1
    %s32 = scalar_select %p29, %s30, %s31
    %p35 = pneg %p29
    %p36 = scmp.eq.s32.totalorder %s8, 1
    %p37 = por %p35, %p36
    %p38 = scmp.ne.s32.totalorder %s30, %s33
    %p39 = scmp.eq.s32.totalorder %s8, 0
    %p40 = por %p38, %p39
    %p41 = scmp.ne.s32.totalorder %s30, %s33
    %p42 = scmp.eq.s32.totalorder %s13, 1
    %p43 = por %p41, %p42
    %p44 = scmp.ne.s32.totalorder %s33, %s34
    %p45 = scmp.eq.s32.totalorder %s13, 0
    %p46 = por %p44, %p45
    %p47 = scmp.ne.s32.totalorder %s33, %s34
    %p48 = scmp.eq.s32.totalorder %s14, 1
    %p49 = por %p47, %p48
    %p51 = scmp.ne.s32.totalorder %s34, %s50
    %p52 = scmp.eq.s32.totalorder %s14, 0
    %p53 = por %p51, %p52
    %s54 = ssub.s32 %s15, %s27
    %p55 = scmp.eq.s32.totalorder %s54, 0
    %s57 = sadd.s32 %s56, 1
    %s58 = scalar_select %p55, %s56, %s57
    %p61 = pneg %p55
    %p62 = scmp.eq.s32.totalorder %s8, 1
    %p63 = por %p61, %p62
    %p64 = scmp.ne.s32.totalorder %s56, %s59
    %p65 = scmp.eq.s32.totalorder %s8, 0
    %p66 = por %p64, %p65
    %p67 = scmp.ne.s32.totalorder %s56, %s59
    %p68 = scmp.eq.s32.totalorder %s13, 1
    %p69 = por %p67, %p68
    %p70 = scmp.ne.s32.totalorder %s59, %s60
    %p71 = scmp.eq.s32.totalorder %s13, 0
    %p72 = por %p70, %p71
    %p73 = scmp.ne.s32.totalorder %s59, %s60
    %p74 = scmp.eq.s32.totalorder %s14, 1
    %p75 = por %p73, %p74
    %p77 = scmp.ne.s32.totalorder %s60, %s76
    %p78 = scmp.eq.s32.totalorder %s14, 0
    %p79 = por %p77, %p78
    %s80 = ssub.s32 %s15, %s27
    %s81 = ssub.s32 %s16, %s23
    %s82 = sor.u32 %s80, %s81
    %p83 = scmp.eq.s32.totalorder %s82, 0
    %s85 = sadd.s32 %s84, 1
    %s86 = scalar_select %p83, %s84, %s85
    %p89 = pneg %p83
    %p90 = scmp.eq.s32.totalorder %s8, 1
    %p91 = por %p89, %p90
    %p92 = scmp.ne.s32.totalorder %s84, %s87
    %p93 = scmp.eq.s32.totalorder %s8, 0
    %p94 = por %p92, %p93
    %p95 = scmp.ne.s32.totalorder %s84, %s87
    %p96 = scmp.eq.s32.totalorder %s13, 1
    %p97 = por %p95, %p96
    %p98 = scmp.ne.s32.totalorder %s87, %s88
    %p99 = scmp.eq.s32.totalorder %s13, 0
    %p100 = por %p98, %p99
    %p101 = scmp.ne.s32.totalorder %s87, %s88
    %p102 = scmp.eq.s32.totalorder %s14, 1
    %p103 = por %p101, %p102
    %p105 = scmp.ne.s32.totalorder %s88, %s104
    %p106 = scmp.eq.s32.totalorder %s14, 0
    %p107 = por %p105, %p106
    %p108 = scmp.le.s32.totalorder 1, %s8
    %p109 = scmp.lt.s32.totalorder %s8, 3
    %p110 = pnand %p108, %p109
    %p111 = pneg %p110
    // Predicated region
    $region9: #{dgcnn_forward.9} parent=5 // pred_check
      _
    $region10: #{dgcnn_forward.9} parent=5 // pred_check_branch
      %113 = sbr.rel (%p110) target = $region12
    $region11: #{dgcnn_forward.9} parent=5 // pred_region
      %s114 = ssub.s32 %s8, 1
    $region12: #{dgcnn_forward.9} parent=5 // pred_fallthru
      _
    %p115 = scmp.lt.s32.totalorder %s8, 2
    // Predicated region
    $region13: #{dgcnn_forward.9} parent=5 // pred_check
      %p116 = pneg %p115
    $region14: #{dgcnn_forward.9} parent=5 // pred_check_branch
      %118 = sbr.rel (%p116) target = $region16
    $region15: #{dgcnn_forward.9} parent=5 // pred_region
      // Predicated region
      $region17: #{dgcnn_forward.9} parent=15 // pred_check
        %p119 = pneg %p40
      $region18: #{dgcnn_forward.9} parent=15 // pred_check_branch
        %121 = sbr.rel (%p119) target = $region20
      $region19: #{dgcnn_forward.9} parent=15 // pred_region
        %p122 = scmp.lt.s32.totalorder %s15, 1
        %s123 = scalar_select %p122, %s15, 1
        %s124 = smul.addr %s123, 2
        %s125 = smul.addr %s124, 4
        %s126 = scalar_lea.vmem %s0, %s125
      $region20: #{dgcnn_forward.9} parent=15 // pred_fallthru
        _
      // Predicated region
      $region21: #{dgcnn_forward.9} parent=15 // pred_check
        %p127 = pneg %p66
      $region22: #{dgcnn_forward.9} parent=15 // pred_check_branch
        %129 = sbr.rel (%p127) target = $region24
      $region23: #{dgcnn_forward.9} parent=15 // pred_region
        %p130 = scmp.lt.s32.totalorder %s15, 1
        %s131 = scalar_select %p130, %s15, 1
        %s132 = scalar_lea.vmem %s1, %s131
      $region24: #{dgcnn_forward.9} parent=15 // pred_fallthru
        _
    $region16: #{dgcnn_forward.9} parent=5 // pred_fallthru
      _
    %p133 = scmp.le.s32.totalorder 1, %s8
    %p134 = scmp.lt.s32.totalorder %s8, 3
    %p135 = pnand %p133, %p134
    %p136 = pneg %p135
    // Predicated region
    $region25: #{dgcnn_forward.9} parent=5 // pred_check
      _
    $region26: #{dgcnn_forward.9} parent=5 // pred_check_branch
      %138 = sbr.rel (%p135) target = $region28
    $region27: #{dgcnn_forward.9} parent=5 // pred_region
      %s139 = ssub.s32 %s8, 1
      %p140 = scmp.lt.s32.totalorder %s17, 1
      %s141 = scalar_select %p140, %s17, 1
      %s142 = smul.addr %s141, 2
      %s143 = smul.addr %s142, 4
      %s144 = scalar_lea.vmem %s0, %s143
      %p145 = pneg %p46
      %p146 = pneg %p43
      %p147 = scmp.lt.s32.totalorder %s17, 1
      %s148 = scalar_select %p147, %s17, 1
      %s149 = scalar_lea.vmem %s1, %s148
      %p150 = pneg %p72
      %p151 = pneg %p69
      %p152 = pneg %p100
      %p153 = pneg %p97
      %s154 = smul.u32 2, %s18
      %p155 = scmp.lt.s32.totalorder %s17, 1
      %s156 = scalar_select %p155, %s17, 1
      %p157 = scmp.lt.s32.totalorder %s154, 1
      %s158 = scalar_select %p157, %s154, 1
      %s159 = smul.addr %s156, 2
      %s160 = sadd.s32 %s158, %s159
      %s161 = smul.addr %s160, 8
      %s162 = scalar_lea.vmem %s2, %s161
      %p163 = scmp.lt.s32.totalorder %s17, 1
      %s164 = scalar_select %p163, %s17, 1
      %s165 = smul.addr %s164, 2
      %s166 = smul.addr %s165, 4
      %s167 = scalar_lea.vmem %s0, %s166
      %p168 = scmp.lt.s32.totalorder %s17, 1
      %s169 = scalar_select %p168, %s17, 1
      %s170 = scalar_lea.vmem %s1, %s169
      %s171 = smul.u32 2, %s18
      %p172 = scmp.lt.s32.totalorder %s17, 1
      %s173 = scalar_select %p172, %s17, 1
      %p174 = scmp.lt.s32.totalorder %s171, 1
      %s175 = scalar_select %p174, %s171, 1
      %s176 = smul.addr %s173, 2
      %s177 = sadd.s32 %s175, %s176
      %s178 = smul.addr %s177, 8
      %s179 = scalar_lea.vmem %s2, %s178
      %s180 = smul.u32 2, %s18
      %s182 = smul.u32 %s18, 16
      %v183 = vld [vmem:[%s167] sm:$0xf]
      %v184 = vld [vmem:[%s167 + $0x4] sm:$0xf]
      %s185 = sshra.s32 %s182, 3
      %s186 = sand.u32 %s182, 7
      %s187 = smul.addr %s185, 4
      %s188 = scalar_lea.vmem %s167, %s187
      %v189 = vld [vmem:[%s188] sm:$0xf]
      %v190 = vld [vmem:[%s188 + $0x4] sm:$0xf]
      %v193 = vunpack.c.l.b16 %v189
      %v194 = vunpack.c.l.b16 %v190
      %v195 = vpack.c.b16 %v194, %v193
      %v199 = vunpack.c.l.b16 %v183
      %v200 = vunpack.c.l.b16 %v184
      %v201 = vpack.c.b16 %v200, %v199
      %203 = vmatprep.subr.bf16.mxu0 0
      %204 = vmatpush1.bf16.xpose.msra.mxu0 %v201
      %205 = vmatprep.subr.bf16.mxu0 0
      %206 = vmatpush1.bf16.xpose.msra.mxu0 0
      %207 = vmatprep.subr.bf16.mxu0 0
      %208 = vmatpush1.bf16.xpose.msra.mxu0 0
      %209 = vmatprep.subr.bf16.mxu0 0
      %210 = vmatpush1.bf16.xpose.msra.mxu0 0
      %211 = vmatprep.subr.bf16.mxu0 0
      %212 = vmatpush1.bf16.xpose.msra.mxu0 0
      %213 = vmatprep.subr.bf16.mxu0 0
      %214 = vmatpush1.bf16.xpose.msra.mxu0 0
      %215 = vmatprep.subr.bf16.mxu0 0
      %216 = vmatpush1.bf16.xpose.msra.mxu0 0
      %217 = vmatprep.subr.bf16.mxu0 0
      %218 = vmatpush1.bf16.xpose.msra.mxu0 0
      %219 = vmatprep.subr.bf16.mxu0 0
      %220 = vmatpush1.bf16.xpose.msra.mxu0 0
      %221 = vmatprep.subr.bf16.mxu0 0
      %222 = vmatpush1.bf16.xpose.msra.mxu0 0
      %223 = vmatprep.subr.bf16.mxu0 0
      %224 = vmatpush1.bf16.xpose.msra.mxu0 0
      %225 = vmatprep.subr.bf16.mxu0 0
      %226 = vmatpush1.bf16.xpose.msra.mxu0 0
      %227 = vmatprep.subr.bf16.mxu0 0
      %228 = vmatpush1.bf16.xpose.msra.mxu0 0
      %229 = vmatprep.subr.bf16.mxu0 0
      %230 = vmatpush1.bf16.xpose.msra.mxu0 0
      %231 = vmatprep.subr.bf16.mxu0 0
      %232 = vmatpush1.bf16.xpose.msra.mxu0 0
      %233 = vmatprep.subr.bf16.mxu0 0
      %234 = vmatpush1.bf16.xpose.msra.mxu0 0
      %235 = vmatprep.mubr.bf16.mxu0 0
      %236 = vmatmul.mubr.bf16.gmra.mrb[0].mxu0 %v195
      %v237 = vpop.f32.mrb[0].mxu0
      %v238 = vadd.f32 0.0, %v237
      %v239 = vpop.f32.mrb[0].mxu0
      %v240 = vpop.f32.mrb[0].mxu0
      %v241 = vadd.f32 0.0, %v240
      %v242 = vpop.f32.mrb[0].mxu0
      %243 = vdwg.mxu0
      %v244 = vmul.f32 %v238, 2.0
      %v245 = vmul.f32 %v241, 2.0
      %v246 = vld [vmem:[%s170] sm:$0x1]
      %v248 = vlaneseq
      %v249 = vshrl.u32 %v248, 7
      %v250 = vsub.s32 0, %v249
      %v251 = vrot.slane %v246, %v250
      %v253 = vsub.f32 %v244, %v251
      %v254 = vsub.f32 %v245, %v251
      %v257 = vshra.s32 %v253, 31
      %v258 = vshra.s32 %v254, 31
      %v259 = vand.u32 %v257, 2147483647
      %v260 = vand.u32 %v258, 2147483647
      %v261 = vxor.u32 %v253, %v259
      %v262 = vxor.u32 %v254, %v260
      %v263 = vlaneseq
      %v264 = vand.u32 %v263, 127
      %v265 = vand.u32 %v261, 4294901760
      %v266 = vand.u32 %v262, 4294901760
      %v267 = vsub.s32 65535, %v264
      %v268 = vor.u32 %v265, %v267
      %v269 = vor.u32 %v266, %v267
      %vm270 = vcmask 130048
      %v271 = vsel %vm270, %v268, 2147483648
      %v272 = vand.u32 %v271, 65535
      %v273 = vshra.s32 %v271, 16
      %v274 = vcvt.s32.f32 %v272
      %v275 = vcvt.s32.f32 %v273
      %276 = vmax.xlane.f32.xlu0 %v275
      %v277 = vpop.xlane.xlu0 %276
      %vm278 = vcmp.eq.f32.partialorder %v275, %v277
      %v279 = vsel %vm278, %v274, -inf
      %280 = vmax.xlane.f32.xlu0 %v279
      %v281 = vpop.xlane.xlu0 %280
      %v282 = vcvt.f32.s32 %v281
      %v283 = vcvt.f32.s32 %v277
      %v284 = vshll.u32 %v283, 16
      %v285 = vadd.s32 %v284, %v282
      %v286 = vsel %vm270, %v269, 2147483648
      %v287 = vand.u32 %v286, 65535
      %v288 = vshra.s32 %v286, 16
      %v289 = vcvt.s32.f32 %v287
      %v290 = vcvt.s32.f32 %v288
      %291 = vmax.xlane.f32.xlu0 %v290
      %v292 = vpop.xlane.xlu0 %291
      %vm293 = vcmp.eq.f32.partialorder %v290, %v292
      %v294 = vsel %vm293, %v289, -inf
      %295 = vmax.xlane.f32.xlu0 %v294
      %v296 = vpop.xlane.xlu0 %295
      %v297 = vcvt.f32.s32 %v296
      %v298 = vcvt.f32.s32 %v292
      %v299 = vshll.u32 %v298, 16
      %v300 = vadd.s32 %v299, %v297
      %v301 = vand.u32 %v285, 65535
      %v302 = vand.u32 %v300, 65535
      %v303 = vsub.s32 65535, %v301
      %v304 = vsub.s32 65535, %v302
      %vm305 = vcmp.eq.s32.totalorder %v268, %v285
      %vm306 = vcmp.eq.s32.totalorder %v269, %v300
      %v307 = vsel %vm305, 2147483648, %v268
      %v308 = vsel %vm306, 2147483648, %v269
      %v309 = vsel %vm270, %v307, 2147483648
      %v310 = vand.u32 %v309, 65535
      %v311 = vshra.s32 %v309, 16
      %v312 = vcvt.s32.f32 %v310
      %v313 = vcvt.s32.f32 %v311
      %314 = vmax.xlane.f32.xlu0 %v313
      %v315 = vpop.xlane.xlu0 %314
      %vm316 = vcmp.eq.f32.partialorder %v313, %v315
      %v317 = vsel %vm316, %v312, -inf
      %318 = vmax.xlane.f32.xlu0 %v317
      %v319 = vpop.xlane.xlu0 %318
      %v320 = vcvt.f32.s32 %v319
      %v321 = vcvt.f32.s32 %v315
      %v322 = vshll.u32 %v321, 16
      %v323 = vadd.s32 %v322, %v320
      %v324 = vsel %vm270, %v308, 2147483648
      %v325 = vand.u32 %v324, 65535
      %v326 = vshra.s32 %v324, 16
      %v327 = vcvt.s32.f32 %v325
      %v328 = vcvt.s32.f32 %v326
      %329 = vmax.xlane.f32.xlu0 %v328
      %v330 = vpop.xlane.xlu0 %329
      %vm331 = vcmp.eq.f32.partialorder %v328, %v330
      %v332 = vsel %vm331, %v327, -inf
      %333 = vmax.xlane.f32.xlu0 %v332
      %v334 = vpop.xlane.xlu0 %333
      %v335 = vcvt.f32.s32 %v334
      %v336 = vcvt.f32.s32 %v330
      %v337 = vshll.u32 %v336, 16
      %v338 = vadd.s32 %v337, %v335
      %v339 = vand.u32 %v323, 65535
      %v340 = vand.u32 %v338, 65535
      %v341 = vsub.s32 65535, %v339
      %v342 = vsub.s32 65535, %v340
      %vm343 = vcmp.eq.s32.totalorder %v307, %v323
      %vm344 = vcmp.eq.s32.totalorder %v308, %v338
      %v345 = vsel %vm343, 2147483648, %v307
      %v346 = vsel %vm344, 2147483648, %v308
      %v347 = vsel %vm270, %v345, 2147483648
      %v348 = vand.u32 %v347, 65535
      %v349 = vshra.s32 %v347, 16
      %v350 = vcvt.s32.f32 %v348
      %v351 = vcvt.s32.f32 %v349
      %352 = vmax.xlane.f32.xlu0 %v351
      %v353 = vpop.xlane.xlu0 %352
      %vm354 = vcmp.eq.f32.partialorder %v351, %v353
      %v355 = vsel %vm354, %v350, -inf
      %356 = vmax.xlane.f32.xlu0 %v355
      %v357 = vpop.xlane.xlu0 %356
      %v358 = vcvt.f32.s32 %v357
      %v359 = vcvt.f32.s32 %v353
      %v360 = vshll.u32 %v359, 16
      %v361 = vadd.s32 %v360, %v358
      %v362 = vsel %vm270, %v346, 2147483648
      %v363 = vand.u32 %v362, 65535
      %v364 = vshra.s32 %v362, 16
      %v365 = vcvt.s32.f32 %v363
      %v366 = vcvt.s32.f32 %v364
      %367 = vmax.xlane.f32.xlu0 %v366
      %v368 = vpop.xlane.xlu0 %367
      %vm369 = vcmp.eq.f32.partialorder %v366, %v368
      %v370 = vsel %vm369, %v365, -inf
      %371 = vmax.xlane.f32.xlu0 %v370
      %v372 = vpop.xlane.xlu0 %371
      %v373 = vcvt.f32.s32 %v372
      %v374 = vcvt.f32.s32 %v368
      %v375 = vshll.u32 %v374, 16
      %v376 = vadd.s32 %v375, %v373
      %v377 = vand.u32 %v361, 65535
      %v378 = vand.u32 %v376, 65535
      %v379 = vsub.s32 65535, %v377
      %v380 = vsub.s32 65535, %v378
      %vm381 = vcmp.eq.s32.totalorder %v345, %v361
      %vm382 = vcmp.eq.s32.totalorder %v346, %v376
      %v383 = vsel %vm381, 2147483648, %v345
      %v384 = vsel %vm382, 2147483648, %v346
      %v385 = vsel %vm270, %v383, 2147483648
      %v386 = vand.u32 %v385, 65535
      %v387 = vshra.s32 %v385, 16
      %v388 = vcvt.s32.f32 %v386
      %v389 = vcvt.s32.f32 %v387
      %390 = vmax.xlane.f32.xlu0 %v389
      %v391 = vpop.xlane.xlu0 %390
      %vm392 = vcmp.eq.f32.partialorder %v389, %v391
      %v393 = vsel %vm392, %v388, -inf
      %394 = vmax.xlane.f32.xlu0 %v393
      %v395 = vpop.xlane.xlu0 %394
      %v396 = vcvt.f32.s32 %v395
      %v397 = vcvt.f32.s32 %v391
      %v398 = vshll.u32 %v397, 16
      %v399 = vadd.s32 %v398, %v396
      %v400 = vsel %vm270, %v384, 2147483648
      %v401 = vand.u32 %v400, 65535
      %v402 = vshra.s32 %v400, 16
      %v403 = vcvt.s32.f32 %v401
      %v404 = vcvt.s32.f32 %v402
      %405 = vmax.xlane.f32.xlu0 %v404
      %v406 = vpop.xlane.xlu0 %405
      %vm407 = vcmp.eq.f32.partialorder %v404, %v406
      %v408 = vsel %vm407, %v403, -inf
      %409 = vmax.xlane.f32.xlu0 %v408
      %v410 = vpop.xlane.xlu0 %409
      %v411 = vcvt.f32.s32 %v410
      %v412 = vcvt.f32.s32 %v406
      %v413 = vshll.u32 %v412, 16
      %v414 = vadd.s32 %v413, %v411
      %v415 = vand.u32 %v399, 65535
      %v416 = vand.u32 %v414, 65535
      %v417 = vsub.s32 65535, %v415
      %v418 = vsub.s32 65535, %v416
      %vm419 = vcmask 7168
      %v420 = vsel %vm419, %v303, %v341
      %v421 = vsel %vm419, %v304, %v342
      %vm422 = vcmask 15360
      %v423 = vsel %vm422, %v420, %v379
      %v424 = vsel %vm422, %v421, %v380
      %vm425 = vcmask 23552
      %v426 = vsel %vm425, %v423, %v417
      %v427 = vsel %vm425, %v424, %v418
      %vm428 = vcmask 31744
      %429 = vst.msk [vmem:[%s179] sm:$0xff] %vm428, %v426
      %430 = vst.msk [vmem:[%s179 + $0x8] sm:$0xff] %vm428, %v427
      %s431 = smul.u32 2, %s18
      %p432 = scmp.lt.s32.totalorder %s17, 1
      %s433 = scalar_select %p432, %s17, 1
      %p434 = scmp.lt.s32.totalorder %s431, 1
      %s435 = scalar_select %p434, %s431, 1
      %s436 = smul.addr %s433, 2
      %s437 = sadd.s32 %s435, %s436
      %s438 = smul.addr %s437, 8
      %s439 = scalar_lea.vmem %s2, %s438
      // Predicated region
      $region29: #{dgcnn_forward.9} parent=27 // pred_check
        %p440 = pneg %p97
      $region30: #{dgcnn_forward.9} parent=27 // pred_check_branch
        %442 = sbr.rel (%p440) target = $region32
      $region31: #{dgcnn_forward.9} parent=27 // pred_region
        %s443 = smul.u32 2, %s18
      $region32: #{dgcnn_forward.9} parent=27 // pred_fallthru
        _
    $region28: #{dgcnn_forward.9} parent=5 // pred_fallthru
      _
    %p444 = scmp.le.s32.totalorder 2, %s8
    // Predicated region
    $region33: #{dgcnn_forward.9} parent=5 // pred_check
      %p445 = pneg %p444
    $region34: #{dgcnn_forward.9} parent=5 // pred_check_branch
      %447 = sbr.rel (%p445) target = $region36
    $region35: #{dgcnn_forward.9} parent=5 // pred_region
      %s448 = ssub.s32 %s8, 2
      // Predicated region
      $region37: #{dgcnn_forward.9} parent=35 // pred_check
        %p449 = pneg %p103
      $region38: #{dgcnn_forward.9} parent=35 // pred_check_branch
        %451 = sbr.rel (%p449) target = $region40
      $region39: #{dgcnn_forward.9} parent=35 // pred_region
        %s452 = smul.u32 2, %s20
        %p453 = scmp.lt.s32.totalorder %s19, 1
        %s454 = scalar_select %p453, %s19, 1
        %p455 = scmp.lt.s32.totalorder %s452, 1
        %s456 = scalar_select %p455, %s452, 1
        %s457 = smul.addr %s454, 2
        %s458 = sadd.s32 %s456, %s457
        %s459 = smul.addr %s458, 8
        %s460 = scalar_lea.vmem %s2, %s459
      $region40: #{dgcnn_forward.9} parent=35 // pred_fallthru
        _
    $region36: #{dgcnn_forward.9} parent=5 // pred_fallthru
      _
  $region6: #{dgcnn_forward.9} parent=0 // loop_footer
    %s12 = sadd.s32 1, %s8
  $region7: #{dgcnn_forward.9} parent=0 // loop_footer_branch
    %7 = sbr.rel target = $region3
  $region8: #{dgcnn_forward.9} parent=0 // loop_exit
    _

// kernel: dgcnn_forward.10
$region0: #{dgcnn_forward.10}
  #allocation0 [shape = 'u32[]', space=smem, size = 0x4, offset = 0x4, fixed_abs, tag = 'smem constant byte address 0x4 - core index']
  #allocation1 [shape = 'u32[144,128]{1,0:T(1,128)}', space=vmem, size = 0x12000, scoped, tag = 'internal scratch']
  %s0 = inlined_call_operand.vmem [shape: s32[2,16,4], index: 0, kind: input, shape index: {}]
  %s1 = inlined_call_operand.vmem [shape: bf16[2,16,128], index: 1, kind: input, shape index: {}]
  %s2 = inlined_call_operand.hbm [shape: bf16[128,128], index: 2, kind: input, shape index: {}]
  %s3 = inlined_call_operand.hbm [shape: bf16[128,128], index: 3, kind: input, shape index: {}]
  %s4 = inlined_call_operand.vmem [shape: bf16[2,16,128], index: 4, kind: output, shape index: {}]
  %s5 = sld [smem:[#allocation0]]
  $region57: #{dgcnn_forward.10} parent=0
    _
  %s7 = ssub.s32 1, %s5
  %s8 = scalar_select 0, %s7, %s5
  $region1: #{dgcnn_forward.10} parent=0
    #allocation2 [shape = 'u8[32768]{0}', space=vmem, size = 0x8000, scoped, tag = 'input window, operand 2, single buffered']
    #allocation3 [shape = 's32[2]{0}', space=sflag, size = 0x8, scoped, tag = 'scoped memory for dgcnn_forward.10']
    #allocation4 [shape = 'u8[32768]{0}', space=vmem, size = 0x8000, scoped, tag = 'input window, operand 3, single buffered']
    #allocation5 [shape = 's32[1]{0}', space=sflag, size = 0x4, scoped, tag = 'scoped memory for dgcnn_forward.10']
    %9 = vsyncpa [#allocation3], 0
    %10 = vsyncpa [#allocation5], 0
    loop: start=0, step=1, limit=4
    $region2: #{dgcnn_forward.10} parent=1 // loop_pre_header
      _
    $region3: #{dgcnn_forward.10} parent=1 // loop_header
      %s12 = sphi 0, %s16
      %p13 = scmp.ge.s32.totalorder %s12, 4
      %s19 = sphi 0, %s31
      %s20 = sphi 0, %s27
      %s21 = sphi 0, %s19
      %s22 = sphi 0, %s20
      %s23 = sphi 0, %s21
      %s24 = sphi 0, %s22
      %s36 = sphi 0, %s38
      %s39 = sphi 0, %s36
      %s40 = sphi 0, %s39
      %s56 = sphi 0, %s40
      %s62 = sphi 0, %s64
      %s65 = sphi 0, %s62
      %s66 = sphi 0, %s65
      %s82 = sphi 0, %s66
      %s86 = sphi 0, %s86
      %s88 = sphi 0, %s86
      %s89 = sphi 0, %s88
      %s103 = sphi 0, %s89
      %s107 = sphi 0, %s107
      %s109 = sphi 0, %s107
      %s110 = sphi 0, %s109
      %s124 = sphi 0, %s110
      %s132 = sphi 0, %s134
      %s135 = sphi 0, %s132
      %s136 = sphi 0, %s135
      %s152 = sphi 0, %s136
    $region4: #{dgcnn_forward.10} parent=1 // loop_header_branch
      %15 = sbr.rel (%p13) target = $region8
    $region5: #{dgcnn_forward.10} parent=1 // loop_body
      %s17 = ssub.s32 %s12, 1
      %s18 = ssub.s32 %s12, 2
      %s25 = sadd.s32 1, %s20
      %p26 = scmp.ge.s32.totalorder %s25, 1
      %s27 = scalar_select %p26, 0, %s25
      %s28 = sadd.s32 1, %s19
      %s29 = scalar_select %p26, %s28, %s19
      %p30 = scmp.ge.s32.totalorder %s29, 2
      %s31 = scalar_select %p30, 0, %s29
      %s32 = ssub.s32 %s19, %s31
      %s33 = ssub.s32 %s20, %s27
      %s34 = sor.u32 %s32, %s33
      %p35 = scmp.eq.s32.totalorder %s34, 0
      %s37 = sadd.s32 %s36, 1
      %s38 = scalar_select %p35, %s36, %s37
      %p41 = pneg %p35
      %p42 = scmp.eq.s32.totalorder %s12, 1
      %p43 = por %p41, %p42
      %p44 = scmp.ne.s32.totalorder %s36, %s39
      %p45 = scmp.eq.s32.totalorder %s12, 0
      %p46 = por %p44, %p45
      %p47 = scmp.ne.s32.totalorder %s36, %s39
      %p48 = scmp.eq.s32.totalorder %s17, 1
      %p49 = por %p47, %p48
      %p50 = scmp.ne.s32.totalorder %s39, %s40
      %p51 = scmp.eq.s32.totalorder %s17, 0
      %p52 = por %p50, %p51
      %p53 = scmp.ne.s32.totalorder %s39, %s40
      %p54 = scmp.eq.s32.totalorder %s18, 1
      %p55 = por %p53, %p54
      %p57 = scmp.ne.s32.totalorder %s40, %s56
      %p58 = scmp.eq.s32.totalorder %s18, 0
      %p59 = por %p57, %p58
      %s60 = ssub.s32 %s19, %s31
      %p61 = scmp.eq.s32.totalorder %s60, 0
      %s63 = sadd.s32 %s62, 1
      %s64 = scalar_select %p61, %s62, %s63
      %p67 = pneg %p61
      %p68 = scmp.eq.s32.totalorder %s12, 1
      %p69 = por %p67, %p68
      %p70 = scmp.ne.s32.totalorder %s62, %s65
      %p71 = scmp.eq.s32.totalorder %s12, 0
      %p72 = por %p70, %p71
      %p73 = scmp.ne.s32.totalorder %s62, %s65
      %p74 = scmp.eq.s32.totalorder %s17, 1
      %p75 = por %p73, %p74
      %p76 = scmp.ne.s32.totalorder %s65, %s66
      %p77 = scmp.eq.s32.totalorder %s17, 0
      %p78 = por %p76, %p77
      %p79 = scmp.ne.s32.totalorder %s65, %s66
      %p80 = scmp.eq.s32.totalorder %s18, 1
      %p81 = por %p79, %p80
      %p83 = scmp.ne.s32.totalorder %s66, %s82
      %p84 = scmp.eq.s32.totalorder %s18, 0
      %p85 = por %p83, %p84
      %s87 = sadd.s32 %s86, 1
      %p90 = scmp.eq.s32.totalorder %s12, 1
      %p91 = scmp.ne.s32.totalorder %s86, %s88
      %p92 = scmp.eq.s32.totalorder %s12, 0
      %p93 = por %p91, %p92
      %p94 = scmp.ne.s32.totalorder %s86, %s88
      %p95 = scmp.eq.s32.totalorder %s17, 1
      %p96 = por %p94, %p95
      %p97 = scmp.ne.s32.totalorder %s88, %s89
      %p98 = scmp.eq.s32.totalorder %s17, 0
      %p99 = por %p97, %p98
      %p100 = scmp.ne.s32.totalorder %s88, %s89
      %p101 = scmp.eq.s32.totalorder %s18, 1
      %p102 = por %p100, %p101
      %p104 = scmp.ne.s32.totalorder %s89, %s103
      %p105 = scmp.eq.s32.totalorder %s18, 0
      %p106 = por %p104, %p105
      %s108 = sadd.s32 %s107, 1
      %p111 = scmp.eq.s32.totalorder %s12, 1
      %p112 = scmp.ne.s32.totalorder %s107, %s109
      %p113 = scmp.eq.s32.totalorder %s12, 0
      %p114 = por %p112, %p113
      %p115 = scmp.ne.s32.totalorder %s107, %s109
      %p116 = scmp.eq.s32.totalorder %s17, 1
      %p117 = por %p115, %p116
      %p118 = scmp.ne.s32.totalorder %s109, %s110
      %p119 = scmp.eq.s32.totalorder %s17, 0
      %p120 = por %p118, %p119
      %p121 = scmp.ne.s32.totalorder %s109, %s110
      %p122 = scmp.eq.s32.totalorder %s18, 1
      %p123 = por %p121, %p122
      %p125 = scmp.ne.s32.totalorder %s110, %s124
      %p126 = scmp.eq.s32.totalorder %s18, 0
      %p127 = por %p125, %p126
      %s128 = ssub.s32 %s19, %s31
      %s129 = ssub.s32 %s20, %s27
      %s130 = sor.u32 %s128, %s129
      %p131 = scmp.eq.s32.totalorder %s130, 0
      %s133 = sadd.s32 %s132, 1
      %s134 = scalar_select %p131, %s132, %s133
      %p137 = pneg %p131
      %p138 = scmp.eq.s32.totalorder %s12, 1
      %p139 = por %p137, %p138
      %p140 = scmp.ne.s32.totalorder %s132, %s135
      %p141 = scmp.eq.s32.totalorder %s12, 0
      %p142 = por %p140, %p141
      %p143 = scmp.ne.s32.totalorder %s132, %s135
      %p144 = scmp.eq.s32.totalorder %s17, 1
      %p145 = por %p143, %p144
      %p146 = scmp.ne.s32.totalorder %s135, %s136
      %p147 = scmp.eq.s32.totalorder %s17, 0
      %p148 = por %p146, %p147
      %p149 = scmp.ne.s32.totalorder %s135, %s136
      %p150 = scmp.eq.s32.totalorder %s18, 1
      %p151 = por %p149, %p150
      %p153 = scmp.ne.s32.totalorder %s136, %s152
      %p154 = scmp.eq.s32.totalorder %s18, 0
      %p155 = por %p153, %p154
      %p156 = scmp.le.s32.totalorder 1, %s12
      %p157 = scmp.lt.s32.totalorder %s12, 3
      %p158 = pnand %p156, %p157
      %p159 = pneg %p158
      // Predicated region
      $region9: #{dgcnn_forward.10} parent=5 // pred_check
        _
      $region10: #{dgcnn_forward.10} parent=5 // pred_check_branch
        %161 = sbr.rel (%p158) target = $region12
      $region11: #{dgcnn_forward.10} parent=5 // pred_region
        %s162 = ssub.s32 %s12, 1
        // Predicated region
        $region13: #{dgcnn_forward.10} parent=11 // pred_check
          %p163 = pneg %p99
        $region14: #{dgcnn_forward.10} parent=11 // pred_check_branch
          %165 = sbr.rel (%p163) target = $region16
        $region15: #{dgcnn_forward.10} parent=11 // pred_region
          %s167 = ssub.s32 1024, 1024
          %168 = vsyncadd [#allocation3], %s167
          %s169 = sshll.u32 [#allocation2], 4
          %s170 = int_to_ptr.vmem [resolvable:$true] %s169
          %175 = dma.hbm_to_vmem [thread:$0]  %s2, 1024, %s170, [#allocation3], 64, 64, 4
        $region16: #{dgcnn_forward.10} parent=11 // pred_fallthru
          _
        // Predicated region
        $region17: #{dgcnn_forward.10} parent=11 // pred_check
          %p176 = pneg %p120
        $region18: #{dgcnn_forward.10} parent=11 // pred_check_branch
          %178 = sbr.rel (%p176) target = $region20
        $region19: #{dgcnn_forward.10} parent=11 // pred_region
          %s180 = ssub.s32 1024, 1024
          %181 = vsyncadd [#allocation5], %s180
          %s182 = sshll.u32 [#allocation4], 4
          %s183 = int_to_ptr.vmem [resolvable:$true] %s182
          %188 = dma.hbm_to_vmem [thread:$0]  %s3, 1024, %s183, [#allocation5], 64, 64, 4
        $region20: #{dgcnn_forward.10} parent=11 // pred_fallthru
          _
      $region12: #{dgcnn_forward.10} parent=5 // pred_fallthru
        _
      %p189 = scmp.lt.s32.totalorder %s12, 2
      // Predicated region
      $region21: #{dgcnn_forward.10} parent=5 // pred_check
        %p190 = pneg %p189
      $region22: #{dgcnn_forward.10} parent=5 // pred_check_branch
        %192 = sbr.rel (%p190) target = $region24
      $region23: #{dgcnn_forward.10} parent=5 // pred_region
        // Predicated region
        $region25: #{dgcnn_forward.10} parent=23 // pred_check
          %p193 = pneg %p46
        $region26: #{dgcnn_forward.10} parent=23 // pred_check_branch
          %195 = sbr.rel (%p193) target = $region28
        $region27: #{dgcnn_forward.10} parent=23 // pred_region
          %s196 = smul.u32 2, %s20
          %p197 = scmp.lt.s32.totalorder %s19, 1
          %s198 = scalar_select %p197, %s19, 1
          %p199 = scmp.lt.s32.totalorder %s196, 1
          %s200 = scalar_select %p199, %s196, 1
          %s201 = smul.addr %s198, 2
          %s202 = sadd.s32 %s200, %s201
          %s203 = smul.addr %s202, 8
          %s204 = scalar_lea.vmem %s0, %s203
          %s205 = smul.u32 2, %s20
        $region28: #{dgcnn_forward.10} parent=23 // pred_fallthru
          _
        // Predicated region
        $region29: #{dgcnn_forward.10} parent=23 // pred_check
          %p206 = pneg %p72
        $region30: #{dgcnn_forward.10} parent=23 // pred_check_branch
          %208 = sbr.rel (%p206) target = $region32
        $region31: #{dgcnn_forward.10} parent=23 // pred_region
          %p209 = scmp.lt.s32.totalorder %s19, 1
          %s210 = scalar_select %p209, %s19, 1
          %s211 = smul.addr %s210, 2
          %s212 = smul.addr %s211, 4
          %s213 = scalar_lea.vmem %s1, %s212
        $region32: #{dgcnn_forward.10} parent=23 // pred_fallthru
          _
      $region24: #{dgcnn_forward.10} parent=5 // pred_fallthru
        _
      %p214 = scmp.le.s32.totalorder 1, %s12
      %p215 = scmp.lt.s32.totalorder %s12, 3
      %p216 = pnand %p214, %p215
      %p217 = pneg %p216
      // Predicated region
      $region33: #{dgcnn_forward.10} parent=5 // pred_check
        _
      $region34: #{dgcnn_forward.10} parent=5 // pred_check_branch
        %219 = sbr.rel (%p216) target = $region36
      $region35: #{dgcnn_forward.10} parent=5 // pred_region
        %s220 = ssub.s32 %s12, 1
        // Predicated region
        $region37: #{dgcnn_forward.10} parent=35 // pred_check
          %p221 = pneg %p99
        $region38: #{dgcnn_forward.10} parent=35 // pred_check_branch
          %223 = sbr.rel (%p221) target = $region40
        $region39: #{dgcnn_forward.10} parent=35 // pred_region
          %224 = dma.done [#allocation3], 1024
        $region40: #{dgcnn_forward.10} parent=35 // pred_fallthru
          _
        // Predicated region
        $region41: #{dgcnn_forward.10} parent=35 // pred_check
          %p225 = pneg %p120
        $region42: #{dgcnn_forward.10} parent=35 // pred_check_branch
          %227 = sbr.rel (%p225) target = $region44
        $region43: #{dgcnn_forward.10} parent=35 // pred_region
          %228 = dma.done [#allocation5], 1024
        $region44: #{dgcnn_forward.10} parent=35 // pred_fallthru
          _
        %s229 = smul.u32 2, %s22
        %p230 = scmp.lt.s32.totalorder %s21, 1
        %s231 = scalar_select %p230, %s21, 1
        %p232 = scmp.lt.s32.totalorder %s229, 1
        %s233 = scalar_select %p232, %s229, 1
        %s234 = smul.addr %s231, 2
        %s235 = sadd.s32 %s233, %s234
        %s236 = smul.addr %s235, 8
        %s237 = scalar_lea.vmem %s0, %s236
        %p238 = pneg %p52
        %p239 = pneg %p49
        %p240 = scmp.lt.s32.totalorder %s21, 1
        %s241 = scalar_select %p240, %s21, 1
        %s242 = smul.addr %s241, 2
        %s243 = smul.addr %s242, 4
        %s244 = scalar_lea.vmem %s1, %s243
        %p245 = pneg %p78
        %p246 = pneg %p75
        %p247 = pneg %p99
        %p248 = pneg %p96
        %p249 = pneg %p120
        %p250 = pneg %p117
        %p251 = pneg %p148
        %p252 = pneg %p145
        %s253 = smul.u32 2, %s22
        %p254 = scmp.lt.s32.totalorder %s21, 1
        %s255 = scalar_select %p254, %s21, 1
        %p256 = scmp.lt.s32.totalorder %s253, 1
        %s257 = scalar_select %p256, %s253, 1
        %s258 = smul.addr %s255, 2
        %s259 = sadd.s32 %s257, %s258
        %s260 = smul.addr %s259, 4
        %s261 = scalar_lea.vmem %s4, %s260
        %s262 = smul.u32 2, %s22
        %p263 = scmp.lt.s32.totalorder %s21, 1
        %s264 = scalar_select %p263, %s21, 1
        %p265 = scmp.lt.s32.totalorder %s262, 1
        %s266 = scalar_select %p265, %s262, 1
        %s267 = smul.addr %s264, 2
        %s268 = sadd.s32 %s266, %s267
        %s269 = smul.addr %s268, 8
        %s270 = scalar_lea.vmem %s0, %s269
        %s271 = smul.u32 2, %s22
        %p272 = scmp.lt.s32.totalorder %s21, 1
        %s273 = scalar_select %p272, %s21, 1
        %s274 = smul.addr %s273, 2
        %s275 = smul.addr %s274, 4
        %s276 = scalar_lea.vmem %s1, %s275
        %s277 = smul.u32 2, %s22
        %p278 = scmp.lt.s32.totalorder %s21, 1
        %s279 = scalar_select %p278, %s21, 1
        %p280 = scmp.lt.s32.totalorder %s277, 1
        %s281 = scalar_select %p280, %s277, 1
        %s282 = smul.addr %s279, 2
        %s283 = sadd.s32 %s281, %s282
        %s284 = smul.addr %s283, 4
        %s285 = scalar_lea.vmem %s4, %s284
        %s286 = smul.u32 2, %s22
        %s288 = smul.u32 %s22, 16
        %v289 = vld [vmem:[%s276] sm:$0xf]
        %v290 = vld [vmem:[%s276 + $0x4] sm:$0xf]
        %s291 = sshra.s32 %s288, 3
        %s292 = sand.u32 %s288, 7
        %s293 = smul.addr %s291, 4
        %s294 = scalar_lea.vmem %s276, %s293
        %v295 = vld [vmem:[%s294] sm:$0xf]
        %v296 = vld [vmem:[%s294 + $0x4] sm:$0xf]
        %v297 = vld [vmem:[#allocation2] sm:$0xf]
        %v298 = vld [vmem:[#allocation2 + $0x4] sm:$0xf]
        %v299 = vld [vmem:[#allocation2 + $0x8] sm:$0xf]
        %v300 = vld [vmem:[#allocation2 + $0xc] sm:$0xf]
        %v301 = vld [vmem:[#allocation2 + $0x10] sm:$0xf]
        %v302 = vld [vmem:[#allocation2 + $0x14] sm:$0xf]
        %v303 = vld [vmem:[#allocation2 + $0x18] sm:$0xf]
        %v304 = vld [vmem:[#allocation2 + $0x1c] sm:$0xf]
        %v305 = vld [vmem:[#allocation2 + $0x20] sm:$0xf]
        %v306 = vld [vmem:[#allocation2 + $0x24] sm:$0xf]
        %v307 = vld [vmem:[#allocation2 + $0x28] sm:$0xf]
        %v308 = vld [vmem:[#allocation2 + $0x2c] sm:$0xf]
        %v309 = vld [vmem:[#allocation2 + $0x30] sm:$0xf]
        %v310 = vld [vmem:[#allocation2 + $0x34] sm:$0xf]
        %v311 = vld [vmem:[#allocation2 + $0x38] sm:$0xf]
        %v312 = vld [vmem:[#allocation2 + $0x3c] sm:$0xf]
        %v313 = vld [vmem:[#allocation4] sm:$0xf]
        %v314 = vld [vmem:[#allocation4 + $0x4] sm:$0xf]
        %v315 = vld [vmem:[#allocation4 + $0x8] sm:$0xf]
        %v316 = vld [vmem:[#allocation4 + $0xc] sm:$0xf]
        %v317 = vld [vmem:[#allocation4 + $0x10] sm:$0xf]
        %v318 = vld [vmem:[#allocation4 + $0x14] sm:$0xf]
        %v319 = vld [vmem:[#allocation4 + $0x18] sm:$0xf]
        %v320 = vld [vmem:[#allocation4 + $0x1c] sm:$0xf]
        %v321 = vld [vmem:[#allocation4 + $0x20] sm:$0xf]
        %v322 = vld [vmem:[#allocation4 + $0x24] sm:$0xf]
        %v323 = vld [vmem:[#allocation4 + $0x28] sm:$0xf]
        %v324 = vld [vmem:[#allocation4 + $0x2c] sm:$0xf]
        %v325 = vld [vmem:[#allocation4 + $0x30] sm:$0xf]
        %v326 = vld [vmem:[#allocation4 + $0x34] sm:$0xf]
        %v327 = vld [vmem:[#allocation4 + $0x38] sm:$0xf]
        %v328 = vld [vmem:[#allocation4 + $0x3c] sm:$0xf]
        %v331 = vunpack.c.l.b16 %v295
        %v332 = vunpack.c.l.b16 %v296
        %v333 = vpack.c.b16 %v332, %v331
        %v351 = vunpack.c.l.b16 %v313
        %v352 = vunpack.c.l.b16 %v314
        %v353 = vunpack.c.l.b16 %v315
        %v354 = vunpack.c.l.b16 %v316
        %v355 = vunpack.c.l.b16 %v317
        %v356 = vunpack.c.l.b16 %v318
        %v357 = vunpack.c.l.b16 %v319
        %v358 = vunpack.c.l.b16 %v320
        %v359 = vunpack.c.l.b16 %v321
        %v360 = vunpack.c.l.b16 %v322
        %v361 = vunpack.c.l.b16 %v323
        %v362 = vunpack.c.l.b16 %v324
        %v363 = vunpack.c.l.b16 %v325
        %v364 = vunpack.c.l.b16 %v326
        %v365 = vunpack.c.l.b16 %v327
        %v366 = vunpack.c.l.b16 %v328
        %v367 = vpack.c.b16 %v352, %v351
        %v368 = vpack.c.b16 %v354, %v353
        %v369 = vpack.c.b16 %v356, %v355
        %v370 = vpack.c.b16 %v358, %v357
        %v371 = vpack.c.b16 %v360, %v359
        %v372 = vpack.c.b16 %v362, %v361
        %v373 = vpack.c.b16 %v364, %v363
        %v374 = vpack.c.b16 %v366, %v365
        %383 = vmatprep.subr.bf16.mxu0 0
        %384 = vmatpush1.bf16.msra.mxu0 %v367
        %385 = vmatprep.subr.bf16.mxu0 0
        %386 = vmatpush1.bf16.msra.mxu0 %v368
        %387 = vmatprep.subr.bf16.mxu0 0
        %388 = vmatpush1.bf16.msra.mxu0 %v369
        %389 = vmatprep.subr.bf16.mxu0 0
        %390 = vmatpush1.bf16.msra.mxu0 %v370
        %391 = vmatprep.subr.bf16.mxu0 0
        %392 = vmatpush1.bf16.msra.mxu0 %v371
        %393 = vmatprep.subr.bf16.mxu0 0
        %394 = vmatpush1.bf16.msra.mxu0 %v372
        %395 = vmatprep.subr.bf16.mxu0 0
        %396 = vmatpush1.bf16.msra.mxu0 %v373
        %397 = vmatprep.subr.bf16.mxu0 0
        %398 = vmatpush1.bf16.msra.mxu0 %v374
        %399 = vmatprep.subr.bf16.mxu0 0
        %400 = vmatpush1.bf16.msra.mxu0 0
        %401 = vmatprep.subr.bf16.mxu0 0
        %402 = vmatpush1.bf16.msra.mxu0 0
        %403 = vmatprep.subr.bf16.mxu0 0
        %404 = vmatpush1.bf16.msra.mxu0 0
        %405 = vmatprep.subr.bf16.mxu0 0
        %406 = vmatpush1.bf16.msra.mxu0 0
        %407 = vmatprep.subr.bf16.mxu0 0
        %408 = vmatpush1.bf16.msra.mxu0 0
        %409 = vmatprep.subr.bf16.mxu0 0
        %410 = vmatpush1.bf16.msra.mxu0 0
        %411 = vmatprep.subr.bf16.mxu0 0
        %412 = vmatpush1.bf16.msra.mxu0 0
        %413 = vmatprep.subr.bf16.mxu0 0
        %414 = vmatpush1.bf16.msra.mxu0 0
        %415 = vmatprep.mubr.bf16.mxu0 0
        %416 = vmatmul.mubr.bf16.gmra.mrb[0].mxu0 %v333
        %v417 = vpop.f32.mrb[0].mxu0
        %v418 = vadd.f32 0.0, %v417
        %v419 = vpop.f32.mrb[0].mxu0
        %v420 = vpop.f32.mrb[0].mxu0
        %v421 = vadd.f32 0.0, %v420
        %v422 = vpop.f32.mrb[0].mxu0
        %423 = vdwg.mxu0
        %v424 = vld [vmem:[%s270] sm:$0xff]
        %v425 = vld [vmem:[%s270 + $0x8] sm:$0xff]
        %v426 = vlaneseq
        %v427 = vand.u32 %v426, 127
        %428 = vset.pattern.permute.xlu0 0
        %429 = vperm.xlu0 %428, %v424
        %v430 = vpop.permute.xlu0 %429
        %431 = vset.pattern.permute.xlu0 0
        %432 = vperm.xlu0 %431, %v425
        %v433 = vpop.permute.xlu0 %432
        %vm434 = vcmp.eq.s32.totalorder %v427, %v430
        %vm435 = vcmp.eq.s32.totalorder %v427, %v433
        %v436 = vsel %vm434, 1.0, 0.0
        %v437 = vsel %vm435, 1.0, 0.0
        %v438 = vpack.c.bf16 %v437, %v436
        %v441 = vunpack.c.l.b16 %v289
        %v442 = vunpack.c.l.b16 %v290
        %v443 = vpack.c.b16 %v442, %v441
        %vm445 = vcmask 130048
        %v447 = vsel %vm445, %v438, 0
        %449 = vmatprep.subr.bf16.mxu0 0
        %450 = vmatpush1.bf16.msra.mxu0 %v443
        %451 = vmatprep.subr.bf16.mxu0 0
        %452 = vmatpush1.bf16.msra.mxu0 0
        %453 = vmatprep.subr.bf16.mxu0 0
        %454 = vmatpush1.bf16.msra.mxu0 0
        %455 = vmatprep.subr.bf16.mxu0 0
        %456 = vmatpush1.bf16.msra.mxu0 0
        %457 = vmatprep.subr.bf16.mxu0 0
        %458 = vmatpush1.bf16.msra.mxu0 0
        %459 = vmatprep.subr.bf16.mxu0 0
        %460 = vmatpush1.bf16.msra.mxu0 0
        %461 = vmatprep.subr.bf16.mxu0 0
        %462 = vmatpush1.bf16.msra.mxu0 0
        %463 = vmatprep.subr.bf16.mxu0 0
        %464 = vmatpush1.bf16.msra.mxu0 0
        %465 = vmatprep.subr.bf16.mxu0 0
        %466 = vmatpush1.bf16.msra.mxu0 0
        %467 = vmatprep.subr.bf16.mxu0 0
        %468 = vmatpush1.bf16.msra.mxu0 0
        %469 = vmatprep.subr.bf16.mxu0 0
        %470 = vmatpush1.bf16.msra.mxu0 0
        %471 = vmatprep.subr.bf16.mxu0 0
        %472 = vmatpush1.bf16.msra.mxu0 0
        %473 = vmatprep.subr.bf16.mxu0 0
        %474 = vmatpush1.bf16.msra.mxu0 0
        %475 = vmatprep.subr.bf16.mxu0 0
        %476 = vmatpush1.bf16.msra.mxu0 0
        %477 = vmatprep.subr.bf16.mxu0 0
        %478 = vmatpush1.bf16.msra.mxu0 0
        %479 = vmatprep.subr.bf16.mxu0 0
        %480 = vmatpush1.bf16.msra.mxu0 0
        %481 = vmatprep.mubr.bf16.mxu0 0
        %482 = vmatmul.mubr.bf16.gmra.mrb[0].mxu0 %v447
        %v483 = vpop.f32.mrb[0].mxu0
        %v484 = vadd.f32 0.0, %v483
        %v485 = vpop.f32.mrb[0].mxu0
        %v486 = vpop.f32.mrb[0].mxu0
        %v487 = vadd.f32 0.0, %v486
        %v488 = vpop.f32.mrb[0].mxu0
        %489 = vdwg.mxu0
        %v490 = vpack.c.bf16 %v487, %v484
        %v507 = vunpack.c.l.b16 %v297
        %v508 = vunpack.c.l.b16 %v298
        %v509 = vunpack.c.l.b16 %v299
        %v510 = vunpack.c.l.b16 %v300
        %v511 = vunpack.c.l.b16 %v301
        %v512 = vunpack.c.l.b16 %v302
        %v513 = vunpack.c.l.b16 %v303
        %v514 = vunpack.c.l.b16 %v304
        %v515 = vunpack.c.l.b16 %v305
        %v516 = vunpack.c.l.b16 %v306
        %v517 = vunpack.c.l.b16 %v307
        %v518 = vunpack.c.l.b16 %v308
        %v519 = vunpack.c.l.b16 %v309
        %v520 = vunpack.c.l.b16 %v310
        %v521 = vunpack.c.l.b16 %v311
        %v522 = vunpack.c.l.b16 %v312
        %v523 = vpack.c.b16 %v508, %v507
        %v524 = vpack.c.b16 %v510, %v509
        %v525 = vpack.c.b16 %v512, %v511
        %v526 = vpack.c.b16 %v514, %v513
        %v527 = vpack.c.b16 %v516, %v515
        %v528 = vpack.c.b16 %v518, %v517
        %v529 = vpack.c.b16 %v520, %v519
        %v530 = vpack.c.b16 %v522, %v521
        %539 = vmatprep.subr.bf16.mxu0 0
        %540 = vmatpush1.bf16.msra.mxu0 %v523
        %541 = vmatprep.subr.bf16.mxu0 0
        %542 = vmatpush1.bf16.msra.mxu0 %v524
        %543 = vmatprep.subr.bf16.mxu0 0
        %544 = vmatpush1.bf16.msra.mxu0 %v525
        %545 = vmatprep.subr.bf16.mxu0 0
        %546 = vmatpush1.bf16.msra.mxu0 %v526
        %547 = vmatprep.subr.bf16.mxu0 0
        %548 = vmatpush1.bf16.msra.mxu0 %v527
        %549 = vmatprep.subr.bf16.mxu0 0
        %550 = vmatpush1.bf16.msra.mxu0 %v528
        %551 = vmatprep.subr.bf16.mxu0 0
        %552 = vmatpush1.bf16.msra.mxu0 %v529
        %553 = vmatprep.subr.bf16.mxu0 0
        %554 = vmatpush1.bf16.msra.mxu0 %v530
        %555 = vmatprep.subr.bf16.mxu0 0
        %556 = vmatpush1.bf16.msra.mxu0 0
        %557 = vmatprep.subr.bf16.mxu0 0
        %558 = vmatpush1.bf16.msra.mxu0 0
        %559 = vmatprep.subr.bf16.mxu0 0
        %560 = vmatpush1.bf16.msra.mxu0 0
        %561 = vmatprep.subr.bf16.mxu0 0
        %562 = vmatpush1.bf16.msra.mxu0 0
        %563 = vmatprep.subr.bf16.mxu0 0
        %564 = vmatpush1.bf16.msra.mxu0 0
        %565 = vmatprep.subr.bf16.mxu0 0
        %566 = vmatpush1.bf16.msra.mxu0 0
        %567 = vmatprep.subr.bf16.mxu0 0
        %568 = vmatpush1.bf16.msra.mxu0 0
        %569 = vmatprep.subr.bf16.mxu0 0
        %570 = vmatpush1.bf16.msra.mxu0 0
        %571 = vmatprep.mubr.bf16.mxu0 0
        %572 = vmatmul.mubr.bf16.gmra.mrb[0].mxu0 %v490
        %v573 = vpop.f32.mrb[0].mxu0
        %v574 = vadd.f32 %v418, %v573
        %v575 = vpop.f32.mrb[0].mxu0
        %v576 = vpop.f32.mrb[0].mxu0
        %v577 = vadd.f32 %v421, %v576
        %v578 = vpop.f32.mrb[0].mxu0
        %579 = vdwg.mxu0
        %v580 = vmax.f32 %v574, 0.0
        %v581 = vmax.f32 %v577, 0.0
        %582 = vset.pattern.permute.xlu0 1
        %583 = vperm.xlu0 %582, %v424
        %v584 = vpop.permute.xlu0 %583
        %585 = vset.pattern.permute.xlu0 1
        %586 = vperm.xlu0 %585, %v425
        %v587 = vpop.permute.xlu0 %586
        %vm588 = vcmp.eq.s32.totalorder %v427, %v584
        %vm589 = vcmp.eq.s32.totalorder %v427, %v587
        %v590 = vsel %vm588, 1.0, 0.0
        %v591 = vsel %vm589, 1.0, 0.0
        %v592 = vpack.c.bf16 %v591, %v590
        %v594 = vsel %vm445, %v592, 0
        %596 = vmatprep.subr.bf16.mxu0 0
        %597 = vmatpush1.bf16.msra.mxu0 %v443
        %598 = vmatprep.subr.bf16.mxu0 0
        %599 = vmatpush1.bf16.msra.mxu0 0
        %600 = vmatprep.subr.bf16.mxu0 0
        %601 = vmatpush1.bf16.msra.mxu0 0
        %602 = vmatprep.subr.bf16.mxu0 0
        %603 = vmatpush1.bf16.msra.mxu0 0
        %604 = vmatprep.subr.bf16.mxu0 0
        %605 = vmatpush1.bf16.msra.mxu0 0
        %606 = vmatprep.subr.bf16.mxu0 0
        %607 = vmatpush1.bf16.msra.mxu0 0
        %608 = vmatprep.subr.bf16.mxu0 0
        %609 = vmatpush1.bf16.msra.mxu0 0
        %610 = vmatprep.subr.bf16.mxu0 0
        %611 = vmatpush1.bf16.msra.mxu0 0
        %612 = vmatprep.subr.bf16.mxu0 0
        %613 = vmatpush1.bf16.msra.mxu0 0
        %614 = vmatprep.subr.bf16.mxu0 0
        %615 = vmatpush1.bf16.msra.mxu0 0
        %616 = vmatprep.subr.bf16.mxu0 0
        %617 = vmatpush1.bf16.msra.mxu0 0
        %618 = vmatprep.subr.bf16.mxu0 0
        %619 = vmatpush1.bf16.msra.mxu0 0
        %620 = vmatprep.subr.bf16.mxu0 0
        %621 = vmatpush1.bf16.msra.mxu0 0
        %622 = vmatprep.subr.bf16.mxu0 0
        %623 = vmatpush1.bf16.msra.mxu0 0
        %624 = vmatprep.subr.bf16.mxu0 0
        %625 = vmatpush1.bf16.msra.mxu0 0
        %626 = vmatprep.subr.bf16.mxu0 0
        %627 = vmatpush1.bf16.msra.mxu0 0
        %628 = vmatprep.mubr.bf16.mxu0 0
        %629 = vmatmul.mubr.bf16.gmra.mrb[0].mxu0 %v594
        %v630 = vpop.f32.mrb[0].mxu0
        %v631 = vadd.f32 0.0, %v630
        %v632 = vpop.f32.mrb[0].mxu0
        %v633 = vpop.f32.mrb[0].mxu0
        %v634 = vadd.f32 0.0, %v633
        %v635 = vpop.f32.mrb[0].mxu0
        %636 = vdwg.mxu0
        %v637 = vpack.c.bf16 %v634, %v631
        %638 = vmatprep.subr.bf16.mxu0 0
        %639 = vmatpush1.bf16.msra.mxu0 %v523
        %640 = vmatprep.subr.bf16.mxu0 0
        %641 = vmatpush1.bf16.msra.mxu0 %v524
        %642 = vmatprep.subr.bf16.mxu0 0
        %643 = vmatpush1.bf16.msra.mxu0 %v525
        %644 = vmatprep.subr.bf16.mxu0 0
        %645 = vmatpush1.bf16.msra.mxu0 %v526
        %646 = vmatprep.subr.bf16.mxu0 0
        %647 = vmatpush1.bf16.msra.mxu0 %v527
        %648 = vmatprep.subr.bf16.mxu0 0
        %649 = vmatpush1.bf16.msra.mxu0 %v528
        %650 = vmatprep.subr.bf16.mxu0 0
        %651 = vmatpush1.bf16.msra.mxu0 %v529
        %652 = vmatprep.subr.bf16.mxu0 0
        %653 = vmatpush1.bf16.msra.mxu0 %v530
        %654 = vmatprep.subr.bf16.mxu0 0
        %655 = vmatpush1.bf16.msra.mxu0 0
        %656 = vmatprep.subr.bf16.mxu0 0
        %657 = vmatpush1.bf16.msra.mxu0 0
        %658 = vmatprep.subr.bf16.mxu0 0
        %659 = vmatpush1.bf16.msra.mxu0 0
        %660 = vmatprep.subr.bf16.mxu0 0
        %661 = vmatpush1.bf16.msra.mxu0 0
        %662 = vmatprep.subr.bf16.mxu0 0
        %663 = vmatpush1.bf16.msra.mxu0 0
        %664 = vmatprep.subr.bf16.mxu0 0
        %665 = vmatpush1.bf16.msra.mxu0 0
        %666 = vmatprep.subr.bf16.mxu0 0
        %667 = vmatpush1.bf16.msra.mxu0 0
        %668 = vmatprep.subr.bf16.mxu0 0
        %669 = vmatpush1.bf16.msra.mxu0 0
        %670 = vmatprep.mubr.bf16.mxu0 0
        %671 = vmatmul.mubr.bf16.gmra.mrb[0].mxu0 %v637
        %v672 = vpop.f32.mrb[0].mxu0
        %v673 = vadd.f32 %v418, %v672
        %v674 = vpop.f32.mrb[0].mxu0
        %v675 = vpop.f32.mrb[0].mxu0
        %v676 = vadd.f32 %v421, %v675
        %v677 = vpop.f32.mrb[0].mxu0
        %678 = vdwg.mxu0
        %v679 = vmax.f32 %v673, 0.0
        %v680 = vmax.f32 %v676, 0.0
        %v681 = vmax.f32 %v580, %v679
        %v682 = vmax.f32 %v581, %v680
        %683 = vset.pattern.permute.xlu0 2
        %684 = vperm.xlu0 %683, %v424
        %v685 = vpop.permute.xlu0 %684
        %686 = vset.pattern.permute.xlu0 2
        %687 = vperm.xlu0 %686, %v425
        %v688 = vpop.permute.xlu0 %687
        %vm689 = vcmp.eq.s32.totalorder %v427, %v685
        %vm690 = vcmp.eq.s32.totalorder %v427, %v688
        %v691 = vsel %vm689, 1.0, 0.0
        %v692 = vsel %vm690, 1.0, 0.0
        %v693 = vpack.c.bf16 %v692, %v691
        %v695 = vsel %vm445, %v693, 0
        %697 = vmatprep.subr.bf16.mxu0 0
        %698 = vmatpush1.bf16.msra.mxu0 %v443
        %699 = vmatprep.subr.bf16.mxu0 0
        %700 = vmatpush1.bf16.msra.mxu0 0
        %701 = vmatprep.subr.bf16.mxu0 0
        %702 = vmatpush1.bf16.msra.mxu0 0
        %703 = vmatprep.subr.bf16.mxu0 0
        %704 = vmatpush1.bf16.msra.mxu0 0
        %705 = vmatprep.subr.bf16.mxu0 0
        %706 = vmatpush1.bf16.msra.mxu0 0
        %707 = vmatprep.subr.bf16.mxu0 0
        %708 = vmatpush1.bf16.msra.mxu0 0
        %709 = vmatprep.subr.bf16.mxu0 0
        %710 = vmatpush1.bf16.msra.mxu0 0
        %711 = vmatprep.subr.bf16.mxu0 0
        %712 = vmatpush1.bf16.msra.mxu0 0
        %713 = vmatprep.subr.bf16.mxu0 0
        %714 = vmatpush1.bf16.msra.mxu0 0
        %715 = vmatprep.subr.bf16.mxu0 0
        %716 = vmatpush1.bf16.msra.mxu0 0
        %717 = vmatprep.subr.bf16.mxu0 0
        %718 = vmatpush1.bf16.msra.mxu0 0
        %719 = vmatprep.subr.bf16.mxu0 0
        %720 = vmatpush1.bf16.msra.mxu0 0
        %721 = vmatprep.subr.bf16.mxu0 0
        %722 = vmatpush1.bf16.msra.mxu0 0
        %723 = vmatprep.subr.bf16.mxu0 0
        %724 = vmatpush1.bf16.msra.mxu0 0
        %725 = vmatprep.subr.bf16.mxu0 0
        %726 = vmatpush1.bf16.msra.mxu0 0
        %727 = vmatprep.subr.bf16.mxu0 0
        %728 = vmatpush1.bf16.msra.mxu0 0
        %729 = vmatprep.mubr.bf16.mxu0 0
        %730 = vmatmul.mubr.bf16.gmra.mrb[0].mxu0 %v695
        %v731 = vpop.f32.mrb[0].mxu0
        %v732 = vadd.f32 0.0, %v731
        %v733 = vpop.f32.mrb[0].mxu0
        %v734 = vpop.f32.mrb[0].mxu0
        %v735 = vadd.f32 0.0, %v734
        %v736 = vpop.f32.mrb[0].mxu0
        %737 = vdwg.mxu0
        %v738 = vpack.c.bf16 %v735, %v732
        %739 = vmatprep.subr.bf16.mxu0 0
        %740 = vmatpush1.bf16.msra.mxu0 %v523
        %741 = vmatprep.subr.bf16.mxu0 0
        %742 = vmatpush1.bf16.msra.mxu0 %v524
        %743 = vmatprep.subr.bf16.mxu0 0
        %744 = vmatpush1.bf16.msra.mxu0 %v525
        %745 = vmatprep.subr.bf16.mxu0 0
        %746 = vmatpush1.bf16.msra.mxu0 %v526
        %747 = vmatprep.subr.bf16.mxu0 0
        %748 = vmatpush1.bf16.msra.mxu0 %v527
        %749 = vmatprep.subr.bf16.mxu0 0
        %750 = vmatpush1.bf16.msra.mxu0 %v528
        %751 = vmatprep.subr.bf16.mxu0 0
        %752 = vmatpush1.bf16.msra.mxu0 %v529
        %753 = vmatprep.subr.bf16.mxu0 0
        %754 = vmatpush1.bf16.msra.mxu0 %v530
        %755 = vmatprep.subr.bf16.mxu0 0
        %756 = vmatpush1.bf16.msra.mxu0 0
        %757 = vmatprep.subr.bf16.mxu0 0
        %758 = vmatpush1.bf16.msra.mxu0 0
        %759 = vmatprep.subr.bf16.mxu0 0
        %760 = vmatpush1.bf16.msra.mxu0 0
        %761 = vmatprep.subr.bf16.mxu0 0
        %762 = vmatpush1.bf16.msra.mxu0 0
        %763 = vmatprep.subr.bf16.mxu0 0
        %764 = vmatpush1.bf16.msra.mxu0 0
        %765 = vmatprep.subr.bf16.mxu0 0
        %766 = vmatpush1.bf16.msra.mxu0 0
        %767 = vmatprep.subr.bf16.mxu0 0
        %768 = vmatpush1.bf16.msra.mxu0 0
        %769 = vmatprep.subr.bf16.mxu0 0
        %770 = vmatpush1.bf16.msra.mxu0 0
        %771 = vmatprep.mubr.bf16.mxu0 0
        %772 = vmatmul.mubr.bf16.gmra.mrb[0].mxu0 %v738
        %v773 = vpop.f32.mrb[0].mxu0
        %v774 = vadd.f32 %v418, %v773
        %v775 = vpop.f32.mrb[0].mxu0
        %v776 = vpop.f32.mrb[0].mxu0
        %v777 = vadd.f32 %v421, %v776
        %v778 = vpop.f32.mrb[0].mxu0
        %779 = vdwg.mxu0
        %v780 = vmax.f32 %v774, 0.0
        %v781 = vmax.f32 %v777, 0.0
        %v782 = vmax.f32 %v681, %v780
        %v783 = vmax.f32 %v682, %v781
        %784 = vset.pattern.permute.xlu0 3
        %785 = vperm.xlu0 %784, %v424
        %v786 = vpop.permute.xlu0 %785
        %787 = vset.pattern.permute.xlu0 3
        %788 = vperm.xlu0 %787, %v425
        %v789 = vpop.permute.xlu0 %788
        %vm790 = vcmp.eq.s32.totalorder %v427, %v786
        %vm791 = vcmp.eq.s32.totalorder %v427, %v789
        %v792 = vsel %vm790, 1.0, 0.0
        %v793 = vsel %vm791, 1.0, 0.0
        %v794 = vpack.c.bf16 %v793, %v792
        %v796 = vsel %vm445, %v794, 0
        %798 = vmatprep.subr.bf16.mxu0 0
        %799 = vmatpush1.bf16.msra.mxu0 %v443
        %800 = vmatprep.subr.bf16.mxu0 0
        %801 = vmatpush1.bf16.msra.mxu0 0
        %802 = vmatprep.subr.bf16.mxu0 0
        %803 = vmatpush1.bf16.msra.mxu0 0
        %804 = vmatprep.subr.bf16.mxu0 0
        %805 = vmatpush1.bf16.msra.mxu0 0
        %806 = vmatprep.subr.bf16.mxu0 0
        %807 = vmatpush1.bf16.msra.mxu0 0
        %808 = vmatprep.subr.bf16.mxu0 0
        %809 = vmatpush1.bf16.msra.mxu0 0
        %810 = vmatprep.subr.bf16.mxu0 0
        %811 = vmatpush1.bf16.msra.mxu0 0
        %812 = vmatprep.subr.bf16.mxu0 0
        %813 = vmatpush1.bf16.msra.mxu0 0
        %814 = vmatprep.subr.bf16.mxu0 0
        %815 = vmatpush1.bf16.msra.mxu0 0
        %816 = vmatprep.subr.bf16.mxu0 0
        %817 = vmatpush1.bf16.msra.mxu0 0
        %818 = vmatprep.subr.bf16.mxu0 0
        %819 = vmatpush1.bf16.msra.mxu0 0
        %820 = vmatprep.subr.bf16.mxu0 0
        %821 = vmatpush1.bf16.msra.mxu0 0
        %822 = vmatprep.subr.bf16.mxu0 0
        %823 = vmatpush1.bf16.msra.mxu0 0
        %824 = vmatprep.subr.bf16.mxu0 0
        %825 = vmatpush1.bf16.msra.mxu0 0
        %826 = vmatprep.subr.bf16.mxu0 0
        %827 = vmatpush1.bf16.msra.mxu0 0
        %828 = vmatprep.subr.bf16.mxu0 0
        %829 = vmatpush1.bf16.msra.mxu0 0
        %830 = vmatprep.mubr.bf16.mxu0 0
        %831 = vmatmul.mubr.bf16.gmra.mrb[0].mxu0 %v796
        %v832 = vpop.f32.mrb[0].mxu0
        %v833 = vadd.f32 0.0, %v832
        %v834 = vpop.f32.mrb[0].mxu0
        %v835 = vpop.f32.mrb[0].mxu0
        %v836 = vadd.f32 0.0, %v835
        %v837 = vpop.f32.mrb[0].mxu0
        %838 = vdwg.mxu0
        %v839 = vpack.c.bf16 %v836, %v833
        %840 = vmatprep.subr.bf16.mxu0 0
        %841 = vmatpush1.bf16.msra.mxu0 %v523
        %842 = vmatprep.subr.bf16.mxu0 0
        %843 = vmatpush1.bf16.msra.mxu0 %v524
        %844 = vmatprep.subr.bf16.mxu0 0
        %845 = vmatpush1.bf16.msra.mxu0 %v525
        %846 = vmatprep.subr.bf16.mxu0 0
        %847 = vmatpush1.bf16.msra.mxu0 %v526
        %848 = vmatprep.subr.bf16.mxu0 0
        %849 = vmatpush1.bf16.msra.mxu0 %v527
        %850 = vmatprep.subr.bf16.mxu0 0
        %851 = vmatpush1.bf16.msra.mxu0 %v528
        %852 = vmatprep.subr.bf16.mxu0 0
        %853 = vmatpush1.bf16.msra.mxu0 %v529
        %854 = vmatprep.subr.bf16.mxu0 0
        %855 = vmatpush1.bf16.msra.mxu0 %v530
        %856 = vmatprep.subr.bf16.mxu0 0
        %857 = vmatpush1.bf16.msra.mxu0 0
        %858 = vmatprep.subr.bf16.mxu0 0
        %859 = vmatpush1.bf16.msra.mxu0 0
        %860 = vmatprep.subr.bf16.mxu0 0
        %861 = vmatpush1.bf16.msra.mxu0 0
        %862 = vmatprep.subr.bf16.mxu0 0
        %863 = vmatpush1.bf16.msra.mxu0 0
        %864 = vmatprep.subr.bf16.mxu0 0
        %865 = vmatpush1.bf16.msra.mxu0 0
        %866 = vmatprep.subr.bf16.mxu0 0
        %867 = vmatpush1.bf16.msra.mxu0 0
        %868 = vmatprep.subr.bf16.mxu0 0
        %869 = vmatpush1.bf16.msra.mxu0 0
        %870 = vmatprep.subr.bf16.mxu0 0
        %871 = vmatpush1.bf16.msra.mxu0 0
        %872 = vmatprep.mubr.bf16.mxu0 0
        %873 = vmatmul.mubr.bf16.gmra.mrb[0].mxu0 %v839
        %v874 = vpop.f32.mrb[0].mxu0
        %v875 = vadd.f32 %v418, %v874
        %v876 = vpop.f32.mrb[0].mxu0
        %v877 = vpop.f32.mrb[0].mxu0
        %v878 = vadd.f32 %v421, %v877
        %v879 = vpop.f32.mrb[0].mxu0
        %880 = vdwg.mxu0
        %v881 = vmax.f32 %v875, 0.0
        %v882 = vmax.f32 %v878, 0.0
        %v883 = vmax.f32 %v782, %v881
        %v884 = vmax.f32 %v783, %v882
        %v885 = vpack.c.bf16 %v884, %v883
        %v887 = vunpack.c.l.b16 %v885
        %v888 = vunpack.c.h.b16 %v885
        %v889 = vpack.c.b16 %v887, %v887
        %v890 = vpack.c.b16 %v888, %v888
        %893 = vst [vmem:[%s285] sm:$0xf] %v889
        %894 = vst [vmem:[%s285 + $0x4] sm:$0xf] %v890
        %s895 = smul.u32 2, %s22
        %p896 = scmp.lt.s32.totalorder %s21, 1
        %s897 = scalar_select %p896, %s21, 1
        %p898 = scmp.lt.s32.totalorder %s895, 1
        %s899 = scalar_select %p898, %s895, 1
        %s900 = smul.addr %s897, 2
        %s901 = sadd.s32 %s899, %s900
        %s902 = smul.addr %s901, 4
        %s903 = scalar_lea.vmem %s4, %s902
        // Predicated region
        $region45: #{dgcnn_forward.10} parent=35 // pred_check
          %p904 = pneg %p145
        $region46: #{dgcnn_forward.10} parent=35 // pred_check_branch
          %906 = sbr.rel (%p904) target = $region48
        $region47: #{dgcnn_forward.10} parent=35 // pred_region
          %s907 = smul.u32 2, %s22
        $region48: #{dgcnn_forward.10} parent=35 // pred_fallthru
          _
      $region36: #{dgcnn_forward.10} parent=5 // pred_fallthru
        _
      %p908 = scmp.le.s32.totalorder 2, %s12
      // Predicated region
      $region49: #{dgcnn_forward.10} parent=5 // pred_check
        %p909 = pneg %p908
      $region50: #{dgcnn_forward.10} parent=5 // pred_check_branch
        %911 = sbr.rel (%p909) target = $region52
      $region51: #{dgcnn_forward.10} parent=5 // pred_region
        %s912 = ssub.s32 %s12, 2
        // Predicated region
        $region53: #{dgcnn_forward.10} parent=51 // pred_check
          %p913 = pneg %p151
        $region54: #{dgcnn_forward.10} parent=51 // pred_check_branch
          %915 = sbr.rel (%p913) target = $region56
        $region55: #{dgcnn_forward.10} parent=51 // pred_region
          %s916 = smul.u32 2, %s24
          %p917 = scmp.lt.s32.totalorder %s23, 1
          %s918 = scalar_select %p917, %s23, 1
          %p919 = scmp.lt.s32.totalorder %s916, 1
          %s920 = scalar_select %p919, %s916, 1
          %s921 = smul.addr %s918, 2
          %s922 = sadd.s32 %s920, %s921
          %s923 = smul.addr %s922, 4
          %s924 = scalar_lea.vmem %s4, %s923
        $region56: #{dgcnn_forward.10} parent=51 // pred_fallthru
          _
      $region52: #{dgcnn_forward.10} parent=5 // pred_fallthru
        _
    $region6: #{dgcnn_forward.10} parent=1 // loop_footer
      %s16 = sadd.s32 1, %s12
    $region7: #{dgcnn_forward.10} parent=1 // loop_footer_branch
      %11 = sbr.rel target = $region3
    $region8: #{dgcnn_forward.10} parent=1 // loop_exit
      _
    %925 = vsyncpa [#allocation3], 1
    %s926 = scalar_lea.sflag [#allocation3], 1
    %927 = vsyncpa %s926, 1
    %928 = vsyncpa [#allocation5], 1

// kernel: dgcnn_forward.16
$region0: #{dgcnn_forward.16}
  #allocation0 [shape = 'u32[]', space=smem, size = 0x4, offset = 0x4, fixed_abs, tag = 'smem constant byte address 0x4 - core index']
  #allocation1 [shape = 'u32[144,128]{1,0:T(1,128)}', space=vmem, size = 0x12000, scoped, tag = 'internal scratch']
  %s0 = inlined_call_operand.vmem [shape: s32[2,16,4], index: 0, kind: input, shape index: {}]
  %s1 = inlined_call_operand.vmem [shape: bf16[2,16,128], index: 1, kind: input, shape index: {}]
  %s2 = inlined_call_operand.hbm [shape: bf16[128,256], index: 2, kind: input, shape index: {}]
  %s3 = inlined_call_operand.hbm [shape: bf16[128,256], index: 3, kind: input, shape index: {}]
  %s4 = inlined_call_operand.vmem [shape: bf16[2,16,256], index: 4, kind: output, shape index: {}]
  %s5 = sld [smem:[#allocation0]]
  $region57: #{dgcnn_forward.16} parent=0
    _
  %s7 = ssub.s32 1, %s5
  %s8 = scalar_select 0, %s7, %s5
  $region1: #{dgcnn_forward.16} parent=0
    #allocation2 [shape = 'u8[65536]{0}', space=vmem, size = 0x10000, scoped, tag = 'input window, operand 2, single buffered']
    #allocation3 [shape = 's32[2]{0}', space=sflag, size = 0x8, scoped, tag = 'scoped memory for dgcnn_forward.16']
    #allocation4 [shape = 'u8[65536]{0}', space=vmem, size = 0x10000, scoped, tag = 'input window, operand 3, single buffered']
    #allocation5 [shape = 's32[1]{0}', space=sflag, size = 0x4, scoped, tag = 'scoped memory for dgcnn_forward.16']
    %9 = vsyncpa [#allocation3], 0
    %10 = vsyncpa [#allocation5], 0
    loop: start=0, step=1, limit=4
    $region2: #{dgcnn_forward.16} parent=1 // loop_pre_header
      _
    $region3: #{dgcnn_forward.16} parent=1 // loop_header
      %s12 = sphi 0, %s16
      %p13 = scmp.ge.s32.totalorder %s12, 4
      %s19 = sphi 0, %s31
      %s20 = sphi 0, %s27
      %s21 = sphi 0, %s19
      %s22 = sphi 0, %s20
      %s23 = sphi 0, %s21
      %s24 = sphi 0, %s22
      %s36 = sphi 0, %s38
      %s39 = sphi 0, %s36
      %s40 = sphi 0, %s39
      %s56 = sphi 0, %s40
      %s62 = sphi 0, %s64
      %s65 = sphi 0, %s62
      %s66 = sphi 0, %s65
      %s82 = sphi 0, %s66
      %s86 = sphi 0, %s86
      %s88 = sphi 0, %s86
      %s89 = sphi 0, %s88
      %s103 = sphi 0, %s89
      %s107 = sphi 0, %s107
      %s109 = sphi 0, %s107
      %s110 = sphi 0, %s109
      %s124 = sphi 0, %s110
      %s132 = sphi 0, %s134
      %s135 = sphi 0, %s132
      %s136 = sphi 0, %s135
      %s152 = sphi 0, %s136
    $region4: #{dgcnn_forward.16} parent=1 // loop_header_branch
      %15 = sbr.rel (%p13) target = $region8
    $region5: #{dgcnn_forward.16} parent=1 // loop_body
      %s17 = ssub.s32 %s12, 1
      %s18 = ssub.s32 %s12, 2
      %s25 = sadd.s32 1, %s20
      %p26 = scmp.ge.s32.totalorder %s25, 1
      %s27 = scalar_select %p26, 0, %s25
      %s28 = sadd.s32 1, %s19
      %s29 = scalar_select %p26, %s28, %s19
      %p30 = scmp.ge.s32.totalorder %s29, 2
      %s31 = scalar_select %p30, 0, %s29
      %s32 = ssub.s32 %s19, %s31
      %s33 = ssub.s32 %s20, %s27
      %s34 = sor.u32 %s32, %s33
      %p35 = scmp.eq.s32.totalorder %s34, 0
      %s37 = sadd.s32 %s36, 1
      %s38 = scalar_select %p35, %s36, %s37
      %p41 = pneg %p35
      %p42 = scmp.eq.s32.totalorder %s12, 1
      %p43 = por %p41, %p42
      %p44 = scmp.ne.s32.totalorder %s36, %s39
      %p45 = scmp.eq.s32.totalorder %s12, 0
      %p46 = por %p44, %p45
      %p47 = scmp.ne.s32.totalorder %s36, %s39
      %p48 = scmp.eq.s32.totalorder %s17, 1
      %p49 = por %p47, %p48
      %p50 = scmp.ne.s32.totalorder %s39, %s40
      %p51 = scmp.eq.s32.totalorder %s17, 0
      %p52 = por %p50, %p51
      %p53 = scmp.ne.s32.totalorder %s39, %s40
      %p54 = scmp.eq.s32.totalorder %s18, 1
      %p55 = por %p53, %p54
      %p57 = scmp.ne.s32.totalorder %s40, %s56
      %p58 = scmp.eq.s32.totalorder %s18, 0
      %p59 = por %p57, %p58
      %s60 = ssub.s32 %s19, %s31
      %p61 = scmp.eq.s32.totalorder %s60, 0
      %s63 = sadd.s32 %s62, 1
      %s64 = scalar_select %p61, %s62, %s63
      %p67 = pneg %p61
      %p68 = scmp.eq.s32.totalorder %s12, 1
      %p69 = por %p67, %p68
      %p70 = scmp.ne.s32.totalorder %s62, %s65
      %p71 = scmp.eq.s32.totalorder %s12, 0
      %p72 = por %p70, %p71
      %p73 = scmp.ne.s32.totalorder %s62, %s65
      %p74 = scmp.eq.s32.totalorder %s17, 1
      %p75 = por %p73, %p74
      %p76 = scmp.ne.s32.totalorder %s65, %s66
      %p77 = scmp.eq.s32.totalorder %s17, 0
      %p78 = por %p76, %p77
      %p79 = scmp.ne.s32.totalorder %s65, %s66
      %p80 = scmp.eq.s32.totalorder %s18, 1
      %p81 = por %p79, %p80
      %p83 = scmp.ne.s32.totalorder %s66, %s82
      %p84 = scmp.eq.s32.totalorder %s18, 0
      %p85 = por %p83, %p84
      %s87 = sadd.s32 %s86, 1
      %p90 = scmp.eq.s32.totalorder %s12, 1
      %p91 = scmp.ne.s32.totalorder %s86, %s88
      %p92 = scmp.eq.s32.totalorder %s12, 0
      %p93 = por %p91, %p92
      %p94 = scmp.ne.s32.totalorder %s86, %s88
      %p95 = scmp.eq.s32.totalorder %s17, 1
      %p96 = por %p94, %p95
      %p97 = scmp.ne.s32.totalorder %s88, %s89
      %p98 = scmp.eq.s32.totalorder %s17, 0
      %p99 = por %p97, %p98
      %p100 = scmp.ne.s32.totalorder %s88, %s89
      %p101 = scmp.eq.s32.totalorder %s18, 1
      %p102 = por %p100, %p101
      %p104 = scmp.ne.s32.totalorder %s89, %s103
      %p105 = scmp.eq.s32.totalorder %s18, 0
      %p106 = por %p104, %p105
      %s108 = sadd.s32 %s107, 1
      %p111 = scmp.eq.s32.totalorder %s12, 1
      %p112 = scmp.ne.s32.totalorder %s107, %s109
      %p113 = scmp.eq.s32.totalorder %s12, 0
      %p114 = por %p112, %p113
      %p115 = scmp.ne.s32.totalorder %s107, %s109
      %p116 = scmp.eq.s32.totalorder %s17, 1
      %p117 = por %p115, %p116
      %p118 = scmp.ne.s32.totalorder %s109, %s110
      %p119 = scmp.eq.s32.totalorder %s17, 0
      %p120 = por %p118, %p119
      %p121 = scmp.ne.s32.totalorder %s109, %s110
      %p122 = scmp.eq.s32.totalorder %s18, 1
      %p123 = por %p121, %p122
      %p125 = scmp.ne.s32.totalorder %s110, %s124
      %p126 = scmp.eq.s32.totalorder %s18, 0
      %p127 = por %p125, %p126
      %s128 = ssub.s32 %s19, %s31
      %s129 = ssub.s32 %s20, %s27
      %s130 = sor.u32 %s128, %s129
      %p131 = scmp.eq.s32.totalorder %s130, 0
      %s133 = sadd.s32 %s132, 1
      %s134 = scalar_select %p131, %s132, %s133
      %p137 = pneg %p131
      %p138 = scmp.eq.s32.totalorder %s12, 1
      %p139 = por %p137, %p138
      %p140 = scmp.ne.s32.totalorder %s132, %s135
      %p141 = scmp.eq.s32.totalorder %s12, 0
      %p142 = por %p140, %p141
      %p143 = scmp.ne.s32.totalorder %s132, %s135
      %p144 = scmp.eq.s32.totalorder %s17, 1
      %p145 = por %p143, %p144
      %p146 = scmp.ne.s32.totalorder %s135, %s136
      %p147 = scmp.eq.s32.totalorder %s17, 0
      %p148 = por %p146, %p147
      %p149 = scmp.ne.s32.totalorder %s135, %s136
      %p150 = scmp.eq.s32.totalorder %s18, 1
      %p151 = por %p149, %p150
      %p153 = scmp.ne.s32.totalorder %s136, %s152
      %p154 = scmp.eq.s32.totalorder %s18, 0
      %p155 = por %p153, %p154
      %p156 = scmp.le.s32.totalorder 1, %s12
      %p157 = scmp.lt.s32.totalorder %s12, 3
      %p158 = pnand %p156, %p157
      %p159 = pneg %p158
      // Predicated region
      $region9: #{dgcnn_forward.16} parent=5 // pred_check
        _
      $region10: #{dgcnn_forward.16} parent=5 // pred_check_branch
        %161 = sbr.rel (%p158) target = $region12
      $region11: #{dgcnn_forward.16} parent=5 // pred_region
        %s162 = ssub.s32 %s12, 1
        // Predicated region
        $region13: #{dgcnn_forward.16} parent=11 // pred_check
          %p163 = pneg %p99
        $region14: #{dgcnn_forward.16} parent=11 // pred_check_branch
          %165 = sbr.rel (%p163) target = $region16
        $region15: #{dgcnn_forward.16} parent=11 // pred_region
          %s167 = ssub.s32 2048, 2048
          %168 = vsyncadd [#allocation3], %s167
          %s169 = sshll.u32 [#allocation2], 4
          %s170 = int_to_ptr.vmem [resolvable:$true] %s169
          %175 = dma.hbm_to_vmem [thread:$0]  %s2, 2048, %s170, [#allocation3], 128, 128, 8
        $region16: #{dgcnn_forward.16} parent=11 // pred_fallthru
          _
        // Predicated region
        $region17: #{dgcnn_forward.16} parent=11 // pred_check
          %p176 = pneg %p120
        $region18: #{dgcnn_forward.16} parent=11 // pred_check_branch
          %178 = sbr.rel (%p176) target = $region20
        $region19: #{dgcnn_forward.16} parent=11 // pred_region
          %s180 = ssub.s32 2048, 2048
          %181 = vsyncadd [#allocation5], %s180
          %s182 = sshll.u32 [#allocation4], 4
          %s183 = int_to_ptr.vmem [resolvable:$true] %s182
          %188 = dma.hbm_to_vmem [thread:$0]  %s3, 2048, %s183, [#allocation5], 128, 128, 8
        $region20: #{dgcnn_forward.16} parent=11 // pred_fallthru
          _
      $region12: #{dgcnn_forward.16} parent=5 // pred_fallthru
        _
      %p189 = scmp.lt.s32.totalorder %s12, 2
      // Predicated region
      $region21: #{dgcnn_forward.16} parent=5 // pred_check
        %p190 = pneg %p189
      $region22: #{dgcnn_forward.16} parent=5 // pred_check_branch
        %192 = sbr.rel (%p190) target = $region24
      $region23: #{dgcnn_forward.16} parent=5 // pred_region
        // Predicated region
        $region25: #{dgcnn_forward.16} parent=23 // pred_check
          %p193 = pneg %p46
        $region26: #{dgcnn_forward.16} parent=23 // pred_check_branch
          %195 = sbr.rel (%p193) target = $region28
        $region27: #{dgcnn_forward.16} parent=23 // pred_region
          %s196 = smul.u32 2, %s20
          %p197 = scmp.lt.s32.totalorder %s19, 1
          %s198 = scalar_select %p197, %s19, 1
          %p199 = scmp.lt.s32.totalorder %s196, 1
          %s200 = scalar_select %p199, %s196, 1
          %s201 = smul.addr %s198, 2
          %s202 = sadd.s32 %s200, %s201
          %s203 = smul.addr %s202, 8
          %s204 = scalar_lea.vmem %s0, %s203
          %s205 = smul.u32 2, %s20
        $region28: #{dgcnn_forward.16} parent=23 // pred_fallthru
          _
        // Predicated region
        $region29: #{dgcnn_forward.16} parent=23 // pred_check
          %p206 = pneg %p72
        $region30: #{dgcnn_forward.16} parent=23 // pred_check_branch
          %208 = sbr.rel (%p206) target = $region32
        $region31: #{dgcnn_forward.16} parent=23 // pred_region
          %p209 = scmp.lt.s32.totalorder %s19, 1
          %s210 = scalar_select %p209, %s19, 1
          %s211 = smul.addr %s210, 2
          %s212 = smul.addr %s211, 4
          %s213 = scalar_lea.vmem %s1, %s212
        $region32: #{dgcnn_forward.16} parent=23 // pred_fallthru
          _
      $region24: #{dgcnn_forward.16} parent=5 // pred_fallthru
        _
      %p214 = scmp.le.s32.totalorder 1, %s12
      %p215 = scmp.lt.s32.totalorder %s12, 3
      %p216 = pnand %p214, %p215
      %p217 = pneg %p216
      // Predicated region
      $region33: #{dgcnn_forward.16} parent=5 // pred_check
        _
      $region34: #{dgcnn_forward.16} parent=5 // pred_check_branch
        %219 = sbr.rel (%p216) target = $region36
      $region35: #{dgcnn_forward.16} parent=5 // pred_region
        %s220 = ssub.s32 %s12, 1
        // Predicated region
        $region37: #{dgcnn_forward.16} parent=35 // pred_check
          %p221 = pneg %p99
        $region38: #{dgcnn_forward.16} parent=35 // pred_check_branch
          %223 = sbr.rel (%p221) target = $region40
        $region39: #{dgcnn_forward.16} parent=35 // pred_region
          %224 = dma.done [#allocation3], 2048
        $region40: #{dgcnn_forward.16} parent=35 // pred_fallthru
          _
        // Predicated region
        $region41: #{dgcnn_forward.16} parent=35 // pred_check
          %p225 = pneg %p120
        $region42: #{dgcnn_forward.16} parent=35 // pred_check_branch
          %227 = sbr.rel (%p225) target = $region44
        $region43: #{dgcnn_forward.16} parent=35 // pred_region
          %228 = dma.done [#allocation5], 2048
        $region44: #{dgcnn_forward.16} parent=35 // pred_fallthru
          _
        %s229 = smul.u32 2, %s22
        %p230 = scmp.lt.s32.totalorder %s21, 1
        %s231 = scalar_select %p230, %s21, 1
        %p232 = scmp.lt.s32.totalorder %s229, 1
        %s233 = scalar_select %p232, %s229, 1
        %s234 = smul.addr %s231, 2
        %s235 = sadd.s32 %s233, %s234
        %s236 = smul.addr %s235, 8
        %s237 = scalar_lea.vmem %s0, %s236
        %p238 = pneg %p52
        %p239 = pneg %p49
        %p240 = scmp.lt.s32.totalorder %s21, 1
        %s241 = scalar_select %p240, %s21, 1
        %s242 = smul.addr %s241, 2
        %s243 = smul.addr %s242, 4
        %s244 = scalar_lea.vmem %s1, %s243
        %p245 = pneg %p78
        %p246 = pneg %p75
        %p247 = pneg %p99
        %p248 = pneg %p96
        %p249 = pneg %p120
        %p250 = pneg %p117
        %p251 = pneg %p148
        %p252 = pneg %p145
        %s253 = smul.u32 2, %s22
        %p254 = scmp.lt.s32.totalorder %s21, 1
        %s255 = scalar_select %p254, %s21, 1
        %p256 = scmp.lt.s32.totalorder %s253, 1
        %s257 = scalar_select %p256, %s253, 1
        %s258 = smul.addr %s257, 2
        %s259 = smul.addr %s255, 4
        %s260 = sadd.s32 %s258, %s259
        %s261 = smul.addr %s260, 4
        %s262 = scalar_lea.vmem %s4, %s261
        %s263 = smul.u32 2, %s22
        %p264 = scmp.lt.s32.totalorder %s21, 1
        %s265 = scalar_select %p264, %s21, 1
        %p266 = scmp.lt.s32.totalorder %s263, 1
        %s267 = scalar_select %p266, %s263, 1
        %s268 = smul.addr %s265, 2
        %s269 = sadd.s32 %s267, %s268
        %s270 = smul.addr %s269, 8
        %s271 = scalar_lea.vmem %s0, %s270
        %s272 = smul.u32 2, %s22
        %p273 = scmp.lt.s32.totalorder %s21, 1
        %s274 = scalar_select %p273, %s21, 1
        %s275 = smul.addr %s274, 2
        %s276 = smul.addr %s275, 4
        %s277 = scalar_lea.vmem %s1, %s276
        %s278 = smul.u32 2, %s22
        %p279 = scmp.lt.s32.totalorder %s21, 1
        %s280 = scalar_select %p279, %s21, 1
        %p281 = scmp.lt.s32.totalorder %s278, 1
        %s282 = scalar_select %p281, %s278, 1
        %s283 = smul.addr %s282, 2
        %s284 = smul.addr %s280, 4
        %s285 = sadd.s32 %s283, %s284
        %s286 = smul.addr %s285, 4
        %s287 = scalar_lea.vmem %s4, %s286
        %s288 = smul.u32 2, %s22
        %s290 = smul.u32 %s22, 16
        %v291 = vld [vmem:[%s277] sm:$0xf]
        %v292 = vld [vmem:[%s277 + $0x4] sm:$0xf]
        %s293 = sshra.s32 %s290, 3
        %s294 = sand.u32 %s290, 7
        %s295 = smul.addr %s293, 4
        %s296 = scalar_lea.vmem %s277, %s295
        %v297 = vld [vmem:[%s296] sm:$0xf]
        %v298 = vld [vmem:[%s296 + $0x4] sm:$0xf]
        %v299 = vld [vmem:[#allocation2] sm:$0xff]
        %v300 = vld [vmem:[#allocation2 + $0x8] sm:$0xff]
        %v301 = vld [vmem:[#allocation2 + $0x10] sm:$0xff]
        %v302 = vld [vmem:[#allocation2 + $0x18] sm:$0xff]
        %v303 = vld [vmem:[#allocation2 + $0x20] sm:$0xff]
        %v304 = vld [vmem:[#allocation2 + $0x28] sm:$0xff]
        %v305 = vld [vmem:[#allocation2 + $0x30] sm:$0xff]
        %v306 = vld [vmem:[#allocation2 + $0x38] sm:$0xff]
        %v307 = vld [vmem:[#allocation2 + $0x40] sm:$0xff]
        %v308 = vld [vmem:[#allocation2 + $0x48] sm:$0xff]
        %v309 = vld [vmem:[#allocation2 + $0x50] sm:$0xff]
        %v310 = vld [vmem:[#allocation2 + $0x58] sm:$0xff]
        %v311 = vld [vmem:[#allocation2 + $0x60] sm:$0xff]
        %v312 = vld [vmem:[#allocation2 + $0x68] sm:$0xff]
        %v313 = vld [vmem:[#allocation2 + $0x70] sm:$0xff]
        %v314 = vld [vmem:[#allocation2 + $0x78] sm:$0xff]
        %v315 = vld [vmem:[#allocation4] sm:$0xff]
        %v316 = vld [vmem:[#allocation4 + $0x8] sm:$0xff]
        %v317 = vld [vmem:[#allocation4 + $0x10] sm:$0xff]
        %v318 = vld [vmem:[#allocation4 + $0x18] sm:$0xff]
        %v319 = vld [vmem:[#allocation4 + $0x20] sm:$0xff]
        %v320 = vld [vmem:[#allocation4 + $0x28] sm:$0xff]
        %v321 = vld [vmem:[#allocation4 + $0x30] sm:$0xff]
        %v322 = vld [vmem:[#allocation4 + $0x38] sm:$0xff]
        %v323 = vld [vmem:[#allocation4 + $0x40] sm:$0xff]
        %v324 = vld [vmem:[#allocation4 + $0x48] sm:$0xff]
        %v325 = vld [vmem:[#allocation4 + $0x50] sm:$0xff]
        %v326 = vld [vmem:[#allocation4 + $0x58] sm:$0xff]
        %v327 = vld [vmem:[#allocation4 + $0x60] sm:$0xff]
        %v328 = vld [vmem:[#allocation4 + $0x68] sm:$0xff]
        %v329 = vld [vmem:[#allocation4 + $0x70] sm:$0xff]
        %v330 = vld [vmem:[#allocation4 + $0x78] sm:$0xff]
        %v333 = vunpack.c.l.b16 %v297
        %v334 = vunpack.c.l.b16 %v298
        %v335 = vpack.c.b16 %v334, %v333
        %v353 = vunpack.c.l.b16 %v315
        %v354 = vunpack.c.h.b16 %v315
        %v355 = vunpack.c.l.b16 %v316
        %v356 = vunpack.c.h.b16 %v316
        %v357 = vunpack.c.l.b16 %v317
        %v358 = vunpack.c.h.b16 %v317
        %v359 = vunpack.c.l.b16 %v318
        %v360 = vunpack.c.h.b16 %v318
        %v361 = vunpack.c.l.b16 %v319
        %v362 = vunpack.c.h.b16 %v319
        %v363 = vunpack.c.l.b16 %v320
        %v364 = vunpack.c.h.b16 %v320
        %v365 = vunpack.c.l.b16 %v321
        %v366 = vunpack.c.h.b16 %v321
        %v367 = vunpack.c.l.b16 %v322
        %v368 = vunpack.c.h.b16 %v322
        %v369 = vunpack.c.l.b16 %v323
        %v370 = vunpack.c.h.b16 %v323
        %v371 = vunpack.c.l.b16 %v324
        %v372 = vunpack.c.h.b16 %v324
        %v373 = vunpack.c.l.b16 %v325
        %v374 = vunpack.c.h.b16 %v325
        %v375 = vunpack.c.l.b16 %v326
        %v376 = vunpack.c.h.b16 %v326
        %v377 = vunpack.c.l.b16 %v327
        %v378 = vunpack.c.h.b16 %v327
        %v379 = vunpack.c.l.b16 %v328
        %v380 = vunpack.c.h.b16 %v328
        %v381 = vunpack.c.l.b16 %v329
        %v382 = vunpack.c.h.b16 %v329
        %v383 = vunpack.c.l.b16 %v330
        %v384 = vunpack.c.h.b16 %v330
        %v385 = vpack.c.b16 %v355, %v353
        %v386 = vpack.c.b16 %v356, %v354
        %v387 = vpack.c.b16 %v359, %v357
        %v388 = vpack.c.b16 %v360, %v358
        %v389 = vpack.c.b16 %v363, %v361
        %v390 = vpack.c.b16 %v364, %v362
        %v391 = vpack.c.b16 %v367, %v365
        %v392 = vpack.c.b16 %v368, %v366
        %v393 = vpack.c.b16 %v371, %v369
        %v394 = vpack.c.b16 %v372, %v370
        %v395 = vpack.c.b16 %v375, %v373
        %v396 = vpack.c.b16 %v376, %v374
        %v397 = vpack.c.b16 %v379, %v377
        %v398 = vpack.c.b16 %v380, %v378
        %v399 = vpack.c.b16 %v383, %v381
        %v400 = vpack.c.b16 %v384, %v382
        %417 = vmatprep.subr.bf16.mxu0 %v386
        %418 = vmatpush1.bf16.msra.mxu0 %v385
        %419 = vmatprep.subr.bf16.mxu0 %v388
        %420 = vmatpush1.bf16.msra.mxu0 %v387
        %421 = vmatprep.subr.bf16.mxu0 %v390
        %422 = vmatpush1.bf16.msra.mxu0 %v389
        %423 = vmatprep.subr.bf16.mxu0 %v392
        %424 = vmatpush1.bf16.msra.mxu0 %v391
        %425 = vmatprep.subr.bf16.mxu0 %v394
        %426 = vmatpush1.bf16.msra.mxu0 %v393
        %427 = vmatprep.subr.bf16.mxu0 %v396
        %428 = vmatpush1.bf16.msra.mxu0 %v395
        %429 = vmatprep.subr.bf16.mxu0 %v398
        %430 = vmatpush1.bf16.msra.mxu0 %v397
        %431 = vmatprep.subr.bf16.mxu0 %v400
        %432 = vmatpush1.bf16.msra.mxu0 %v399
        %433 = vmatprep.subr.bf16.mxu0 0
        %434 = vmatpush1.bf16.msra.mxu0 0
        %435 = vmatprep.subr.bf16.mxu0 0
        %436 = vmatpush1.bf16.msra.mxu0 0
        %437 = vmatprep.subr.bf16.mxu0 0
        %438 = vmatpush1.bf16.msra.mxu0 0
        %439 = vmatprep.subr.bf16.mxu0 0
        %440 = vmatpush1.bf16.msra.mxu0 0
        %441 = vmatprep.subr.bf16.mxu0 0
        %442 = vmatpush1.bf16.msra.mxu0 0
        %443 = vmatprep.subr.bf16.mxu0 0
        %444 = vmatpush1.bf16.msra.mxu0 0
        %445 = vmatprep.subr.bf16.mxu0 0
        %446 = vmatpush1.bf16.msra.mxu0 0
        %447 = vmatprep.subr.bf16.mxu0 0
        %448 = vmatpush1.bf16.msra.mxu0 0
        %449 = vmatprep.mubr.bf16.mxu0 0
        %450 = vmatmul.mubr.bf16.gmra.mrb[0].mxu0 %v335
        %v451 = vpop.f32.mrb[0].mxu0
        %v452 = vadd.f32 0.0, %v451
        %v453 = vpop.f32.mrb[0].mxu0
        %v454 = vadd.f32 0.0, %v453
        %v455 = vpop.f32.mrb[0].mxu0
        %v456 = vadd.f32 0.0, %v455
        %v457 = vpop.f32.mrb[0].mxu0
        %v458 = vadd.f32 0.0, %v457
        %459 = vdwg.mxu0
        %v460 = vld [vmem:[%s271] sm:$0xff]
        %v461 = vld [vmem:[%s271 + $0x8] sm:$0xff]
        %v462 = vlaneseq
        %v463 = vand.u32 %v462, 127
        %464 = vset.pattern.permute.xlu0 0
        %465 = vperm.xlu0 %464, %v460
        %v466 = vpop.permute.xlu0 %465
        %467 = vset.pattern.permute.xlu0 0
        %468 = vperm.xlu0 %467, %v461
        %v469 = vpop.permute.xlu0 %468
        %vm470 = vcmp.eq.s32.totalorder %v463, %v466
        %vm471 = vcmp.eq.s32.totalorder %v463, %v469
        %v472 = vsel %vm470, 1.0, 0.0
        %v473 = vsel %vm471, 1.0, 0.0
        %v474 = vpack.c.bf16 %v473, %v472
        %v477 = vunpack.c.l.b16 %v291
        %v478 = vunpack.c.l.b16 %v292
        %v479 = vpack.c.b16 %v478, %v477
        %vm481 = vcmask 130048
        %v483 = vsel %vm481, %v474, 0
        %485 = vmatprep.subr.bf16.mxu0 0
        %486 = vmatpush1.bf16.msra.mxu0 %v479
        %487 = vmatprep.subr.bf16.mxu0 0
        %488 = vmatpush1.bf16.msra.mxu0 0
        %489 = vmatprep.subr.bf16.mxu0 0
        %490 = vmatpush1.bf16.msra.mxu0 0
        %491 = vmatprep.subr.bf16.mxu0 0
        %492 = vmatpush1.bf16.msra.mxu0 0
        %493 = vmatprep.subr.bf16.mxu0 0
        %494 = vmatpush1.bf16.msra.mxu0 0
        %495 = vmatprep.subr.bf16.mxu0 0
        %496 = vmatpush1.bf16.msra.mxu0 0
        %497 = vmatprep.subr.bf16.mxu0 0
        %498 = vmatpush1.bf16.msra.mxu0 0
        %499 = vmatprep.subr.bf16.mxu0 0
        %500 = vmatpush1.bf16.msra.mxu0 0
        %501 = vmatprep.subr.bf16.mxu0 0
        %502 = vmatpush1.bf16.msra.mxu0 0
        %503 = vmatprep.subr.bf16.mxu0 0
        %504 = vmatpush1.bf16.msra.mxu0 0
        %505 = vmatprep.subr.bf16.mxu0 0
        %506 = vmatpush1.bf16.msra.mxu0 0
        %507 = vmatprep.subr.bf16.mxu0 0
        %508 = vmatpush1.bf16.msra.mxu0 0
        %509 = vmatprep.subr.bf16.mxu0 0
        %510 = vmatpush1.bf16.msra.mxu0 0
        %511 = vmatprep.subr.bf16.mxu0 0
        %512 = vmatpush1.bf16.msra.mxu0 0
        %513 = vmatprep.subr.bf16.mxu0 0
        %514 = vmatpush1.bf16.msra.mxu0 0
        %515 = vmatprep.subr.bf16.mxu0 0
        %516 = vmatpush1.bf16.msra.mxu0 0
        %517 = vmatprep.mubr.bf16.mxu0 0
        %518 = vmatmul.mubr.bf16.gmra.mrb[0].mxu0 %v483
        %v519 = vpop.f32.mrb[0].mxu0
        %v520 = vadd.f32 0.0, %v519
        %v521 = vpop.f32.mrb[0].mxu0
        %v522 = vpop.f32.mrb[0].mxu0
        %v523 = vadd.f32 0.0, %v522
        %v524 = vpop.f32.mrb[0].mxu0
        %525 = vdwg.mxu0
        %v526 = vpack.c.bf16 %v523, %v520
        %v543 = vunpack.c.l.b16 %v299
        %v544 = vunpack.c.h.b16 %v299
        %v545 = vunpack.c.l.b16 %v300
        %v546 = vunpack.c.h.b16 %v300
        %v547 = vunpack.c.l.b16 %v301
        %v548 = vunpack.c.h.b16 %v301
        %v549 = vunpack.c.l.b16 %v302
        %v550 = vunpack.c.h.b16 %v302
        %v551 = vunpack.c.l.b16 %v303
        %v552 = vunpack.c.h.b16 %v303
        %v553 = vunpack.c.l.b16 %v304
        %v554 = vunpack.c.h.b16 %v304
        %v555 = vunpack.c.l.b16 %v305
        %v556 = vunpack.c.h.b16 %v305
        %v557 = vunpack.c.l.b16 %v306
        %v558 = vunpack.c.h.b16 %v306
        %v559 = vunpack.c.l.b16 %v307
        %v560 = vunpack.c.h.b16 %v307
        %v561 = vunpack.c.l.b16 %v308
        %v562 = vunpack.c.h.b16 %v308
        %v563 = vunpack.c.l.b16 %v309
        %v564 = vunpack.c.h.b16 %v309
        %v565 = vunpack.c.l.b16 %v310
        %v566 = vunpack.c.h.b16 %v310
        %v567 = vunpack.c.l.b16 %v311
        %v568 = vunpack.c.h.b16 %v311
        %v569 = vunpack.c.l.b16 %v312
        %v570 = vunpack.c.h.b16 %v312
        %v571 = vunpack.c.l.b16 %v313
        %v572 = vunpack.c.h.b16 %v313
        %v573 = vunpack.c.l.b16 %v314
        %v574 = vunpack.c.h.b16 %v314
        %v575 = vpack.c.b16 %v545, %v543
        %v576 = vpack.c.b16 %v546, %v544
        %v577 = vpack.c.b16 %v549, %v547
        %v578 = vpack.c.b16 %v550, %v548
        %v579 = vpack.c.b16 %v553, %v551
        %v580 = vpack.c.b16 %v554, %v552
        %v581 = vpack.c.b16 %v557, %v555
        %v582 = vpack.c.b16 %v558, %v556
        %v583 = vpack.c.b16 %v561, %v559
        %v584 = vpack.c.b16 %v562, %v560
        %v585 = vpack.c.b16 %v565, %v563
        %v586 = vpack.c.b16 %v566, %v564
        %v587 = vpack.c.b16 %v569, %v567
        %v588 = vpack.c.b16 %v570, %v568
        %v589 = vpack.c.b16 %v573, %v571
        %v590 = vpack.c.b16 %v574, %v572
        %607 = vmatprep.subr.bf16.mxu0 %v576
        %608 = vmatpush1.bf16.msra.mxu0 %v575
        %609 = vmatprep.subr.bf16.mxu0 %v578
        %610 = vmatpush1.bf16.msra.mxu0 %v577
        %611 = vmatprep.subr.bf16.mxu0 %v580
        %612 = vmatpush1.bf16.msra.mxu0 %v579
        %613 = vmatprep.subr.bf16.mxu0 %v582
        %614 = vmatpush1.bf16.msra.mxu0 %v581
        %615 = vmatprep.subr.bf16.mxu0 %v584
        %616 = vmatpush1.bf16.msra.mxu0 %v583
        %617 = vmatprep.subr.bf16.mxu0 %v586
        %618 = vmatpush1.bf16.msra.mxu0 %v585
        %619 = vmatprep.subr.bf16.mxu0 %v588
        %620 = vmatpush1.bf16.msra.mxu0 %v587
        %621 = vmatprep.subr.bf16.mxu0 %v590
        %622 = vmatpush1.bf16.msra.mxu0 %v589
        %623 = vmatprep.subr.bf16.mxu0 0
        %624 = vmatpush1.bf16.msra.mxu0 0
        %625 = vmatprep.subr.bf16.mxu0 0
        %626 = vmatpush1.bf16.msra.mxu0 0
        %627 = vmatprep.subr.bf16.mxu0 0
        %628 = vmatpush1.bf16.msra.mxu0 0
        %629 = vmatprep.subr.bf16.mxu0 0
        %630 = vmatpush1.bf16.msra.mxu0 0
        %631 = vmatprep.subr.bf16.mxu0 0
        %632 = vmatpush1.bf16.msra.mxu0 0
        %633 = vmatprep.subr.bf16.mxu0 0
        %634 = vmatpush1.bf16.msra.mxu0 0
        %635 = vmatprep.subr.bf16.mxu0 0
        %636 = vmatpush1.bf16.msra.mxu0 0
        %637 = vmatprep.subr.bf16.mxu0 0
        %638 = vmatpush1.bf16.msra.mxu0 0
        %639 = vmatprep.mubr.bf16.mxu0 0
        %640 = vmatmul.mubr.bf16.gmra.mrb[0].mxu0 %v526
        %v641 = vpop.f32.mrb[0].mxu0
        %v642 = vadd.f32 %v452, %v641
        %v643 = vpop.f32.mrb[0].mxu0
        %v644 = vadd.f32 %v454, %v643
        %v645 = vpop.f32.mrb[0].mxu0
        %v646 = vadd.f32 %v456, %v645
        %v647 = vpop.f32.mrb[0].mxu0
        %v648 = vadd.f32 %v458, %v647
        %649 = vdwg.mxu0
        %v650 = vmax.f32 %v642, 0.0
        %v651 = vmax.f32 %v644, 0.0
        %v652 = vmax.f32 %v646, 0.0
        %v653 = vmax.f32 %v648, 0.0
        %654 = vset.pattern.permute.xlu0 1
        %655 = vperm.xlu0 %654, %v460
        %v656 = vpop.permute.xlu0 %655
        %657 = vset.pattern.permute.xlu0 1
        %658 = vperm.xlu0 %657, %v461
        %v659 = vpop.permute.xlu0 %658
        %vm660 = vcmp.eq.s32.totalorder %v463, %v656
        %vm661 = vcmp.eq.s32.totalorder %v463, %v659
        %v662 = vsel %vm660, 1.0, 0.0
        %v663 = vsel %vm661, 1.0, 0.0
        %v664 = vpack.c.bf16 %v663, %v662
        %v666 = vsel %vm481, %v664, 0
        %668 = vmatprep.subr.bf16.mxu0 0
        %669 = vmatpush1.bf16.msra.mxu0 %v479
        %670 = vmatprep.subr.bf16.mxu0 0
        %671 = vmatpush1.bf16.msra.mxu0 0
        %672 = vmatprep.subr.bf16.mxu0 0
        %673 = vmatpush1.bf16.msra.mxu0 0
        %674 = vmatprep.subr.bf16.mxu0 0
        %675 = vmatpush1.bf16.msra.mxu0 0
        %676 = vmatprep.subr.bf16.mxu0 0
        %677 = vmatpush1.bf16.msra.mxu0 0
        %678 = vmatprep.subr.bf16.mxu0 0
        %679 = vmatpush1.bf16.msra.mxu0 0
        %680 = vmatprep.subr.bf16.mxu0 0
        %681 = vmatpush1.bf16.msra.mxu0 0
        %682 = vmatprep.subr.bf16.mxu0 0
        %683 = vmatpush1.bf16.msra.mxu0 0
        %684 = vmatprep.subr.bf16.mxu0 0
        %685 = vmatpush1.bf16.msra.mxu0 0
        %686 = vmatprep.subr.bf16.mxu0 0
        %687 = vmatpush1.bf16.msra.mxu0 0
        %688 = vmatprep.subr.bf16.mxu0 0
        %689 = vmatpush1.bf16.msra.mxu0 0
        %690 = vmatprep.subr.bf16.mxu0 0
        %691 = vmatpush1.bf16.msra.mxu0 0
        %692 = vmatprep.subr.bf16.mxu0 0
        %693 = vmatpush1.bf16.msra.mxu0 0
        %694 = vmatprep.subr.bf16.mxu0 0
        %695 = vmatpush1.bf16.msra.mxu0 0
        %696 = vmatprep.subr.bf16.mxu0 0
        %697 = vmatpush1.bf16.msra.mxu0 0
        %698 = vmatprep.subr.bf16.mxu0 0
        %699 = vmatpush1.bf16.msra.mxu0 0
        %700 = vmatprep.mubr.bf16.mxu0 0
        %701 = vmatmul.mubr.bf16.gmra.mrb[0].mxu0 %v666
        %v702 = vpop.f32.mrb[0].mxu0
        %v703 = vadd.f32 0.0, %v702
        %v704 = vpop.f32.mrb[0].mxu0
        %v705 = vpop.f32.mrb[0].mxu0
        %v706 = vadd.f32 0.0, %v705
        %v707 = vpop.f32.mrb[0].mxu0
        %708 = vdwg.mxu0
        %v709 = vpack.c.bf16 %v706, %v703
        %710 = vmatprep.subr.bf16.mxu0 %v576
        %711 = vmatpush1.bf16.msra.mxu0 %v575
        %712 = vmatprep.subr.bf16.mxu0 %v578
        %713 = vmatpush1.bf16.msra.mxu0 %v577
        %714 = vmatprep.subr.bf16.mxu0 %v580
        %715 = vmatpush1.bf16.msra.mxu0 %v579
        %716 = vmatprep.subr.bf16.mxu0 %v582
        %717 = vmatpush1.bf16.msra.mxu0 %v581
        %718 = vmatprep.subr.bf16.mxu0 %v584
        %719 = vmatpush1.bf16.msra.mxu0 %v583
        %720 = vmatprep.subr.bf16.mxu0 %v586
        %721 = vmatpush1.bf16.msra.mxu0 %v585
        %722 = vmatprep.subr.bf16.mxu0 %v588
        %723 = vmatpush1.bf16.msra.mxu0 %v587
        %724 = vmatprep.subr.bf16.mxu0 %v590
        %725 = vmatpush1.bf16.msra.mxu0 %v589
        %726 = vmatprep.subr.bf16.mxu0 0
        %727 = vmatpush1.bf16.msra.mxu0 0
        %728 = vmatprep.subr.bf16.mxu0 0
        %729 = vmatpush1.bf16.msra.mxu0 0
        %730 = vmatprep.subr.bf16.mxu0 0
        %731 = vmatpush1.bf16.msra.mxu0 0
        %732 = vmatprep.subr.bf16.mxu0 0
        %733 = vmatpush1.bf16.msra.mxu0 0
        %734 = vmatprep.subr.bf16.mxu0 0
        %735 = vmatpush1.bf16.msra.mxu0 0
        %736 = vmatprep.subr.bf16.mxu0 0
        %737 = vmatpush1.bf16.msra.mxu0 0
        %738 = vmatprep.subr.bf16.mxu0 0
        %739 = vmatpush1.bf16.msra.mxu0 0
        %740 = vmatprep.subr.bf16.mxu0 0
        %741 = vmatpush1.bf16.msra.mxu0 0
        %742 = vmatprep.mubr.bf16.mxu0 0
        %743 = vmatmul.mubr.bf16.gmra.mrb[0].mxu0 %v709
        %v744 = vpop.f32.mrb[0].mxu0
        %v745 = vadd.f32 %v452, %v744
        %v746 = vpop.f32.mrb[0].mxu0
        %v747 = vadd.f32 %v454, %v746
        %v748 = vpop.f32.mrb[0].mxu0
        %v749 = vadd.f32 %v456, %v748
        %v750 = vpop.f32.mrb[0].mxu0
        %v751 = vadd.f32 %v458, %v750
        %752 = vdwg.mxu0
        %v753 = vmax.f32 %v745, 0.0
        %v754 = vmax.f32 %v747, 0.0
        %v755 = vmax.f32 %v749, 0.0
        %v756 = vmax.f32 %v751, 0.0
        %v757 = vmax.f32 %v650, %v753
        %v758 = vmax.f32 %v651, %v754
        %v759 = vmax.f32 %v652, %v755
        %v760 = vmax.f32 %v653, %v756
        %761 = vset.pattern.permute.xlu0 2
        %762 = vperm.xlu0 %761, %v460
        %v763 = vpop.permute.xlu0 %762
        %764 = vset.pattern.permute.xlu0 2
        %765 = vperm.xlu0 %764, %v461
        %v766 = vpop.permute.xlu0 %765
        %vm767 = vcmp.eq.s32.totalorder %v463, %v763
        %vm768 = vcmp.eq.s32.totalorder %v463, %v766
        %v769 = vsel %vm767, 1.0, 0.0
        %v770 = vsel %vm768, 1.0, 0.0
        %v771 = vpack.c.bf16 %v770, %v769
        %v773 = vsel %vm481, %v771, 0
        %775 = vmatprep.subr.bf16.mxu0 0
        %776 = vmatpush1.bf16.msra.mxu0 %v479
        %777 = vmatprep.subr.bf16.mxu0 0
        %778 = vmatpush1.bf16.msra.mxu0 0
        %779 = vmatprep.subr.bf16.mxu0 0
        %780 = vmatpush1.bf16.msra.mxu0 0
        %781 = vmatprep.subr.bf16.mxu0 0
        %782 = vmatpush1.bf16.msra.mxu0 0
        %783 = vmatprep.subr.bf16.mxu0 0
        %784 = vmatpush1.bf16.msra.mxu0 0
        %785 = vmatprep.subr.bf16.mxu0 0
        %786 = vmatpush1.bf16.msra.mxu0 0
        %787 = vmatprep.subr.bf16.mxu0 0
        %788 = vmatpush1.bf16.msra.mxu0 0
        %789 = vmatprep.subr.bf16.mxu0 0
        %790 = vmatpush1.bf16.msra.mxu0 0
        %791 = vmatprep.subr.bf16.mxu0 0
        %792 = vmatpush1.bf16.msra.mxu0 0
        %793 = vmatprep.subr.bf16.mxu0 0
        %794 = vmatpush1.bf16.msra.mxu0 0
        %795 = vmatprep.subr.bf16.mxu0 0
        %796 = vmatpush1.bf16.msra.mxu0 0
        %797 = vmatprep.subr.bf16.mxu0 0
        %798 = vmatpush1.bf16.msra.mxu0 0
        %799 = vmatprep.subr.bf16.mxu0 0
        %800 = vmatpush1.bf16.msra.mxu0 0
        %801 = vmatprep.subr.bf16.mxu0 0
        %802 = vmatpush1.bf16.msra.mxu0 0
        %803 = vmatprep.subr.bf16.mxu0 0
        %804 = vmatpush1.bf16.msra.mxu0 0
        %805 = vmatprep.subr.bf16.mxu0 0
        %806 = vmatpush1.bf16.msra.mxu0 0
        %807 = vmatprep.mubr.bf16.mxu0 0
        %808 = vmatmul.mubr.bf16.gmra.mrb[0].mxu0 %v773
        %v809 = vpop.f32.mrb[0].mxu0
        %v810 = vadd.f32 0.0, %v809
        %v811 = vpop.f32.mrb[0].mxu0
        %v812 = vpop.f32.mrb[0].mxu0
        %v813 = vadd.f32 0.0, %v812
        %v814 = vpop.f32.mrb[0].mxu0
        %815 = vdwg.mxu0
        %v816 = vpack.c.bf16 %v813, %v810
        %817 = vmatprep.subr.bf16.mxu0 %v576
        %818 = vmatpush1.bf16.msra.mxu0 %v575
        %819 = vmatprep.subr.bf16.mxu0 %v578
        %820 = vmatpush1.bf16.msra.mxu0 %v577
        %821 = vmatprep.subr.bf16.mxu0 %v580
        %822 = vmatpush1.bf16.msra.mxu0 %v579
        %823 = vmatprep.subr.bf16.mxu0 %v582
        %824 = vmatpush1.bf16.msra.mxu0 %v581
        %825 = vmatprep.subr.bf16.mxu0 %v584
        %826 = vmatpush1.bf16.msra.mxu0 %v583
        %827 = vmatprep.subr.bf16.mxu0 %v586
        %828 = vmatpush1.bf16.msra.mxu0 %v585
        %829 = vmatprep.subr.bf16.mxu0 %v588
        %830 = vmatpush1.bf16.msra.mxu0 %v587
        %831 = vmatprep.subr.bf16.mxu0 %v590
        %832 = vmatpush1.bf16.msra.mxu0 %v589
        %833 = vmatprep.subr.bf16.mxu0 0
        %834 = vmatpush1.bf16.msra.mxu0 0
        %835 = vmatprep.subr.bf16.mxu0 0
        %836 = vmatpush1.bf16.msra.mxu0 0
        %837 = vmatprep.subr.bf16.mxu0 0
        %838 = vmatpush1.bf16.msra.mxu0 0
        %839 = vmatprep.subr.bf16.mxu0 0
        %840 = vmatpush1.bf16.msra.mxu0 0
        %841 = vmatprep.subr.bf16.mxu0 0
        %842 = vmatpush1.bf16.msra.mxu0 0
        %843 = vmatprep.subr.bf16.mxu0 0
        %844 = vmatpush1.bf16.msra.mxu0 0
        %845 = vmatprep.subr.bf16.mxu0 0
        %846 = vmatpush1.bf16.msra.mxu0 0
        %847 = vmatprep.subr.bf16.mxu0 0
        %848 = vmatpush1.bf16.msra.mxu0 0
        %849 = vmatprep.mubr.bf16.mxu0 0
        %850 = vmatmul.mubr.bf16.gmra.mrb[0].mxu0 %v816
        %v851 = vpop.f32.mrb[0].mxu0
        %v852 = vadd.f32 %v452, %v851
        %v853 = vpop.f32.mrb[0].mxu0
        %v854 = vadd.f32 %v454, %v853
        %v855 = vpop.f32.mrb[0].mxu0
        %v856 = vadd.f32 %v456, %v855
        %v857 = vpop.f32.mrb[0].mxu0
        %v858 = vadd.f32 %v458, %v857
        %859 = vdwg.mxu0
        %v860 = vmax.f32 %v852, 0.0
        %v861 = vmax.f32 %v854, 0.0
        %v862 = vmax.f32 %v856, 0.0
        %v863 = vmax.f32 %v858, 0.0
        %v864 = vmax.f32 %v757, %v860
        %v865 = vmax.f32 %v758, %v861
        %v866 = vmax.f32 %v759, %v862
        %v867 = vmax.f32 %v760, %v863
        %868 = vset.pattern.permute.xlu0 3
        %869 = vperm.xlu0 %868, %v460
        %v870 = vpop.permute.xlu0 %869
        %871 = vset.pattern.permute.xlu0 3
        %872 = vperm.xlu0 %871, %v461
        %v873 = vpop.permute.xlu0 %872
        %vm874 = vcmp.eq.s32.totalorder %v463, %v870
        %vm875 = vcmp.eq.s32.totalorder %v463, %v873
        %v876 = vsel %vm874, 1.0, 0.0
        %v877 = vsel %vm875, 1.0, 0.0
        %v878 = vpack.c.bf16 %v877, %v876
        %v880 = vsel %vm481, %v878, 0
        %882 = vmatprep.subr.bf16.mxu0 0
        %883 = vmatpush1.bf16.msra.mxu0 %v479
        %884 = vmatprep.subr.bf16.mxu0 0
        %885 = vmatpush1.bf16.msra.mxu0 0
        %886 = vmatprep.subr.bf16.mxu0 0
        %887 = vmatpush1.bf16.msra.mxu0 0
        %888 = vmatprep.subr.bf16.mxu0 0
        %889 = vmatpush1.bf16.msra.mxu0 0
        %890 = vmatprep.subr.bf16.mxu0 0
        %891 = vmatpush1.bf16.msra.mxu0 0
        %892 = vmatprep.subr.bf16.mxu0 0
        %893 = vmatpush1.bf16.msra.mxu0 0
        %894 = vmatprep.subr.bf16.mxu0 0
        %895 = vmatpush1.bf16.msra.mxu0 0
        %896 = vmatprep.subr.bf16.mxu0 0
        %897 = vmatpush1.bf16.msra.mxu0 0
        %898 = vmatprep.subr.bf16.mxu0 0
        %899 = vmatpush1.bf16.msra.mxu0 0
        %900 = vmatprep.subr.bf16.mxu0 0
        %901 = vmatpush1.bf16.msra.mxu0 0
        %902 = vmatprep.subr.bf16.mxu0 0
        %903 = vmatpush1.bf16.msra.mxu0 0
        %904 = vmatprep.subr.bf16.mxu0 0
        %905 = vmatpush1.bf16.msra.mxu0 0
        %906 = vmatprep.subr.bf16.mxu0 0
        %907 = vmatpush1.bf16.msra.mxu0 0
        %908 = vmatprep.subr.bf16.mxu0 0
        %909 = vmatpush1.bf16.msra.mxu0 0
        %910 = vmatprep.subr.bf16.mxu0 0
        %911 = vmatpush1.bf16.msra.mxu0 0
        %912 = vmatprep.subr.bf16.mxu0 0
        %913 = vmatpush1.bf16.msra.mxu0 0
        %914 = vmatprep.mubr.bf16.mxu0 0
        %915 = vmatmul.mubr.bf16.gmra.mrb[0].mxu0 %v880
        %v916 = vpop.f32.mrb[0].mxu0
        %v917 = vadd.f32 0.0, %v916
        %v918 = vpop.f32.mrb[0].mxu0
        %v919 = vpop.f32.mrb[0].mxu0
        %v920 = vadd.f32 0.0, %v919
        %v921 = vpop.f32.mrb[0].mxu0
        %922 = vdwg.mxu0
        %v923 = vpack.c.bf16 %v920, %v917
        %924 = vmatprep.subr.bf16.mxu0 %v576
        %925 = vmatpush1.bf16.msra.mxu0 %v575
        %926 = vmatprep.subr.bf16.mxu0 %v578
        %927 = vmatpush1.bf16.msra.mxu0 %v577
        %928 = vmatprep.subr.bf16.mxu0 %v580
        %929 = vmatpush1.bf16.msra.mxu0 %v579
        %930 = vmatprep.subr.bf16.mxu0 %v582
        %931 = vmatpush1.bf16.msra.mxu0 %v581
        %932 = vmatprep.subr.bf16.mxu0 %v584
        %933 = vmatpush1.bf16.msra.mxu0 %v583
        %934 = vmatprep.subr.bf16.mxu0 %v586
        %935 = vmatpush1.bf16.msra.mxu0 %v585
        %936 = vmatprep.subr.bf16.mxu0 %v588
        %937 = vmatpush1.bf16.msra.mxu0 %v587
        %938 = vmatprep.subr.bf16.mxu0 %v590
        %939 = vmatpush1.bf16.msra.mxu0 %v589
        %940 = vmatprep.subr.bf16.mxu0 0
        %941 = vmatpush1.bf16.msra.mxu0 0
        %942 = vmatprep.subr.bf16.mxu0 0
        %943 = vmatpush1.bf16.msra.mxu0 0
        %944 = vmatprep.subr.bf16.mxu0 0
        %945 = vmatpush1.bf16.msra.mxu0 0
        %946 = vmatprep.subr.bf16.mxu0 0
        %947 = vmatpush1.bf16.msra.mxu0 0
        %948 = vmatprep.subr.bf16.mxu0 0
        %949 = vmatpush1.bf16.msra.mxu0 0
        %950 = vmatprep.subr.bf16.mxu0 0
        %951 = vmatpush1.bf16.msra.mxu0 0
        %952 = vmatprep.subr.bf16.mxu0 0
        %953 = vmatpush1.bf16.msra.mxu0 0
        %954 = vmatprep.subr.bf16.mxu0 0
        %955 = vmatpush1.bf16.msra.mxu0 0
        %956 = vmatprep.mubr.bf16.mxu0 0
        %957 = vmatmul.mubr.bf16.gmra.mrb[0].mxu0 %v923
        %v958 = vpop.f32.mrb[0].mxu0
        %v959 = vadd.f32 %v452, %v958
        %v960 = vpop.f32.mrb[0].mxu0
        %v961 = vadd.f32 %v454, %v960
        %v962 = vpop.f32.mrb[0].mxu0
        %v963 = vadd.f32 %v456, %v962
        %v964 = vpop.f32.mrb[0].mxu0
        %v965 = vadd.f32 %v458, %v964
        %966 = vdwg.mxu0
        %v967 = vmax.f32 %v959, 0.0
        %v968 = vmax.f32 %v961, 0.0
        %v969 = vmax.f32 %v963, 0.0
        %v970 = vmax.f32 %v965, 0.0
        %v971 = vmax.f32 %v864, %v967
        %v972 = vmax.f32 %v865, %v968
        %v973 = vmax.f32 %v866, %v969
        %v974 = vmax.f32 %v867, %v970
        %v975 = vpack.c.bf16 %v973, %v971
        %v976 = vpack.c.bf16 %v974, %v972
        %v979 = vunpack.c.l.b16 %v975
        %v980 = vunpack.c.l.b16 %v976
        %v981 = vunpack.c.h.b16 %v975
        %v982 = vunpack.c.h.b16 %v976
        %v983 = vpack.c.b16 %v980, %v979
        %v984 = vpack.c.b16 %v982, %v981
        %987 = vst [vmem:[%s287] sm:$0xff] %v983
        %988 = vst [vmem:[%s287 + $0x8] sm:$0xff] %v984
        %s989 = smul.u32 2, %s22
        %p990 = scmp.lt.s32.totalorder %s21, 1
        %s991 = scalar_select %p990, %s21, 1
        %p992 = scmp.lt.s32.totalorder %s989, 1
        %s993 = scalar_select %p992, %s989, 1
        %s994 = smul.addr %s993, 2
        %s995 = smul.addr %s991, 4
        %s996 = sadd.s32 %s994, %s995
        %s997 = smul.addr %s996, 4
        %s998 = scalar_lea.vmem %s4, %s997
        // Predicated region
        $region45: #{dgcnn_forward.16} parent=35 // pred_check
          %p999 = pneg %p145
        $region46: #{dgcnn_forward.16} parent=35 // pred_check_branch
          %1001 = sbr.rel (%p999) target = $region48
        $region47: #{dgcnn_forward.16} parent=35 // pred_region
          %s1002 = smul.u32 2, %s22
        $region48: #{dgcnn_forward.16} parent=35 // pred_fallthru
          _
      $region36: #{dgcnn_forward.16} parent=5 // pred_fallthru
        _
      %p1003 = scmp.le.s32.totalorder 2, %s12
      // Predicated region
      $region49: #{dgcnn_forward.16} parent=5 // pred_check
        %p1004 = pneg %p1003
      $region50: #{dgcnn_forward.16} parent=5 // pred_check_branch
        %1006 = sbr.rel (%p1004) target = $region52
      $region51: #{dgcnn_forward.16} parent=5 // pred_region
        %s1007 = ssub.s32 %s12, 2
        // Predicated region
        $region53: #{dgcnn_forward.16} parent=51 // pred_check
          %p1008 = pneg %p151
        $region54: #{dgcnn_forward.16} parent=51 // pred_check_branch
          %1010 = sbr.rel (%p1008) target = $region56
        $region55: #{dgcnn_forward.16} parent=51 // pred_region
          %s1011 = smul.u32 2, %s24
          %p1012 = scmp.lt.s32.totalorder %s23, 1
          %s1013 = scalar_select %p1012, %s23, 1
          %p1014 = scmp.lt.s32.totalorder %s1011, 1
          %s1015 = scalar_select %p1014, %s1011, 1
          %s1016 = smul.addr %s1015, 2
          %s1017 = smul.addr %s1013, 4
          %s1018 = sadd.s32 %s1016, %s1017
          %s1019 = smul.addr %s1018, 4
          %s1020 = scalar_lea.vmem %s4, %s1019
        $region56: #{dgcnn_forward.16} parent=51 // pred_fallthru
          _
      $region52: #{dgcnn_forward.16} parent=5 // pred_fallthru
        _
    $region6: #{dgcnn_forward.16} parent=1 // loop_footer
      %s16 = sadd.s32 1, %s12
    $region7: #{dgcnn_forward.16} parent=1 // loop_footer_branch
      %11 = sbr.rel target = $region3
    $region8: #{dgcnn_forward.16} parent=1 // loop_exit
      _
    %1021 = vsyncpa [#allocation3], 1
    %s1022 = scalar_lea.sflag [#allocation3], 1
    %1023 = vsyncpa %s1022, 1
    %1024 = vsyncpa [#allocation5], 1

// kernel: dgcnn_forward.17
$region0: #{dgcnn_forward.17}
  #allocation0 [shape = 'u32[]', space=smem, size = 0x4, offset = 0x4, fixed_abs, tag = 'smem constant byte address 0x4 - core index']
  #allocation1 [shape = 'u32[144,128]{1,0:T(1,128)}', space=vmem, size = 0x12000, scoped, tag = 'internal scratch']
  %s0 = inlined_call_operand.vmem [shape: bf16[2,16,128], index: 0, kind: input, shape index: {}]
  %s1 = inlined_call_operand.vmem [shape: bf16[2,16,128], index: 1, kind: input, shape index: {}]
  %s2 = inlined_call_operand.vmem [shape: bf16[2,16,128], index: 2, kind: input, shape index: {}]
  %s3 = inlined_call_operand.vmem [shape: bf16[2,16,256], index: 3, kind: input, shape index: {}]
  %s4 = inlined_call_operand.vmem [shape: bf16[512,128], index: 4, kind: input, shape index: {}]
  %s5 = inlined_call_operand.vmem [shape: bf16[512,128], index: 5, kind: input, shape index: {}]
  %s6 = inlined_call_operand.vmem [shape: bf16[512,128], index: 6, kind: input, shape index: {}]
  %s7 = inlined_call_operand.vmem [shape: bf16[512,256], index: 7, kind: input, shape index: {}]
  %s8 = inlined_call_operand.vmem [shape: f32[2,512,16], index: 8, kind: output, shape index: {}]
  %s9 = sld [smem:[#allocation0]]
  $region65: #{dgcnn_forward.17} parent=0
    _
  %s11 = ssub.s32 1, %s9
  %s12 = scalar_select 0, %s11, %s9
  loop: start=0, step=1, limit=4
  $region2: #{dgcnn_forward.17} parent=0 // loop_pre_header
    _
  $region3: #{dgcnn_forward.17} parent=0 // loop_header
    %s14 = sphi 0, %s18
    %p15 = scmp.ge.s32.totalorder %s14, 4
    %s21 = sphi 0, %s33
    %s22 = sphi 0, %s29
    %s23 = sphi 0, %s21
    %s24 = sphi 0, %s22
    %s25 = sphi 0, %s23
    %s26 = sphi 0, %s24
    %s38 = sphi 0, %s40
    %s41 = sphi 0, %s38
    %s42 = sphi 0, %s41
    %s58 = sphi 0, %s42
    %s66 = sphi 0, %s68
    %s69 = sphi 0, %s66
    %s70 = sphi 0, %s69
    %s86 = sphi 0, %s70
    %s94 = sphi 0, %s96
    %s97 = sphi 0, %s94
    %s98 = sphi 0, %s97
    %s114 = sphi 0, %s98
    %s122 = sphi 0, %s124
    %s125 = sphi 0, %s122
    %s126 = sphi 0, %s125
    %s142 = sphi 0, %s126
    %s146 = sphi 0, %s146
    %s148 = sphi 0, %s146
    %s149 = sphi 0, %s148
    %s163 = sphi 0, %s149
    %s167 = sphi 0, %s167
    %s169 = sphi 0, %s167
    %s170 = sphi 0, %s169
    %s184 = sphi 0, %s170
    %s188 = sphi 0, %s188
    %s190 = sphi 0, %s188
    %s191 = sphi 0, %s190
    %s205 = sphi 0, %s191
    %s209 = sphi 0, %s209
    %s211 = sphi 0, %s209
    %s212 = sphi 0, %s211
    %s226 = sphi 0, %s212
    %s234 = sphi 0, %s236
    %s237 = sphi 0, %s234
    %s238 = sphi 0, %s237
    %s254 = sphi 0, %s238
  $region4: #{dgcnn_forward.17} parent=0 // loop_header_branch
    %17 = sbr.rel (%p15) target = $region8
  $region5: #{dgcnn_forward.17} parent=0 // loop_body
    %s19 = ssub.s32 %s14, 1
    %s20 = ssub.s32 %s14, 2
    %s27 = sadd.s32 1, %s22
    %p28 = scmp.ge.s32.totalorder %s27, 1
    %s29 = scalar_select %p28, 0, %s27
    %s30 = sadd.s32 1, %s21
    %s31 = scalar_select %p28, %s30, %s21
    %p32 = scmp.ge.s32.totalorder %s31, 2
    %s33 = scalar_select %p32, 0, %s31
    %s34 = ssub.s32 %s21, %s33
    %s35 = ssub.s32 %s22, %s29
    %s36 = sor.u32 %s34, %s35
    %p37 = scmp.eq.s32.totalorder %s36, 0
    %s39 = sadd.s32 %s38, 1
    %s40 = scalar_select %p37, %s38, %s39
    %p43 = pneg %p37
    %p44 = scmp.eq.s32.totalorder %s14, 1
    %p45 = por %p43, %p44
    %p46 = scmp.ne.s32.totalorder %s38, %s41
    %p47 = scmp.eq.s32.totalorder %s14, 0
    %p48 = por %p46, %p47
    %p49 = scmp.ne.s32.totalorder %s38, %s41
    %p50 = scmp.eq.s32.totalorder %s19, 1
    %p51 = por %p49, %p50
    %p52 = scmp.ne.s32.totalorder %s41, %s42
    %p53 = scmp.eq.s32.totalorder %s19, 0
    %p54 = por %p52, %p53
    %p55 = scmp.ne.s32.totalorder %s41, %s42
    %p56 = scmp.eq.s32.totalorder %s20, 1
    %p57 = por %p55, %p56
    %p59 = scmp.ne.s32.totalorder %s42, %s58
    %p60 = scmp.eq.s32.totalorder %s20, 0
    %p61 = por %p59, %p60
    %s62 = ssub.s32 %s21, %s33
    %s63 = ssub.s32 %s22, %s29
    %s64 = sor.u32 %s62, %s63
    %p65 = scmp.eq.s32.totalorder %s64, 0
    %s67 = sadd.s32 %s66, 1
    %s68 = scalar_select %p65, %s66, %s67
    %p71 = pneg %p65
    %p72 = scmp.eq.s32.totalorder %s14, 1
    %p73 = por %p71, %p72
    %p74 = scmp.ne.s32.totalorder %s66, %s69
    %p75 = scmp.eq.s32.totalorder %s14, 0
    %p76 = por %p74, %p75
    %p77 = scmp.ne.s32.totalorder %s66, %s69
    %p78 = scmp.eq.s32.totalorder %s19, 1
    %p79 = por %p77, %p78
    %p80 = scmp.ne.s32.totalorder %s69, %s70
    %p81 = scmp.eq.s32.totalorder %s19, 0
    %p82 = por %p80, %p81
    %p83 = scmp.ne.s32.totalorder %s69, %s70
    %p84 = scmp.eq.s32.totalorder %s20, 1
    %p85 = por %p83, %p84
    %p87 = scmp.ne.s32.totalorder %s70, %s86
    %p88 = scmp.eq.s32.totalorder %s20, 0
    %p89 = por %p87, %p88
    %s90 = ssub.s32 %s21, %s33
    %s91 = ssub.s32 %s22, %s29
    %s92 = sor.u32 %s90, %s91
    %p93 = scmp.eq.s32.totalorder %s92, 0
    %s95 = sadd.s32 %s94, 1
    %s96 = scalar_select %p93, %s94, %s95
    %p99 = pneg %p93
    %p100 = scmp.eq.s32.totalorder %s14, 1
    %p101 = por %p99, %p100
    %p102 = scmp.ne.s32.totalorder %s94, %s97
    %p103 = scmp.eq.s32.totalorder %s14, 0
    %p104 = por %p102, %p103
    %p105 = scmp.ne.s32.totalorder %s94, %s97
    %p106 = scmp.eq.s32.totalorder %s19, 1
    %p107 = por %p105, %p106
    %p108 = scmp.ne.s32.totalorder %s97, %s98
    %p109 = scmp.eq.s32.totalorder %s19, 0
    %p110 = por %p108, %p109
    %p111 = scmp.ne.s32.totalorder %s97, %s98
    %p112 = scmp.eq.s32.totalorder %s20, 1
    %p113 = por %p111, %p112
    %p115 = scmp.ne.s32.totalorder %s98, %s114
    %p116 = scmp.eq.s32.totalorder %s20, 0
    %p117 = por %p115, %p116
    %s118 = ssub.s32 %s21, %s33
    %s119 = ssub.s32 %s22, %s29
    %s120 = sor.u32 %s118, %s119
    %p121 = scmp.eq.s32.totalorder %s120, 0
    %s123 = sadd.s32 %s122, 1
    %s124 = scalar_select %p121, %s122, %s123
    %p127 = pneg %p121
    %p128 = scmp.eq.s32.totalorder %s14, 1
    %p129 = por %p127, %p128
    %p130 = scmp.ne.s32.totalorder %s122, %s125
    %p131 = scmp.eq.s32.totalorder %s14, 0
    %p132 = por %p130, %p131
    %p133 = scmp.ne.s32.totalorder %s122, %s125
    %p134 = scmp.eq.s32.totalorder %s19, 1
    %p135 = por %p133, %p134
    %p136 = scmp.ne.s32.totalorder %s125, %s126
    %p137 = scmp.eq.s32.totalorder %s19, 0
    %p138 = por %p136, %p137
    %p139 = scmp.ne.s32.totalorder %s125, %s126
    %p140 = scmp.eq.s32.totalorder %s20, 1
    %p141 = por %p139, %p140
    %p143 = scmp.ne.s32.totalorder %s126, %s142
    %p144 = scmp.eq.s32.totalorder %s20, 0
    %p145 = por %p143, %p144
    %s147 = sadd.s32 %s146, 1
    %p150 = scmp.eq.s32.totalorder %s14, 1
    %p151 = scmp.ne.s32.totalorder %s146, %s148
    %p152 = scmp.eq.s32.totalorder %s14, 0
    %p153 = por %p151, %p152
    %p154 = scmp.ne.s32.totalorder %s146, %s148
    %p155 = scmp.eq.s32.totalorder %s19, 1
    %p156 = por %p154, %p155
    %p157 = scmp.ne.s32.totalorder %s148, %s149
    %p158 = scmp.eq.s32.totalorder %s19, 0
    %p159 = por %p157, %p158
    %p160 = scmp.ne.s32.totalorder %s148, %s149
    %p161 = scmp.eq.s32.totalorder %s20, 1
    %p162 = por %p160, %p161
    %p164 = scmp.ne.s32.totalorder %s149, %s163
    %p165 = scmp.eq.s32.totalorder %s20, 0
    %p166 = por %p164, %p165
    %s168 = sadd.s32 %s167, 1
    %p171 = scmp.eq.s32.totalorder %s14, 1
    %p172 = scmp.ne.s32.totalorder %s167, %s169
    %p173 = scmp.eq.s32.totalorder %s14, 0
    %p174 = por %p172, %p173
    %p175 = scmp.ne.s32.totalorder %s167, %s169
    %p176 = scmp.eq.s32.totalorder %s19, 1
    %p177 = por %p175, %p176
    %p178 = scmp.ne.s32.totalorder %s169, %s170
    %p179 = scmp.eq.s32.totalorder %s19, 0
    %p180 = por %p178, %p179
    %p181 = scmp.ne.s32.totalorder %s169, %s170
    %p182 = scmp.eq.s32.totalorder %s20, 1
    %p183 = por %p181, %p182
    %p185 = scmp.ne.s32.totalorder %s170, %s184
    %p186 = scmp.eq.s32.totalorder %s20, 0
    %p187 = por %p185, %p186
    %s189 = sadd.s32 %s188, 1
    %p192 = scmp.eq.s32.totalorder %s14, 1
    %p193 = scmp.ne.s32.totalorder %s188, %s190
    %p194 = scmp.eq.s32.totalorder %s14, 0
    %p195 = por %p193, %p194
    %p196 = scmp.ne.s32.totalorder %s188, %s190
    %p197 = scmp.eq.s32.totalorder %s19, 1
    %p198 = por %p196, %p197
    %p199 = scmp.ne.s32.totalorder %s190, %s191
    %p200 = scmp.eq.s32.totalorder %s19, 0
    %p201 = por %p199, %p200
    %p202 = scmp.ne.s32.totalorder %s190, %s191
    %p203 = scmp.eq.s32.totalorder %s20, 1
    %p204 = por %p202, %p203
    %p206 = scmp.ne.s32.totalorder %s191, %s205
    %p207 = scmp.eq.s32.totalorder %s20, 0
    %p208 = por %p206, %p207
    %s210 = sadd.s32 %s209, 1
    %p213 = scmp.eq.s32.totalorder %s14, 1
    %p214 = scmp.ne.s32.totalorder %s209, %s211
    %p215 = scmp.eq.s32.totalorder %s14, 0
    %p216 = por %p214, %p215
    %p217 = scmp.ne.s32.totalorder %s209, %s211
    %p218 = scmp.eq.s32.totalorder %s19, 1
    %p219 = por %p217, %p218
    %p220 = scmp.ne.s32.totalorder %s211, %s212
    %p221 = scmp.eq.s32.totalorder %s19, 0
    %p222 = por %p220, %p221
    %p223 = scmp.ne.s32.totalorder %s211, %s212
    %p224 = scmp.eq.s32.totalorder %s20, 1
    %p225 = por %p223, %p224
    %p227 = scmp.ne.s32.totalorder %s212, %s226
    %p228 = scmp.eq.s32.totalorder %s20, 0
    %p229 = por %p227, %p228
    %s230 = ssub.s32 %s21, %s33
    %s231 = ssub.s32 %s22, %s29
    %s232 = sor.u32 %s230, %s231
    %p233 = scmp.eq.s32.totalorder %s232, 0
    %s235 = sadd.s32 %s234, 1
    %s236 = scalar_select %p233, %s234, %s235
    %p239 = pneg %p233
    %p240 = scmp.eq.s32.totalorder %s14, 1
    %p241 = por %p239, %p240
    %p242 = scmp.ne.s32.totalorder %s234, %s237
    %p243 = scmp.eq.s32.totalorder %s14, 0
    %p244 = por %p242, %p243
    %p245 = scmp.ne.s32.totalorder %s234, %s237
    %p246 = scmp.eq.s32.totalorder %s19, 1
    %p247 = por %p245, %p246
    %p248 = scmp.ne.s32.totalorder %s237, %s238
    %p249 = scmp.eq.s32.totalorder %s19, 0
    %p250 = por %p248, %p249
    %p251 = scmp.ne.s32.totalorder %s237, %s238
    %p252 = scmp.eq.s32.totalorder %s20, 1
    %p253 = por %p251, %p252
    %p255 = scmp.ne.s32.totalorder %s238, %s254
    %p256 = scmp.eq.s32.totalorder %s20, 0
    %p257 = por %p255, %p256
    %p258 = scmp.le.s32.totalorder 1, %s14
    %p259 = scmp.lt.s32.totalorder %s14, 3
    %p260 = pnand %p258, %p259
    %p261 = pneg %p260
    // Predicated region
    $region9: #{dgcnn_forward.17} parent=5 // pred_check
      _
    $region10: #{dgcnn_forward.17} parent=5 // pred_check_branch
      %263 = sbr.rel (%p260) target = $region12
    $region11: #{dgcnn_forward.17} parent=5 // pred_region
      %s264 = ssub.s32 %s14, 1
      // Predicated region
      $region13: #{dgcnn_forward.17} parent=11 // pred_check
        %p265 = pneg %p159
      $region14: #{dgcnn_forward.17} parent=11 // pred_check_branch
        %267 = sbr.rel (%p265) target = $region16
      $region15: #{dgcnn_forward.17} parent=11 // pred_region
        _
      $region16: #{dgcnn_forward.17} parent=11 // pred_fallthru
        _
      // Predicated region
      $region17: #{dgcnn_forward.17} parent=11 // pred_check
        %p268 = pneg %p180
      $region18: #{dgcnn_forward.17} parent=11 // pred_check_branch
        %270 = sbr.rel (%p268) target = $region20
      $region19: #{dgcnn_forward.17} parent=11 // pred_region
        _
      $region20: #{dgcnn_forward.17} parent=11 // pred_fallthru
        _
      // Predicated region
      $region21: #{dgcnn_forward.17} parent=11 // pred_check
        %p271 = pneg %p201
      $region22: #{dgcnn_forward.17} parent=11 // pred_check_branch
        %273 = sbr.rel (%p271) target = $region24
      $region23: #{dgcnn_forward.17} parent=11 // pred_region
        _
      $region24: #{dgcnn_forward.17} parent=11 // pred_fallthru
        _
      // Predicated region
      $region25: #{dgcnn_forward.17} parent=11 // pred_check
        %p274 = pneg %p222
      $region26: #{dgcnn_forward.17} parent=11 // pred_check_branch
        %276 = sbr.rel (%p274) target = $region28
      $region27: #{dgcnn_forward.17} parent=11 // pred_region
        _
      $region28: #{dgcnn_forward.17} parent=11 // pred_fallthru
        _
    $region12: #{dgcnn_forward.17} parent=5 // pred_fallthru
      _
    %p277 = scmp.lt.s32.totalorder %s14, 2
    // Predicated region
    $region29: #{dgcnn_forward.17} parent=5 // pred_check
      %p278 = pneg %p277
    $region30: #{dgcnn_forward.17} parent=5 // pred_check_branch
      %280 = sbr.rel (%p278) target = $region32
    $region31: #{dgcnn_forward.17} parent=5 // pred_region
      // Predicated region
      $region33: #{dgcnn_forward.17} parent=31 // pred_check
        %p281 = pneg %p48
      $region34: #{dgcnn_forward.17} parent=31 // pred_check_branch
        %283 = sbr.rel (%p281) target = $region36
      $region35: #{dgcnn_forward.17} parent=31 // pred_region
        %s284 = smul.u32 2, %s22
        %p285 = scmp.lt.s32.totalorder %s21, 1
        %s286 = scalar_select %p285, %s21, 1
        %p287 = scmp.lt.s32.totalorder %s284, 1
        %s288 = scalar_select %p287, %s284, 1
        %s289 = smul.addr %s286, 2
        %s290 = sadd.s32 %s288, %s289
        %s291 = smul.addr %s290, 4
        %s292 = scalar_lea.vmem %s0, %s291
        %s293 = smul.u32 2, %s22
      $region36: #{dgcnn_forward.17} parent=31 // pred_fallthru
        _
      // Predicated region
      $region37: #{dgcnn_forward.17} parent=31 // pred_check
        %p294 = pneg %p76
      $region38: #{dgcnn_forward.17} parent=31 // pred_check_branch
        %296 = sbr.rel (%p294) target = $region40
      $region39: #{dgcnn_forward.17} parent=31 // pred_region
        %s297 = smul.u32 2, %s22
        %p298 = scmp.lt.s32.totalorder %s21, 1
        %s299 = scalar_select %p298, %s21, 1
        %p300 = scmp.lt.s32.totalorder %s297, 1
        %s301 = scalar_select %p300, %s297, 1
        %s302 = smul.addr %s299, 2
        %s303 = sadd.s32 %s301, %s302
        %s304 = smul.addr %s303, 4
        %s305 = scalar_lea.vmem %s1, %s304
        %s306 = smul.u32 2, %s22
      $region40: #{dgcnn_forward.17} parent=31 // pred_fallthru
        _
      // Predicated region
      $region41: #{dgcnn_forward.17} parent=31 // pred_check
        %p307 = pneg %p104
      $region42: #{dgcnn_forward.17} parent=31 // pred_check_branch
        %309 = sbr.rel (%p307) target = $region44
      $region43: #{dgcnn_forward.17} parent=31 // pred_region
        %s310 = smul.u32 2, %s22
        %p311 = scmp.lt.s32.totalorder %s21, 1
        %s312 = scalar_select %p311, %s21, 1
        %p313 = scmp.lt.s32.totalorder %s310, 1
        %s314 = scalar_select %p313, %s310, 1
        %s315 = smul.addr %s312, 2
        %s316 = sadd.s32 %s314, %s315
        %s317 = smul.addr %s316, 4
        %s318 = scalar_lea.vmem %s2, %s317
        %s319 = smul.u32 2, %s22
      $region44: #{dgcnn_forward.17} parent=31 // pred_fallthru
        _
      // Predicated region
      $region45: #{dgcnn_forward.17} parent=31 // pred_check
        %p320 = pneg %p132
      $region46: #{dgcnn_forward.17} parent=31 // pred_check_branch
        %322 = sbr.rel (%p320) target = $region48
      $region47: #{dgcnn_forward.17} parent=31 // pred_region
        %s323 = smul.u32 2, %s22
        %p324 = scmp.lt.s32.totalorder %s21, 1
        %s325 = scalar_select %p324, %s21, 1
        %p326 = scmp.lt.s32.totalorder %s323, 1
        %s327 = scalar_select %p326, %s323, 1
        %s328 = smul.addr %s327, 2
        %s329 = smul.addr %s325, 4
        %s330 = sadd.s32 %s328, %s329
        %s331 = smul.addr %s330, 4
        %s332 = scalar_lea.vmem %s3, %s331
        %s333 = smul.u32 2, %s22
      $region48: #{dgcnn_forward.17} parent=31 // pred_fallthru
        _
    $region32: #{dgcnn_forward.17} parent=5 // pred_fallthru
      _
    %p334 = scmp.le.s32.totalorder 1, %s14
    %p335 = scmp.lt.s32.totalorder %s14, 3
    %p336 = pnand %p334, %p335
    %p337 = pneg %p336
    // Predicated region
    $region49: #{dgcnn_forward.17} parent=5 // pred_check
      _
    $region50: #{dgcnn_forward.17} parent=5 // pred_check_branch
      %339 = sbr.rel (%p336) target = $region52
    $region51: #{dgcnn_forward.17} parent=5 // pred_region
      %s340 = ssub.s32 %s14, 1
      %s341 = smul.u32 2, %s24
      %p342 = scmp.lt.s32.totalorder %s23, 1
      %s343 = scalar_select %p342, %s23, 1
      %p344 = scmp.lt.s32.totalorder %s341, 1
      %s345 = scalar_select %p344, %s341, 1
      %s346 = smul.addr %s343, 2
      %s347 = sadd.s32 %s345, %s346
      %s348 = smul.addr %s347, 4
      %s349 = scalar_lea.vmem %s0, %s348
      %p350 = pneg %p54
      %p351 = pneg %p51
      %s352 = smul.u32 2, %s24
      %p353 = scmp.lt.s32.totalorder %s23, 1
      %s354 = scalar_select %p353, %s23, 1
      %p355 = scmp.lt.s32.totalorder %s352, 1
      %s356 = scalar_select %p355, %s352, 1
      %s357 = smul.addr %s354, 2
      %s358 = sadd.s32 %s356, %s357
      %s359 = smul.addr %s358, 4
      %s360 = scalar_lea.vmem %s1, %s359
      %p361 = pneg %p82
      %p362 = pneg %p79
      %s363 = smul.u32 2, %s24
      %p364 = scmp.lt.s32.totalorder %s23, 1
      %s365 = scalar_select %p364, %s23, 1
      %p366 = scmp.lt.s32.totalorder %s363, 1
      %s367 = scalar_select %p366, %s363, 1
      %s368 = smul.addr %s365, 2
      %s369 = sadd.s32 %s367, %s368
      %s370 = smul.addr %s369, 4
      %s371 = scalar_lea.vmem %s2, %s370
      %p372 = pneg %p110
      %p373 = pneg %p107
      %s374 = smul.u32 2, %s24
      %p375 = scmp.lt.s32.totalorder %s23, 1
      %s376 = scalar_select %p375, %s23, 1
      %p377 = scmp.lt.s32.totalorder %s374, 1
      %s378 = scalar_select %p377, %s374, 1
      %s379 = smul.addr %s378, 2
      %s380 = smul.addr %s376, 4
      %s381 = sadd.s32 %s379, %s380
      %s382 = smul.addr %s381, 4
      %s383 = scalar_lea.vmem %s3, %s382
      %p384 = pneg %p138
      %p385 = pneg %p135
      %p386 = pneg %p159
      %p387 = pneg %p156
      %p388 = pneg %p180
      %p389 = pneg %p177
      %p390 = pneg %p201
      %p391 = pneg %p198
      %p392 = pneg %p222
      %p393 = pneg %p219
      %p394 = pneg %p250
      %p395 = pneg %p247
      %p396 = scmp.lt.s32.totalorder %s23, 1
      %s397 = scalar_select %p396, %s23, 1
      %p398 = scmp.lt.s32.totalorder %s24, 0
      %s399 = scalar_select %p398, %s24, 0
      %s400 = smul.addr %s397, 64
      %s401 = sadd.s32 %s399, %s400
      %s402 = smul.addr %s401, 8
      %s403 = scalar_lea.vmem %s8, %s402
      %s404 = smul.u32 2, %s24
      %p405 = scmp.lt.s32.totalorder %s23, 1
      %s406 = scalar_select %p405, %s23, 1
      %p407 = scmp.lt.s32.totalorder %s404, 1
      %s408 = scalar_select %p407, %s404, 1
      %s409 = smul.addr %s406, 2
      %s410 = sadd.s32 %s408, %s409
      %s411 = smul.addr %s410, 4
      %s412 = scalar_lea.vmem %s0, %s411
      %s413 = smul.u32 2, %s24
      %s414 = smul.u32 2, %s24
      %p415 = scmp.lt.s32.totalorder %s23, 1
      %s416 = scalar_select %p415, %s23, 1
      %p417 = scmp.lt.s32.totalorder %s414, 1
      %s418 = scalar_select %p417, %s414, 1
      %s419 = smul.addr %s416, 2
      %s420 = sadd.s32 %s418, %s419
      %s421 = smul.addr %s420, 4
      %s422 = scalar_lea.vmem %s1, %s421
      %s423 = smul.u32 2, %s24
      %s424 = smul.u32 2, %s24
      %p425 = scmp.lt.s32.totalorder %s23, 1
      %s426 = scalar_select %p425, %s23, 1
      %p427 = scmp.lt.s32.totalorder %s424, 1
      %s428 = scalar_select %p427, %s424, 1
      %s429 = smul.addr %s426, 2
      %s430 = sadd.s32 %s428, %s429
      %s431 = smul.addr %s430, 4
      %s432 = scalar_lea.vmem %s2, %s431
      %s433 = smul.u32 2, %s24
      %s434 = smul.u32 2, %s24
      %p435 = scmp.lt.s32.totalorder %s23, 1
      %s436 = scalar_select %p435, %s23, 1
      %p437 = scmp.lt.s32.totalorder %s434, 1
      %s438 = scalar_select %p437, %s434, 1
      %s439 = smul.addr %s438, 2
      %s440 = smul.addr %s436, 4
      %s441 = sadd.s32 %s439, %s440
      %s442 = smul.addr %s441, 4
      %s443 = scalar_lea.vmem %s3, %s442
      %s444 = smul.u32 2, %s24
      %p445 = scmp.lt.s32.totalorder %s23, 1
      %s446 = scalar_select %p445, %s23, 1
      %p447 = scmp.lt.s32.totalorder %s24, 0
      %s448 = scalar_select %p447, %s24, 0
      %s449 = smul.addr %s446, 64
      %s450 = sadd.s32 %s448, %s449
      %s451 = smul.addr %s450, 8
      %s452 = scalar_lea.vmem %s8, %s451
      %v454 = vld [vmem:[%s4] sm:$0xf]
      %v455 = vld [vmem:[%s4 + $0x4] sm:$0xf]
      %v456 = vld [vmem:[%s4 + $0x8] sm:$0xf]
      %v457 = vld [vmem:[%s4 + $0xc] sm:$0xf]
      %v458 = vld [vmem:[%s4 + $0x10] sm:$0xf]
      %v459 = vld [vmem:[%s4 + $0x14] sm:$0xf]
      %v460 = vld [vmem:[%s4 + $0x18] sm:$0xf]
      %v461 = vld [vmem:[%s4 + $0x1c] sm:$0xf]
      %v462 = vld [vmem:[%s4 + $0x20] sm:$0xf]
      %v463 = vld [vmem:[%s4 + $0x24] sm:$0xf]
      %v464 = vld [vmem:[%s4 + $0x28] sm:$0xf]
      %v465 = vld [vmem:[%s4 + $0x2c] sm:$0xf]
      %v466 = vld [vmem:[%s4 + $0x30] sm:$0xf]
      %v467 = vld [vmem:[%s4 + $0x34] sm:$0xf]
      %v468 = vld [vmem:[%s4 + $0x38] sm:$0xf]
      %v469 = vld [vmem:[%s4 + $0x3c] sm:$0xf]
      %v470 = vld [vmem:[%s4 + $0x40] sm:$0xf]
      %v471 = vld [vmem:[%s4 + $0x44] sm:$0xf]
      %v472 = vld [vmem:[%s4 + $0x48] sm:$0xf]
      %v473 = vld [vmem:[%s4 + $0x4c] sm:$0xf]
      %v474 = vld [vmem:[%s4 + $0x50] sm:$0xf]
      %v475 = vld [vmem:[%s4 + $0x54] sm:$0xf]
      %v476 = vld [vmem:[%s4 + $0x58] sm:$0xf]
      %v477 = vld [vmem:[%s4 + $0x5c] sm:$0xf]
      %v478 = vld [vmem:[%s4 + $0x60] sm:$0xf]
      %v479 = vld [vmem:[%s4 + $0x64] sm:$0xf]
      %v480 = vld [vmem:[%s4 + $0x68] sm:$0xf]
      %v481 = vld [vmem:[%s4 + $0x6c] sm:$0xf]
      %v482 = vld [vmem:[%s4 + $0x70] sm:$0xf]
      %v483 = vld [vmem:[%s4 + $0x74] sm:$0xf]
      %v484 = vld [vmem:[%s4 + $0x78] sm:$0xf]
      %v485 = vld [vmem:[%s4 + $0x7c] sm:$0xf]
      %v486 = vld [vmem:[%s4 + $0x80] sm:$0xf]
      %v487 = vld [vmem:[%s4 + $0x84] sm:$0xf]
      %v488 = vld [vmem:[%s4 + $0x88] sm:$0xf]
      %v489 = vld [vmem:[%s4 + $0x8c] sm:$0xf]
      %v490 = vld [vmem:[%s4 + $0x90] sm:$0xf]
      %v491 = vld [vmem:[%s4 + $0x94] sm:$0xf]
      %v492 = vld [vmem:[%s4 + $0x98] sm:$0xf]
      %v493 = vld [vmem:[%s4 + $0x9c] sm:$0xf]
      %v494 = vld [vmem:[%s4 + $0xa0] sm:$0xf]
      %v495 = vld [vmem:[%s4 + $0xa4] sm:$0xf]
      %v496 = vld [vmem:[%s4 + $0xa8] sm:$0xf]
      %v497 = vld [vmem:[%s4 + $0xac] sm:$0xf]
      %v498 = vld [vmem:[%s4 + $0xb0] sm:$0xf]
      %v499 = vld [vmem:[%s4 + $0xb4] sm:$0xf]
      %v500 = vld [vmem:[%s4 + $0xb8] sm:$0xf]
      %v501 = vld [vmem:[%s4 + $0xbc] sm:$0xf]
      %v502 = vld [vmem:[%s4 + $0xc0] sm:$0xf]
      %v503 = vld [vmem:[%s4 + $0xc4] sm:$0xf]
      %v504 = vld [vmem:[%s4 + $0xc8] sm:$0xf]
      %v505 = vld [vmem:[%s4 + $0xcc] sm:$0xf]
      %v506 = vld [vmem:[%s4 + $0xd0] sm:$0xf]
      %v507 = vld [vmem:[%s4 + $0xd4] sm:$0xf]
      %v508 = vld [vmem:[%s4 + $0xd8] sm:$0xf]
      %v509 = vld [vmem:[%s4 + $0xdc] sm:$0xf]
      %v510 = vld [vmem:[%s4 + $0xe0] sm:$0xf]
      %v511 = vld [vmem:[%s4 + $0xe4] sm:$0xf]
      %v512 = vld [vmem:[%s4 + $0xe8] sm:$0xf]
      %v513 = vld [vmem:[%s4 + $0xec] sm:$0xf]
      %v514 = vld [vmem:[%s4 + $0xf0] sm:$0xf]
      %v515 = vld [vmem:[%s4 + $0xf4] sm:$0xf]
      %v516 = vld [vmem:[%s4 + $0xf8] sm:$0xf]
      %v517 = vld [vmem:[%s4 + $0xfc] sm:$0xf]
      %v518 = vld [vmem:[%s412] sm:$0xf]
      %v519 = vld [vmem:[%s412 + $0x4] sm:$0xf]
      %v520 = vld [vmem:[%s5] sm:$0xf]
      %v521 = vld [vmem:[%s5 + $0x4] sm:$0xf]
      %v522 = vld [vmem:[%s5 + $0x8] sm:$0xf]
      %v523 = vld [vmem:[%s5 + $0xc] sm:$0xf]
      %v524 = vld [vmem:[%s5 + $0x10] sm:$0xf]
      %v525 = vld [vmem:[%s5 + $0x14] sm:$0xf]
      %v526 = vld [vmem:[%s5 + $0x18] sm:$0xf]
      %v527 = vld [vmem:[%s5 + $0x1c] sm:$0xf]
      %v528 = vld [vmem:[%s5 + $0x20] sm:$0xf]
      %v529 = vld [vmem:[%s5 + $0x24] sm:$0xf]
      %v530 = vld [vmem:[%s5 + $0x28] sm:$0xf]
      %v531 = vld [vmem:[%s5 + $0x2c] sm:$0xf]
      %v532 = vld [vmem:[%s5 + $0x30] sm:$0xf]
      %v533 = vld [vmem:[%s5 + $0x34] sm:$0xf]
      %v534 = vld [vmem:[%s5 + $0x38] sm:$0xf]
      %v535 = vld [vmem:[%s5 + $0x3c] sm:$0xf]
      %v536 = vld [vmem:[%s5 + $0x40] sm:$0xf]
      %v537 = vld [vmem:[%s5 + $0x44] sm:$0xf]
      %v538 = vld [vmem:[%s5 + $0x48] sm:$0xf]
      %v539 = vld [vmem:[%s5 + $0x4c] sm:$0xf]
      %v540 = vld [vmem:[%s5 + $0x50] sm:$0xf]
      %v541 = vld [vmem:[%s5 + $0x54] sm:$0xf]
      %v542 = vld [vmem:[%s5 + $0x58] sm:$0xf]
      %v543 = vld [vmem:[%s5 + $0x5c] sm:$0xf]
      %v544 = vld [vmem:[%s5 + $0x60] sm:$0xf]
      %v545 = vld [vmem:[%s5 + $0x64] sm:$0xf]
      %v546 = vld [vmem:[%s5 + $0x68] sm:$0xf]
      %v547 = vld [vmem:[%s5 + $0x6c] sm:$0xf]
      %v548 = vld [vmem:[%s5 + $0x70] sm:$0xf]
      %v549 = vld [vmem:[%s5 + $0x74] sm:$0xf]
      %v550 = vld [vmem:[%s5 + $0x78] sm:$0xf]
      %v551 = vld [vmem:[%s5 + $0x7c] sm:$0xf]
      %v552 = vld [vmem:[%s5 + $0x80] sm:$0xf]
      %v553 = vld [vmem:[%s5 + $0x84] sm:$0xf]
      %v554 = vld [vmem:[%s5 + $0x88] sm:$0xf]
      %v555 = vld [vmem:[%s5 + $0x8c] sm:$0xf]
      %v556 = vld [vmem:[%s5 + $0x90] sm:$0xf]
      %v557 = vld [vmem:[%s5 + $0x94] sm:$0xf]
      %v558 = vld [vmem:[%s5 + $0x98] sm:$0xf]
      %v559 = vld [vmem:[%s5 + $0x9c] sm:$0xf]
      %v560 = vld [vmem:[%s5 + $0xa0] sm:$0xf]
      %v561 = vld [vmem:[%s5 + $0xa4] sm:$0xf]
      %v562 = vld [vmem:[%s5 + $0xa8] sm:$0xf]
      %v563 = vld [vmem:[%s5 + $0xac] sm:$0xf]
      %v564 = vld [vmem:[%s5 + $0xb0] sm:$0xf]
      %v565 = vld [vmem:[%s5 + $0xb4] sm:$0xf]
      %v566 = vld [vmem:[%s5 + $0xb8] sm:$0xf]
      %v567 = vld [vmem:[%s5 + $0xbc] sm:$0xf]
      %v568 = vld [vmem:[%s5 + $0xc0] sm:$0xf]
      %v569 = vld [vmem:[%s5 + $0xc4] sm:$0xf]
      %v570 = vld [vmem:[%s5 + $0xc8] sm:$0xf]
      %v571 = vld [vmem:[%s5 + $0xcc] sm:$0xf]
      %v572 = vld [vmem:[%s5 + $0xd0] sm:$0xf]
      %v573 = vld [vmem:[%s5 + $0xd4] sm:$0xf]
      %v574 = vld [vmem:[%s5 + $0xd8] sm:$0xf]
      %v575 = vld [vmem:[%s5 + $0xdc] sm:$0xf]
      %v576 = vld [vmem:[%s5 + $0xe0] sm:$0xf]
      %v577 = vld [vmem:[%s5 + $0xe4] sm:$0xf]
      %v578 = vld [vmem:[%s5 + $0xe8] sm:$0xf]
      %v579 = vld [vmem:[%s5 + $0xec] sm:$0xf]
      %v580 = vld [vmem:[%s5 + $0xf0] sm:$0xf]
      %v581 = vld [vmem:[%s5 + $0xf4] sm:$0xf]
      %v582 = vld [vmem:[%s5 + $0xf8] sm:$0xf]
      %v583 = vld [vmem:[%s5 + $0xfc] sm:$0xf]
      %v584 = vld [vmem:[%s422] sm:$0xf]
      %v585 = vld [vmem:[%s422 + $0x4] sm:$0xf]
      %v650 = vunpack.c.l.b16 %v520
      %v651 = vunpack.c.l.b16 %v521
      %v652 = vunpack.c.l.b16 %v522
      %v653 = vunpack.c.l.b16 %v523
      %v654 = vunpack.c.l.b16 %v524
      %v655 = vunpack.c.l.b16 %v525
      %v656 = vunpack.c.l.b16 %v526
      %v657 = vunpack.c.l.b16 %v527
      %v658 = vunpack.c.l.b16 %v528
      %v659 = vunpack.c.l.b16 %v529
      %v660 = vunpack.c.l.b16 %v530
      %v661 = vunpack.c.l.b16 %v531
      %v662 = vunpack.c.l.b16 %v532
      %v663 = vunpack.c.l.b16 %v533
      %v664 = vunpack.c.l.b16 %v534
      %v665 = vunpack.c.l.b16 %v535
      %v666 = vunpack.c.l.b16 %v536
      %v667 = vunpack.c.l.b16 %v537
      %v668 = vunpack.c.l.b16 %v538
      %v669 = vunpack.c.l.b16 %v539
      %v670 = vunpack.c.l.b16 %v540
      %v671 = vunpack.c.l.b16 %v541
      %v672 = vunpack.c.l.b16 %v542
      %v673 = vunpack.c.l.b16 %v543
      %v674 = vunpack.c.l.b16 %v544
      %v675 = vunpack.c.l.b16 %v545
      %v676 = vunpack.c.l.b16 %v546
      %v677 = vunpack.c.l.b16 %v547
      %v678 = vunpack.c.l.b16 %v548
      %v679 = vunpack.c.l.b16 %v549
      %v680 = vunpack.c.l.b16 %v550
      %v681 = vunpack.c.l.b16 %v551
      %v682 = vunpack.c.l.b16 %v552
      %v683 = vunpack.c.l.b16 %v553
      %v684 = vunpack.c.l.b16 %v554
      %v685 = vunpack.c.l.b16 %v555
      %v686 = vunpack.c.l.b16 %v556
      %v687 = vunpack.c.l.b16 %v557
      %v688 = vunpack.c.l.b16 %v558
      %v689 = vunpack.c.l.b16 %v559
      %v690 = vunpack.c.l.b16 %v560
      %v691 = vunpack.c.l.b16 %v561
      %v692 = vunpack.c.l.b16 %v562
      %v693 = vunpack.c.l.b16 %v563
      %v694 = vunpack.c.l.b16 %v564
      %v695 = vunpack.c.l.b16 %v565
      %v696 = vunpack.c.l.b16 %v566
      %v697 = vunpack.c.l.b16 %v567
      %v698 = vunpack.c.l.b16 %v568
      %v699 = vunpack.c.l.b16 %v569
      %v700 = vunpack.c.l.b16 %v570
      %v701 = vunpack.c.l.b16 %v571
      %v702 = vunpack.c.l.b16 %v572
      %v703 = vunpack.c.l.b16 %v573
      %v704 = vunpack.c.l.b16 %v574
      %v705 = vunpack.c.l.b16 %v575
      %v706 = vunpack.c.l.b16 %v576
      %v707 = vunpack.c.l.b16 %v577
      %v708 = vunpack.c.l.b16 %v578
      %v709 = vunpack.c.l.b16 %v579
      %v710 = vunpack.c.l.b16 %v580
      %v711 = vunpack.c.l.b16 %v581
      %v712 = vunpack.c.l.b16 %v582
      %v713 = vunpack.c.l.b16 %v583
      %v714 = vpack.c.b16 %v651, %v650
      %v715 = vpack.c.b16 %v653, %v652
      %v716 = vpack.c.b16 %v655, %v654
      %v717 = vpack.c.b16 %v657, %v656
      %v718 = vpack.c.b16 %v659, %v658
      %v719 = vpack.c.b16 %v661, %v660
      %v720 = vpack.c.b16 %v663, %v662
      %v721 = vpack.c.b16 %v665, %v664
      %v722 = vpack.c.b16 %v667, %v666
      %v723 = vpack.c.b16 %v669, %v668
      %v724 = vpack.c.b16 %v671, %v670
      %v725 = vpack.c.b16 %v673, %v672
      %v726 = vpack.c.b16 %v675, %v674
      %v727 = vpack.c.b16 %v677, %v676
      %v728 = vpack.c.b16 %v679, %v678
      %v729 = vpack.c.b16 %v681, %v680
      %v730 = vpack.c.b16 %v683, %v682
      %v731 = vpack.c.b16 %v685, %v684
      %v732 = vpack.c.b16 %v687, %v686
      %v733 = vpack.c.b16 %v689, %v688
      %v734 = vpack.c.b16 %v691, %v690
      %v735 = vpack.c.b16 %v693, %v692
      %v736 = vpack.c.b16 %v695, %v694
      %v737 = vpack.c.b16 %v697, %v696
      %v738 = vpack.c.b16 %v699, %v698
      %v739 = vpack.c.b16 %v701, %v700
      %v740 = vpack.c.b16 %v703, %v702
      %v741 = vpack.c.b16 %v705, %v704
      %v742 = vpack.c.b16 %v707, %v706
      %v743 = vpack.c.b16 %v709, %v708
      %v744 = vpack.c.b16 %v711, %v710
      %v745 = vpack.c.b16 %v713, %v712
      %v780 = vunpack.c.l.b16 %v584
      %v781 = vunpack.c.l.b16 %v585
      %v782 = vpack.c.b16 %v781, %v780
      %784 = vmatprep.subr.bf16.mxu0 0
      %785 = vmatpush1.bf16.xpose.msra.mxu0 %v782
      %786 = vmatprep.subr.bf16.mxu0 0
      %787 = vmatpush1.bf16.xpose.msra.mxu0 0
      %788 = vmatprep.subr.bf16.mxu0 0
      %789 = vmatpush1.bf16.xpose.msra.mxu0 0
      %790 = vmatprep.subr.bf16.mxu0 0
      %791 = vmatpush1.bf16.xpose.msra.mxu0 0
      %792 = vmatprep.subr.bf16.mxu0 0
      %793 = vmatpush1.bf16.xpose.msra.mxu0 0
      %794 = vmatprep.subr.bf16.mxu0 0
      %795 = vmatpush1.bf16.xpose.msra.mxu0 0
      %796 = vmatprep.subr.bf16.mxu0 0
      %797 = vmatpush1.bf16.xpose.msra.mxu0 0
      %798 = vmatprep.subr.bf16.mxu0 0
      %799 = vmatpush1.bf16.xpose.msra.mxu0 0
      %800 = vmatprep.subr.bf16.mxu0 0
      %801 = vmatpush1.bf16.xpose.msra.mxu0 0
      %802 = vmatprep.subr.bf16.mxu0 0
      %803 = vmatpush1.bf16.xpose.msra.mxu0 0
      %804 = vmatprep.subr.bf16.mxu0 0
      %805 = vmatpush1.bf16.xpose.msra.mxu0 0
      %806 = vmatprep.subr.bf16.mxu0 0
      %807 = vmatpush1.bf16.xpose.msra.mxu0 0
      %808 = vmatprep.subr.bf16.mxu0 0
      %809 = vmatpush1.bf16.xpose.msra.mxu0 0
      %810 = vmatprep.subr.bf16.mxu0 0
      %811 = vmatpush1.bf16.xpose.msra.mxu0 0
      %812 = vmatprep.subr.bf16.mxu0 0
      %813 = vmatpush1.bf16.xpose.msra.mxu0 0
      %814 = vmatprep.subr.bf16.mxu0 0
      %815 = vmatpush1.bf16.xpose.msra.mxu0 0
      %816 = vmatprep.mubr.bf16.mxu0 0
      %817 = vmatmul.mubr.bf16.gmra.mrb[0].mxu0 %v714
      %v818 = vpop.f32.mrb[0].mxu0
      %v819 = vadd.f32 0.0, %v818
      %v820 = vpop.f32.mrb[0].mxu0
      %v821 = vpop.f32.mrb[0].mxu0
      %v822 = vadd.f32 0.0, %v821
      %v823 = vpop.f32.mrb[0].mxu0
      %824 = vmatprep.mubr.bf16.mxu0 0
      %825 = vmatmul.mubr.bf16.gmra.mrb[0].mxu0 %v715
      %v826 = vpop.f32.mrb[0].mxu0
      %v827 = vadd.f32 0.0, %v826
      %v828 = vpop.f32.mrb[0].mxu0
      %v829 = vpop.f32.mrb[0].mxu0
      %v830 = vadd.f32 0.0, %v829
      %v831 = vpop.f32.mrb[0].mxu0
      %832 = vmatprep.mubr.bf16.mxu0 0
      %833 = vmatmul.mubr.bf16.gmra.mrb[0].mxu0 %v716
      %v834 = vpop.f32.mrb[0].mxu0
      %v835 = vadd.f32 0.0, %v834
      %v836 = vpop.f32.mrb[0].mxu0
      %v837 = vpop.f32.mrb[0].mxu0
      %v838 = vadd.f32 0.0, %v837
      %v839 = vpop.f32.mrb[0].mxu0
      %840 = vmatprep.mubr.bf16.mxu0 0
      %841 = vmatmul.mubr.bf16.gmra.mrb[0].mxu0 %v717
      %v842 = vpop.f32.mrb[0].mxu0
      %v843 = vadd.f32 0.0, %v842
      %v844 = vpop.f32.mrb[0].mxu0
      %v845 = vpop.f32.mrb[0].mxu0
      %v846 = vadd.f32 0.0, %v845
      %v847 = vpop.f32.mrb[0].mxu0
      %848 = vmatprep.mubr.bf16.mxu0 0
      %849 = vmatmul.mubr.bf16.gmra.mrb[0].mxu0 %v718
      %v850 = vpop.f32.mrb[0].mxu0
      %v851 = vadd.f32 0.0, %v850
      %v852 = vpop.f32.mrb[0].mxu0
      %v853 = vpop.f32.mrb[0].mxu0
      %v854 = vadd.f32 0.0, %v853
      %v855 = vpop.f32.mrb[0].mxu0
      %856 = vmatprep.mubr.bf16.mxu0 0
      %857 = vmatmul.mubr.bf16.gmra.mrb[0].mxu0 %v719
      %v858 = vpop.f32.mrb[0].mxu0
      %v859 = vadd.f32 0.0, %v858
      %v860 = vpop.f32.mrb[0].mxu0
      %v861 = vpop.f32.mrb[0].mxu0
      %v862 = vadd.f32 0.0, %v861
      %v863 = vpop.f32.mrb[0].mxu0
      %864 = vmatprep.mubr.bf16.mxu0 0
      %865 = vmatmul.mubr.bf16.gmra.mrb[0].mxu0 %v720
      %v866 = vpop.f32.mrb[0].mxu0
      %v867 = vadd.f32 0.0, %v866
      %v868 = vpop.f32.mrb[0].mxu0
      %v869 = vpop.f32.mrb[0].mxu0
      %v870 = vadd.f32 0.0, %v869
      %v871 = vpop.f32.mrb[0].mxu0
      %872 = vmatprep.mubr.bf16.mxu0 0
      %873 = vmatmul.mubr.bf16.gmra.mrb[0].mxu0 %v721
      %v874 = vpop.f32.mrb[0].mxu0
      %v875 = vadd.f32 0.0, %v874
      %v876 = vpop.f32.mrb[0].mxu0
      %v877 = vpop.f32.mrb[0].mxu0
      %v878 = vadd.f32 0.0, %v877
      %v879 = vpop.f32.mrb[0].mxu0
      %880 = vmatprep.mubr.bf16.mxu0 0
      %881 = vmatmul.mubr.bf16.gmra.mrb[0].mxu0 %v722
      %v882 = vpop.f32.mrb[0].mxu0
      %v883 = vadd.f32 0.0, %v882
      %v884 = vpop.f32.mrb[0].mxu0
      %v885 = vpop.f32.mrb[0].mxu0
      %v886 = vadd.f32 0.0, %v885
      %v887 = vpop.f32.mrb[0].mxu0
      %888 = vmatprep.mubr.bf16.mxu0 0
      %889 = vmatmul.mubr.bf16.gmra.mrb[0].mxu0 %v723
      %v890 = vpop.f32.mrb[0].mxu0
      %v891 = vadd.f32 0.0, %v890
      %v892 = vpop.f32.mrb[0].mxu0
      %v893 = vpop.f32.mrb[0].mxu0
      %v894 = vadd.f32 0.0, %v893
      %v895 = vpop.f32.mrb[0].mxu0
      %896 = vmatprep.mubr.bf16.mxu0 0
      %897 = vmatmul.mubr.bf16.gmra.mrb[0].mxu0 %v724
      %v898 = vpop.f32.mrb[0].mxu0
      %v899 = vadd.f32 0.0, %v898
      %v900 = vpop.f32.mrb[0].mxu0
      %v901 = vpop.f32.mrb[0].mxu0
      %v902 = vadd.f32 0.0, %v901
      %v903 = vpop.f32.mrb[0].mxu0
      %904 = vmatprep.mubr.bf16.mxu0 0
      %905 = vmatmul.mubr.bf16.gmra.mrb[0].mxu0 %v725
      %v906 = vpop.f32.mrb[0].mxu0
      %v907 = vadd.f32 0.0, %v906
      %v908 = vpop.f32.mrb[0].mxu0
      %v909 = vpop.f32.mrb[0].mxu0
      %v910 = vadd.f32 0.0, %v909
      %v911 = vpop.f32.mrb[0].mxu0
      %912 = vmatprep.mubr.bf16.mxu0 0
      %913 = vmatmul.mubr.bf16.gmra.mrb[0].mxu0 %v726
      %v914 = vpop.f32.mrb[0].mxu0
      %v915 = vadd.f32 0.0, %v914
      %v916 = vpop.f32.mrb[0].mxu0
      %v917 = vpop.f32.mrb[0].mxu0
      %v918 = vadd.f32 0.0, %v917
      %v919 = vpop.f32.mrb[0].mxu0
      %920 = vmatprep.mubr.bf16.mxu0 0
      %921 = vmatmul.mubr.bf16.gmra.mrb[0].mxu0 %v727
      %v922 = vpop.f32.mrb[0].mxu0
      %v923 = vadd.f32 0.0, %v922
      %v924 = vpop.f32.mrb[0].mxu0
      %v925 = vpop.f32.mrb[0].mxu0
      %v926 = vadd.f32 0.0, %v925
      %v927 = vpop.f32.mrb[0].mxu0
      %928 = vmatprep.mubr.bf16.mxu0 0
      %929 = vmatmul.mubr.bf16.gmra.mrb[0].mxu0 %v728
      %v930 = vpop.f32.mrb[0].mxu0
      %v931 = vadd.f32 0.0, %v930
      %v932 = vpop.f32.mrb[0].mxu0
      %v933 = vpop.f32.mrb[0].mxu0
      %v934 = vadd.f32 0.0, %v933
      %v935 = vpop.f32.mrb[0].mxu0
      %936 = vmatprep.mubr.bf16.mxu0 0
      %937 = vmatmul.mubr.bf16.gmra.mrb[0].mxu0 %v729
      %v938 = vpop.f32.mrb[0].mxu0
      %v939 = vadd.f32 0.0, %v938
      %v940 = vpop.f32.mrb[0].mxu0
      %v941 = vpop.f32.mrb[0].mxu0
      %v942 = vadd.f32 0.0, %v941
      %v943 = vpop.f32.mrb[0].mxu0
      %944 = vmatprep.mubr.bf16.mxu0 0
      %945 = vmatmul.mubr.bf16.gmra.mrb[0].mxu0 %v730
      %v946 = vpop.f32.mrb[0].mxu0
      %v947 = vadd.f32 0.0, %v946
      %v948 = vpop.f32.mrb[0].mxu0
      %v949 = vpop.f32.mrb[0].mxu0
      %v950 = vadd.f32 0.0, %v949
      %v951 = vpop.f32.mrb[0].mxu0
      %952 = vmatprep.mubr.bf16.mxu0 0
      %953 = vmatmul.mubr.bf16.gmra.mrb[0].mxu0 %v731
      %v954 = vpop.f32.mrb[0].mxu0
      %v955 = vadd.f32 0.0, %v954
      %v956 = vpop.f32.mrb[0].mxu0
      %v957 = vpop.f32.mrb[0].mxu0
      %v958 = vadd.f32 0.0, %v957
      %v959 = vpop.f32.mrb[0].mxu0
      %960 = vmatprep.mubr.bf16.mxu0 0
      %961 = vmatmul.mubr.bf16.gmra.mrb[0].mxu0 %v732
      %v962 = vpop.f32.mrb[0].mxu0
      %v963 = vadd.f32 0.0, %v962
      %v964 = vpop.f32.mrb[0].mxu0
      %v965 = vpop.f32.mrb[0].mxu0
      %v966 = vadd.f32 0.0, %v965
      %v967 = vpop.f32.mrb[0].mxu0
      %968 = vmatprep.mubr.bf16.mxu0 0
      %969 = vmatmul.mubr.bf16.gmra.mrb[0].mxu0 %v733
      %v970 = vpop.f32.mrb[0].mxu0
      %v971 = vadd.f32 0.0, %v970
      %v972 = vpop.f32.mrb[0].mxu0
      %v973 = vpop.f32.mrb[0].mxu0
      %v974 = vadd.f32 0.0, %v973
      %v975 = vpop.f32.mrb[0].mxu0
      %976 = vmatprep.mubr.bf16.mxu0 0
      %977 = vmatmul.mubr.bf16.gmra.mrb[0].mxu0 %v734
      %v978 = vpop.f32.mrb[0].mxu0
      %v979 = vadd.f32 0.0, %v978
      %v980 = vpop.f32.mrb[0].mxu0
      %v981 = vpop.f32.mrb[0].mxu0
      %v982 = vadd.f32 0.0, %v981
      %v983 = vpop.f32.mrb[0].mxu0
      %984 = vmatprep.mubr.bf16.mxu0 0
      %985 = vmatmul.mubr.bf16.gmra.mrb[0].mxu0 %v735
      %v986 = vpop.f32.mrb[0].mxu0
      %v987 = vadd.f32 0.0, %v986
      %v988 = vpop.f32.mrb[0].mxu0
      %v989 = vpop.f32.mrb[0].mxu0
      %v990 = vadd.f32 0.0, %v989
      %v991 = vpop.f32.mrb[0].mxu0
      %992 = vmatprep.mubr.bf16.mxu0 0
      %993 = vmatmul.mubr.bf16.gmra.mrb[0].mxu0 %v736
      %v994 = vpop.f32.mrb[0].mxu0
      %v995 = vadd.f32 0.0, %v994
      %v996 = vpop.f32.mrb[0].mxu0
      %v997 = vpop.f32.mrb[0].mxu0
      %v998 = vadd.f32 0.0, %v997
      %v999 = vpop.f32.mrb[0].mxu0
      %1000 = vmatprep.mubr.bf16.mxu0 0
      %1001 = vmatmul.mubr.bf16.gmra.mrb[0].mxu0 %v737
      %v1002 = vpop.f32.mrb[0].mxu0
      %v1003 = vadd.f32 0.0, %v1002
      %v1004 = vpop.f32.mrb[0].mxu0
      %v1005 = vpop.f32.mrb[0].mxu0
      %v1006 = vadd.f32 0.0, %v1005
      %v1007 = vpop.f32.mrb[0].mxu0
      %1008 = vmatprep.mubr.bf16.mxu0 0
      %1009 = vmatmul.mubr.bf16.gmra.mrb[0].mxu0 %v738
      %v1010 = vpop.f32.mrb[0].mxu0
      %v1011 = vadd.f32 0.0, %v1010
      %v1012 = vpop.f32.mrb[0].mxu0
      %v1013 = vpop.f32.mrb[0].mxu0
      %v1014 = vadd.f32 0.0, %v1013
      %v1015 = vpop.f32.mrb[0].mxu0
      %1016 = vmatprep.mubr.bf16.mxu0 0
      %1017 = vmatmul.mubr.bf16.gmra.mrb[0].mxu0 %v739
      %v1018 = vpop.f32.mrb[0].mxu0
      %v1019 = vadd.f32 0.0, %v1018
      %v1020 = vpop.f32.mrb[0].mxu0
      %v1021 = vpop.f32.mrb[0].mxu0
      %v1022 = vadd.f32 0.0, %v1021
      %v1023 = vpop.f32.mrb[0].mxu0
      %1024 = vmatprep.mubr.bf16.mxu0 0
      %1025 = vmatmul.mubr.bf16.gmra.mrb[0].mxu0 %v740
      %v1026 = vpop.f32.mrb[0].mxu0
      %v1027 = vadd.f32 0.0, %v1026
      %v1028 = vpop.f32.mrb[0].mxu0
      %v1029 = vpop.f32.mrb[0].mxu0
      %v1030 = vadd.f32 0.0, %v1029
      %v1031 = vpop.f32.mrb[0].mxu0
      %1032 = vmatprep.mubr.bf16.mxu0 0
      %1033 = vmatmul.mubr.bf16.gmra.mrb[0].mxu0 %v741
      %v1034 = vpop.f32.mrb[0].mxu0
      %v1035 = vadd.f32 0.0, %v1034
      %v1036 = vpop.f32.mrb[0].mxu0
      %v1037 = vpop.f32.mrb[0].mxu0
      %v1038 = vadd.f32 0.0, %v1037
      %v1039 = vpop.f32.mrb[0].mxu0
      %1040 = vmatprep.mubr.bf16.mxu0 0
      %1041 = vmatmul.mubr.bf16.gmra.mrb[0].mxu0 %v742
      %v1042 = vpop.f32.mrb[0].mxu0
      %v1043 = vadd.f32 0.0, %v1042
      %v1044 = vpop.f32.mrb[0].mxu0
      %v1045 = vpop.f32.mrb[0].mxu0
      %v1046 = vadd.f32 0.0, %v1045
      %v1047 = vpop.f32.mrb[0].mxu0
      %1048 = vmatprep.mubr.bf16.mxu0 0
      %1049 = vmatmul.mubr.bf16.gmra.mrb[0].mxu0 %v743
      %v1050 = vpop.f32.mrb[0].mxu0
      %v1051 = vadd.f32 0.0, %v1050
      %v1052 = vpop.f32.mrb[0].mxu0
      %v1053 = vpop.f32.mrb[0].mxu0
      %v1054 = vadd.f32 0.0, %v1053
      %v1055 = vpop.f32.mrb[0].mxu0
      %1056 = vmatprep.mubr.bf16.mxu0 0
      %1057 = vmatmul.mubr.bf16.gmra.mrb[0].mxu0 %v744
      %v1058 = vpop.f32.mrb[0].mxu0
      %v1059 = vadd.f32 0.0, %v1058
      %v1060 = vpop.f32.mrb[0].mxu0
      %v1061 = vpop.f32.mrb[0].mxu0
      %v1062 = vadd.f32 0.0, %v1061
      %v1063 = vpop.f32.mrb[0].mxu0
      %1064 = vmatprep.mubr.bf16.mxu0 0
      %1065 = vmatmul.mubr.bf16.gmra.mrb[0].mxu0 %v745
      %v1066 = vpop.f32.mrb[0].mxu0
      %v1067 = vadd.f32 0.0, %v1066
      %v1068 = vpop.f32.mrb[0].mxu0
      %v1069 = vpop.f32.mrb[0].mxu0
      %v1070 = vadd.f32 0.0, %v1069
      %v1071 = vpop.f32.mrb[0].mxu0
      %1072 = vdwg.mxu0
      %v1137 = vunpack.c.l.b16 %v454
      %v1138 = vunpack.c.l.b16 %v455
      %v1139 = vunpack.c.l.b16 %v456
      %v1140 = vunpack.c.l.b16 %v457
      %v1141 = vunpack.c.l.b16 %v458
      %v1142 = vunpack.c.l.b16 %v459
      %v1143 = vunpack.c.l.b16 %v460
      %v1144 = vunpack.c.l.b16 %v461
      %v1145 = vunpack.c.l.b16 %v462
      %v1146 = vunpack.c.l.b16 %v463
      %v1147 = vunpack.c.l.b16 %v464
      %v1148 = vunpack.c.l.b16 %v465
      %v1149 = vunpack.c.l.b16 %v466
      %v1150 = vunpack.c.l.b16 %v467
      %v1151 = vunpack.c.l.b16 %v468
      %v1152 = vunpack.c.l.b16 %v469
      %v1153 = vunpack.c.l.b16 %v470
      %v1154 = vunpack.c.l.b16 %v471
      %v1155 = vunpack.c.l.b16 %v472
      %v1156 = vunpack.c.l.b16 %v473
      %v1157 = vunpack.c.l.b16 %v474
      %v1158 = vunpack.c.l.b16 %v475
      %v1159 = vunpack.c.l.b16 %v476
      %v1160 = vunpack.c.l.b16 %v477
      %v1161 = vunpack.c.l.b16 %v478
      %v1162 = vunpack.c.l.b16 %v479
      %v1163 = vunpack.c.l.b16 %v480
      %v1164 = vunpack.c.l.b16 %v481
      %v1165 = vunpack.c.l.b16 %v482
      %v1166 = vunpack.c.l.b16 %v483
      %v1167 = vunpack.c.l.b16 %v484
      %v1168 = vunpack.c.l.b16 %v485
      %v1169 = vunpack.c.l.b16 %v486
      %v1170 = vunpack.c.l.b16 %v487
      %v1171 = vunpack.c.l.b16 %v488
      %v1172 = vunpack.c.l.b16 %v489
      %v1173 = vunpack.c.l.b16 %v490
      %v1174 = vunpack.c.l.b16 %v491
      %v1175 = vunpack.c.l.b16 %v492
      %v1176 = vunpack.c.l.b16 %v493
      %v1177 = vunpack.c.l.b16 %v494
      %v1178 = vunpack.c.l.b16 %v495
      %v1179 = vunpack.c.l.b16 %v496
      %v1180 = vunpack.c.l.b16 %v497
      %v1181 = vunpack.c.l.b16 %v498
      %v1182 = vunpack.c.l.b16 %v499
      %v1183 = vunpack.c.l.b16 %v500
      %v1184 = vunpack.c.l.b16 %v501
      %v1185 = vunpack.c.l.b16 %v502
      %v1186 = vunpack.c.l.b16 %v503
      %v1187 = vunpack.c.l.b16 %v504
      %v1188 = vunpack.c.l.b16 %v505
      %v1189 = vunpack.c.l.b16 %v506
      %v1190 = vunpack.c.l.b16 %v507
      %v1191 = vunpack.c.l.b16 %v508
      %v1192 = vunpack.c.l.b16 %v509
      %v1193 = vunpack.c.l.b16 %v510
      %v1194 = vunpack.c.l.b16 %v511
      %v1195 = vunpack.c.l.b16 %v512
      %v1196 = vunpack.c.l.b16 %v513
      %v1197 = vunpack.c.l.b16 %v514
      %v1198 = vunpack.c.l.b16 %v515
      %v1199 = vunpack.c.l.b16 %v516
      %v1200 = vunpack.c.l.b16 %v517
      %v1201 = vpack.c.b16 %v1138, %v1137
      %v1202 = vpack.c.b16 %v1140, %v1139
      %v1203 = vpack.c.b16 %v1142, %v1141
      %v1204 = vpack.c.b16 %v1144, %v1143
      %v1205 = vpack.c.b16 %v1146, %v1145
      %v1206 = vpack.c.b16 %v1148, %v1147
      %v1207 = vpack.c.b16 %v1150, %v1149
      %v1208 = vpack.c.b16 %v1152, %v1151
      %v1209 = vpack.c.b16 %v1154, %v1153
      %v1210 = vpack.c.b16 %v1156, %v1155
      %v1211 = vpack.c.b16 %v1158, %v1157
      %v1212 = vpack.c.b16 %v1160, %v1159
      %v1213 = vpack.c.b16 %v1162, %v1161
      %v1214 = vpack.c.b16 %v1164, %v1163
      %v1215 = vpack.c.b16 %v1166, %v1165
      %v1216 = vpack.c.b16 %v1168, %v1167
      %v1217 = vpack.c.b16 %v1170, %v1169
      %v1218 = vpack.c.b16 %v1172, %v1171
      %v1219 = vpack.c.b16 %v1174, %v1173
      %v1220 = vpack.c.b16 %v1176, %v1175
      %v1221 = vpack.c.b16 %v1178, %v1177
      %v1222 = vpack.c.b16 %v1180, %v1179
      %v1223 = vpack.c.b16 %v1182, %v1181
      %v1224 = vpack.c.b16 %v1184, %v1183
      %v1225 = vpack.c.b16 %v1186, %v1185
      %v1226 = vpack.c.b16 %v1188, %v1187
      %v1227 = vpack.c.b16 %v1190, %v1189
      %v1228 = vpack.c.b16 %v1192, %v1191
      %v1229 = vpack.c.b16 %v1194, %v1193
      %v1230 = vpack.c.b16 %v1196, %v1195
      %v1231 = vpack.c.b16 %v1198, %v1197
      %v1232 = vpack.c.b16 %v1200, %v1199
      %v1267 = vunpack.c.l.b16 %v518
      %v1268 = vunpack.c.l.b16 %v519
      %v1269 = vpack.c.b16 %v1268, %v1267
      %1271 = vmatprep.subr.bf16.mxu0 0
      %1272 = vmatpush1.bf16.xpose.msra.mxu0 %v1269
      %1273 = vmatprep.subr.bf16.mxu0 0
      %1274 = vmatpush1.bf16.xpose.msra.mxu0 0
      %1275 = vmatprep.subr.bf16.mxu0 0
      %1276 = vmatpush1.bf16.xpose.msra.mxu0 0
      %1277 = vmatprep.subr.bf16.mxu0 0
      %1278 = vmatpush1.bf16.xpose.msra.mxu0 0
      %1279 = vmatprep.subr.bf16.mxu0 0
      %1280 = vmatpush1.bf16.xpose.msra.mxu0 0
      %1281 = vmatprep.subr.bf16.mxu0 0
      %1282 = vmatpush1.bf16.xpose.msra.mxu0 0
      %1283 = vmatprep.subr.bf16.mxu0 0
      %1284 = vmatpush1.bf16.xpose.msra.mxu0 0
      %1285 = vmatprep.subr.bf16.mxu0 0
      %1286 = vmatpush1.bf16.xpose.msra.mxu0 0
      %1287 = vmatprep.subr.bf16.mxu0 0
      %1288 = vmatpush1.bf16.xpose.msra.mxu0 0
      %1289 = vmatprep.subr.bf16.mxu0 0
      %1290 = vmatpush1.bf16.xpose.msra.mxu0 0
      %1291 = vmatprep.subr.bf16.mxu0 0
      %1292 = vmatpush1.bf16.xpose.msra.mxu0 0
      %1293 = vmatprep.subr.bf16.mxu0 0
      %1294 = vmatpush1.bf16.xpose.msra.mxu0 0
      %1295 = vmatprep.subr.bf16.mxu0 0
      %1296 = vmatpush1.bf16.xpose.msra.mxu0 0
      %1297 = vmatprep.subr.bf16.mxu0 0
      %1298 = vmatpush1.bf16.xpose.msra.mxu0 0
      %1299 = vmatprep.subr.bf16.mxu0 0
      %1300 = vmatpush1.bf16.xpose.msra.mxu0 0
      %1301 = vmatprep.subr.bf16.mxu0 0
      %1302 = vmatpush1.bf16.xpose.msra.mxu0 0
      %1303 = vmatprep.mubr.bf16.mxu0 0
      %1304 = vmatmul.mubr.bf16.gmra.mrb[0].mxu0 %v1201
      %v1305 = vpop.f32.mrb[0].mxu0
      %v1306 = vadd.f32 %v819, %v1305
      %v1307 = vpop.f32.mrb[0].mxu0
      %v1308 = vpop.f32.mrb[0].mxu0
      %v1309 = vadd.f32 %v822, %v1308
      %v1310 = vpop.f32.mrb[0].mxu0
      %1311 = vmatprep.mubr.bf16.mxu0 0
      %1312 = vmatmul.mubr.bf16.gmra.mrb[0].mxu0 %v1202
      %v1313 = vpop.f32.mrb[0].mxu0
      %v1314 = vadd.f32 %v827, %v1313
      %v1315 = vpop.f32.mrb[0].mxu0
      %v1316 = vpop.f32.mrb[0].mxu0
      %v1317 = vadd.f32 %v830, %v1316
      %v1318 = vpop.f32.mrb[0].mxu0
      %1319 = vmatprep.mubr.bf16.mxu0 0
      %1320 = vmatmul.mubr.bf16.gmra.mrb[0].mxu0 %v1203
      %v1321 = vpop.f32.mrb[0].mxu0
      %v1322 = vadd.f32 %v835, %v1321
      %v1323 = vpop.f32.mrb[0].mxu0
      %v1324 = vpop.f32.mrb[0].mxu0
      %v1325 = vadd.f32 %v838, %v1324
      %v1326 = vpop.f32.mrb[0].mxu0
      %1327 = vmatprep.mubr.bf16.mxu0 0
      %1328 = vmatmul.mubr.bf16.gmra.mrb[0].mxu0 %v1204
      %v1329 = vpop.f32.mrb[0].mxu0
      %v1330 = vadd.f32 %v843, %v1329
      %v1331 = vpop.f32.mrb[0].mxu0
      %v1332 = vpop.f32.mrb[0].mxu0
      %v1333 = vadd.f32 %v846, %v1332
      %v1334 = vpop.f32.mrb[0].mxu0
      %1335 = vmatprep.mubr.bf16.mxu0 0
      %1336 = vmatmul.mubr.bf16.gmra.mrb[0].mxu0 %v1205
      %v1337 = vpop.f32.mrb[0].mxu0
      %v1338 = vadd.f32 %v851, %v1337
      %v1339 = vpop.f32.mrb[0].mxu0
      %v1340 = vpop.f32.mrb[0].mxu0
      %v1341 = vadd.f32 %v854, %v1340
      %v1342 = vpop.f32.mrb[0].mxu0
      %1343 = vmatprep.mubr.bf16.mxu0 0
      %1344 = vmatmul.mubr.bf16.gmra.mrb[0].mxu0 %v1206
      %v1345 = vpop.f32.mrb[0].mxu0
      %v1346 = vadd.f32 %v859, %v1345
      %v1347 = vpop.f32.mrb[0].mxu0
      %v1348 = vpop.f32.mrb[0].mxu0
      %v1349 = vadd.f32 %v862, %v1348
      %v1350 = vpop.f32.mrb[0].mxu0
      %1351 = vmatprep.mubr.bf16.mxu0 0
      %1352 = vmatmul.mubr.bf16.gmra.mrb[0].mxu0 %v1207
      %v1353 = vpop.f32.mrb[0].mxu0
      %v1354 = vadd.f32 %v867, %v1353
      %v1355 = vpop.f32.mrb[0].mxu0
      %v1356 = vpop.f32.mrb[0].mxu0
      %v1357 = vadd.f32 %v870, %v1356
      %v1358 = vpop.f32.mrb[0].mxu0
      %1359 = vmatprep.mubr.bf16.mxu0 0
      %1360 = vmatmul.mubr.bf16.gmra.mrb[0].mxu0 %v1208
      %v1361 = vpop.f32.mrb[0].mxu0
      %v1362 = vadd.f32 %v875, %v1361
      %v1363 = vpop.f32.mrb[0].mxu0
      %v1364 = vpop.f32.mrb[0].mxu0
      %v1365 = vadd.f32 %v878, %v1364
      %v1366 = vpop.f32.mrb[0].mxu0
      %1367 = vmatprep.mubr.bf16.mxu0 0
      %1368 = vmatmul.mubr.bf16.gmra.mrb[0].mxu0 %v1209
      %v1369 = vpop.f32.mrb[0].mxu0
      %v1370 = vadd.f32 %v883, %v1369
      %v1371 = vpop.f32.mrb[0].mxu0
      %v1372 = vpop.f32.mrb[0].mxu0
      %v1373 = vadd.f32 %v886, %v1372
      %v1374 = vpop.f32.mrb[0].mxu0
      %1375 = vmatprep.mubr.bf16.mxu0 0
      %1376 = vmatmul.mubr.bf16.gmra.mrb[0].mxu0 %v1210
      %v1377 = vpop.f32.mrb[0].mxu0
      %v1378 = vadd.f32 %v891, %v1377
      %v1379 = vpop.f32.mrb[0].mxu0
      %v1380 = vpop.f32.mrb[0].mxu0
      %v1381 = vadd.f32 %v894, %v1380
      %v1382 = vpop.f32.mrb[0].mxu0
      %1383 = vmatprep.mubr.bf16.mxu0 0
      %1384 = vmatmul.mubr.bf16.gmra.mrb[0].mxu0 %v1211
      %v1385 = vpop.f32.mrb[0].mxu0
      %v1386 = vadd.f32 %v899, %v1385
      %v1387 = vpop.f32.mrb[0].mxu0
      %v1388 = vpop.f32.mrb[0].mxu0
      %v1389 = vadd.f32 %v902, %v1388
      %v1390 = vpop.f32.mrb[0].mxu0
      %1391 = vmatprep.mubr.bf16.mxu0 0
      %1392 = vmatmul.mubr.bf16.gmra.mrb[0].mxu0 %v1212
      %v1393 = vpop.f32.mrb[0].mxu0
      %v1394 = vadd.f32 %v907, %v1393
      %v1395 = vpop.f32.mrb[0].mxu0
      %v1396 = vpop.f32.mrb[0].mxu0
      %v1397 = vadd.f32 %v910, %v1396
      %v1398 = vpop.f32.mrb[0].mxu0
      %1399 = vmatprep.mubr.bf16.mxu0 0
      %1400 = vmatmul.mubr.bf16.gmra.mrb[0].mxu0 %v1213
      %v1401 = vpop.f32.mrb[0].mxu0
      %v1402 = vadd.f32 %v915, %v1401
      %v1403 = vpop.f32.mrb[0].mxu0
      %v1404 = vpop.f32.mrb[0].mxu0
      %v1405 = vadd.f32 %v918, %v1404
      %v1406 = vpop.f32.mrb[0].mxu0
      %1407 = vmatprep.mubr.bf16.mxu0 0
      %1408 = vmatmul.mubr.bf16.gmra.mrb[0].mxu0 %v1214
      %v1409 = vpop.f32.mrb[0].mxu0
      %v1410 = vadd.f32 %v923, %v1409
      %v1411 = vpop.f32.mrb[0].mxu0
      %v1412 = vpop.f32.mrb[0].mxu0
      %v1413 = vadd.f32 %v926, %v1412
      %v1414 = vpop.f32.mrb[0].mxu0
      %1415 = vmatprep.mubr.bf16.mxu0 0
      %1416 = vmatmul.mubr.bf16.gmra.mrb[0].mxu0 %v1215
      %v1417 = vpop.f32.mrb[0].mxu0
      %v1418 = vadd.f32 %v931, %v1417
      %v1419 = vpop.f32.mrb[0].mxu0
      %v1420 = vpop.f32.mrb[0].mxu0
      %v1421 = vadd.f32 %v934, %v1420
      %v1422 = vpop.f32.mrb[0].mxu0
      %1423 = vmatprep.mubr.bf16.mxu0 0
      %1424 = vmatmul.mubr.bf16.gmra.mrb[0].mxu0 %v1216
      %v1425 = vpop.f32.mrb[0].mxu0
      %v1426 = vadd.f32 %v939, %v1425
      %v1427 = vpop.f32.mrb[0].mxu0
      %v1428 = vpop.f32.mrb[0].mxu0
      %v1429 = vadd.f32 %v942, %v1428
      %v1430 = vpop.f32.mrb[0].mxu0
      %1431 = vmatprep.mubr.bf16.mxu0 0
      %1432 = vmatmul.mubr.bf16.gmra.mrb[0].mxu0 %v1217
      %v1433 = vpop.f32.mrb[0].mxu0
      %v1434 = vadd.f32 %v947, %v1433
      %v1435 = vpop.f32.mrb[0].mxu0
      %v1436 = vpop.f32.mrb[0].mxu0
      %v1437 = vadd.f32 %v950, %v1436
      %v1438 = vpop.f32.mrb[0].mxu0
      %1439 = vmatprep.mubr.bf16.mxu0 0
      %1440 = vmatmul.mubr.bf16.gmra.mrb[0].mxu0 %v1218
      %v1441 = vpop.f32.mrb[0].mxu0
      %v1442 = vadd.f32 %v955, %v1441
      %v1443 = vpop.f32.mrb[0].mxu0
      %v1444 = vpop.f32.mrb[0].mxu0
      %v1445 = vadd.f32 %v958, %v1444
      %v1446 = vpop.f32.mrb[0].mxu0
      %1447 = vmatprep.mubr.bf16.mxu0 0
      %1448 = vmatmul.mubr.bf16.gmra.mrb[0].mxu0 %v1219
      %v1449 = vpop.f32.mrb[0].mxu0
      %v1450 = vadd.f32 %v963, %v1449
      %v1451 = vpop.f32.mrb[0].mxu0
      %v1452 = vpop.f32.mrb[0].mxu0
      %v1453 = vadd.f32 %v966, %v1452
      %v1454 = vpop.f32.mrb[0].mxu0
      %1455 = vmatprep.mubr.bf16.mxu0 0
      %1456 = vmatmul.mubr.bf16.gmra.mrb[0].mxu0 %v1220
      %v1457 = vpop.f32.mrb[0].mxu0
      %v1458 = vadd.f32 %v971, %v1457
      %v1459 = vpop.f32.mrb[0].mxu0
      %v1460 = vpop.f32.mrb[0].mxu0
      %v1461 = vadd.f32 %v974, %v1460
      %v1462 = vpop.f32.mrb[0].mxu0
      %1463 = vmatprep.mubr.bf16.mxu0 0
      %1464 = vmatmul.mubr.bf16.gmra.mrb[0].mxu0 %v1221
      %v1465 = vpop.f32.mrb[0].mxu0
      %v1466 = vadd.f32 %v979, %v1465
      %v1467 = vpop.f32.mrb[0].mxu0
      %v1468 = vpop.f32.mrb[0].mxu0
      %v1469 = vadd.f32 %v982, %v1468
      %v1470 = vpop.f32.mrb[0].mxu0
      %1471 = vmatprep.mubr.bf16.mxu0 0
      %1472 = vmatmul.mubr.bf16.gmra.mrb[0].mxu0 %v1222
      %v1473 = vpop.f32.mrb[0].mxu0
      %v1474 = vadd.f32 %v987, %v1473
      %v1475 = vpop.f32.mrb[0].mxu0
      %v1476 = vpop.f32.mrb[0].mxu0
      %v1477 = vadd.f32 %v990, %v1476
      %v1478 = vpop.f32.mrb[0].mxu0
      %1479 = vmatprep.mubr.bf16.mxu0 0
      %1480 = vmatmul.mubr.bf16.gmra.mrb[0].mxu0 %v1223
      %v1481 = vpop.f32.mrb[0].mxu0
      %v1482 = vadd.f32 %v995, %v1481
      %v1483 = vpop.f32.mrb[0].mxu0
      %v1484 = vpop.f32.mrb[0].mxu0
      %v1485 = vadd.f32 %v998, %v1484
      %v1486 = vpop.f32.mrb[0].mxu0
      %1487 = vmatprep.mubr.bf16.mxu0 0
      %1488 = vmatmul.mubr.bf16.gmra.mrb[0].mxu0 %v1224
      %v1489 = vpop.f32.mrb[0].mxu0
      %v1490 = vadd.f32 %v1003, %v1489
      %v1491 = vpop.f32.mrb[0].mxu0
      %v1492 = vpop.f32.mrb[0].mxu0
      %v1493 = vadd.f32 %v1006, %v1492
      %v1494 = vpop.f32.mrb[0].mxu0
      %1495 = vmatprep.mubr.bf16.mxu0 0
      %1496 = vmatmul.mubr.bf16.gmra.mrb[0].mxu0 %v1225
      %v1497 = vpop.f32.mrb[0].mxu0
      %v1498 = vadd.f32 %v1011, %v1497
      %v1499 = vpop.f32.mrb[0].mxu0
      %v1500 = vpop.f32.mrb[0].mxu0
      %v1501 = vadd.f32 %v1014, %v1500
      %v1502 = vpop.f32.mrb[0].mxu0
      %1503 = vmatprep.mubr.bf16.mxu0 0
      %1504 = vmatmul.mubr.bf16.gmra.mrb[0].mxu0 %v1226
      %v1505 = vpop.f32.mrb[0].mxu0
      %v1506 = vadd.f32 %v1019, %v1505
      %v1507 = vpop.f32.mrb[0].mxu0
      %v1508 = vpop.f32.mrb[0].mxu0
      %v1509 = vadd.f32 %v1022, %v1508
      %v1510 = vpop.f32.mrb[0].mxu0
      %1511 = vmatprep.mubr.bf16.mxu0 0
      %1512 = vmatmul.mubr.bf16.gmra.mrb[0].mxu0 %v1227
      %v1513 = vpop.f32.mrb[0].mxu0
      %v1514 = vadd.f32 %v1027, %v1513
      %v1515 = vpop.f32.mrb[0].mxu0
      %v1516 = vpop.f32.mrb[0].mxu0
      %v1517 = vadd.f32 %v1030, %v1516
      %v1518 = vpop.f32.mrb[0].mxu0
      %1519 = vmatprep.mubr.bf16.mxu0 0
      %1520 = vmatmul.mubr.bf16.gmra.mrb[0].mxu0 %v1228
      %v1521 = vpop.f32.mrb[0].mxu0
      %v1522 = vadd.f32 %v1035, %v1521
      %v1523 = vpop.f32.mrb[0].mxu0
      %v1524 = vpop.f32.mrb[0].mxu0
      %v1525 = vadd.f32 %v1038, %v1524
      %v1526 = vpop.f32.mrb[0].mxu0
      %1527 = vmatprep.mubr.bf16.mxu0 0
      %1528 = vmatmul.mubr.bf16.gmra.mrb[0].mxu0 %v1229
      %v1529 = vpop.f32.mrb[0].mxu0
      %v1530 = vadd.f32 %v1043, %v1529
      %v1531 = vpop.f32.mrb[0].mxu0
      %v1532 = vpop.f32.mrb[0].mxu0
      %v1533 = vadd.f32 %v1046, %v1532
      %v1534 = vpop.f32.mrb[0].mxu0
      %1535 = vmatprep.mubr.bf16.mxu0 0
      %1536 = vmatmul.mubr.bf16.gmra.mrb[0].mxu0 %v1230
      %v1537 = vpop.f32.mrb[0].mxu0
      %v1538 = vadd.f32 %v1051, %v1537
      %v1539 = vpop.f32.mrb[0].mxu0
      %v1540 = vpop.f32.mrb[0].mxu0
      %v1541 = vadd.f32 %v1054, %v1540
      %v1542 = vpop.f32.mrb[0].mxu0
      %1543 = vmatprep.mubr.bf16.mxu0 0
      %1544 = vmatmul.mubr.bf16.gmra.mrb[0].mxu0 %v1231
      %v1545 = vpop.f32.mrb[0].mxu0
      %v1546 = vadd.f32 %v1059, %v1545
      %v1547 = vpop.f32.mrb[0].mxu0
      %v1548 = vpop.f32.mrb[0].mxu0
      %v1549 = vadd.f32 %v1062, %v1548
      %v1550 = vpop.f32.mrb[0].mxu0
      %1551 = vmatprep.mubr.bf16.mxu0 0
      %1552 = vmatmul.mubr.bf16.gmra.mrb[0].mxu0 %v1232
      %v1553 = vpop.f32.mrb[0].mxu0
      %v1554 = vadd.f32 %v1067, %v1553
      %v1555 = vpop.f32.mrb[0].mxu0
      %v1556 = vpop.f32.mrb[0].mxu0
      %v1557 = vadd.f32 %v1070, %v1556
      %v1558 = vpop.f32.mrb[0].mxu0
      %1559 = vdwg.mxu0
      %v1560 = vld [vmem:[%s6] sm:$0xf]
      %v1561 = vld [vmem:[%s6 + $0x4] sm:$0xf]
      %v1562 = vld [vmem:[%s6 + $0x8] sm:$0xf]
      %v1563 = vld [vmem:[%s6 + $0xc] sm:$0xf]
      %v1564 = vld [vmem:[%s6 + $0x10] sm:$0xf]
      %v1565 = vld [vmem:[%s6 + $0x14] sm:$0xf]
      %v1566 = vld [vmem:[%s6 + $0x18] sm:$0xf]
      %v1567 = vld [vmem:[%s6 + $0x1c] sm:$0xf]
      %v1568 = vld [vmem:[%s6 + $0x20] sm:$0xf]
      %v1569 = vld [vmem:[%s6 + $0x24] sm:$0xf]
      %v1570 = vld [vmem:[%s6 + $0x28] sm:$0xf]
      %v1571 = vld [vmem:[%s6 + $0x2c] sm:$0xf]
      %v1572 = vld [vmem:[%s6 + $0x30] sm:$0xf]
      %v1573 = vld [vmem:[%s6 + $0x34] sm:$0xf]
      %v1574 = vld [vmem:[%s6 + $0x38] sm:$0xf]
      %v1575 = vld [vmem:[%s6 + $0x3c] sm:$0xf]
      %v1576 = vld [vmem:[%s6 + $0x40] sm:$0xf]
      %v1577 = vld [vmem:[%s6 + $0x44] sm:$0xf]
      %v1578 = vld [vmem:[%s6 + $0x48] sm:$0xf]
      %v1579 = vld [vmem:[%s6 + $0x4c] sm:$0xf]
      %v1580 = vld [vmem:[%s6 + $0x50] sm:$0xf]
      %v1581 = vld [vmem:[%s6 + $0x54] sm:$0xf]
      %v1582 = vld [vmem:[%s6 + $0x58] sm:$0xf]
      %v1583 = vld [vmem:[%s6 + $0x5c] sm:$0xf]
      %v1584 = vld [vmem:[%s6 + $0x60] sm:$0xf]
      %v1585 = vld [vmem:[%s6 + $0x64] sm:$0xf]
      %v1586 = vld [vmem:[%s6 + $0x68] sm:$0xf]
      %v1587 = vld [vmem:[%s6 + $0x6c] sm:$0xf]
      %v1588 = vld [vmem:[%s6 + $0x70] sm:$0xf]
      %v1589 = vld [vmem:[%s6 + $0x74] sm:$0xf]
      %v1590 = vld [vmem:[%s6 + $0x78] sm:$0xf]
      %v1591 = vld [vmem:[%s6 + $0x7c] sm:$0xf]
      %v1592 = vld [vmem:[%s6 + $0x80] sm:$0xf]
      %v1593 = vld [vmem:[%s6 + $0x84] sm:$0xf]
      %v1594 = vld [vmem:[%s6 + $0x88] sm:$0xf]
      %v1595 = vld [vmem:[%s6 + $0x8c] sm:$0xf]
      %v1596 = vld [vmem:[%s6 + $0x90] sm:$0xf]
      %v1597 = vld [vmem:[%s6 + $0x94] sm:$0xf]
      %v1598 = vld [vmem:[%s6 + $0x98] sm:$0xf]
      %v1599 = vld [vmem:[%s6 + $0x9c] sm:$0xf]
      %v1600 = vld [vmem:[%s6 + $0xa0] sm:$0xf]
      %v1601 = vld [vmem:[%s6 + $0xa4] sm:$0xf]
      %v1602 = vld [vmem:[%s6 + $0xa8] sm:$0xf]
      %v1603 = vld [vmem:[%s6 + $0xac] sm:$0xf]
      %v1604 = vld [vmem:[%s6 + $0xb0] sm:$0xf]
      %v1605 = vld [vmem:[%s6 + $0xb4] sm:$0xf]
      %v1606 = vld [vmem:[%s6 + $0xb8] sm:$0xf]
      %v1607 = vld [vmem:[%s6 + $0xbc] sm:$0xf]
      %v1608 = vld [vmem:[%s6 + $0xc0] sm:$0xf]
      %v1609 = vld [vmem:[%s6 + $0xc4] sm:$0xf]
      %v1610 = vld [vmem:[%s6 + $0xc8] sm:$0xf]
      %v1611 = vld [vmem:[%s6 + $0xcc] sm:$0xf]
      %v1612 = vld [vmem:[%s6 + $0xd0] sm:$0xf]
      %v1613 = vld [vmem:[%s6 + $0xd4] sm:$0xf]
      %v1614 = vld [vmem:[%s6 + $0xd8] sm:$0xf]
      %v1615 = vld [vmem:[%s6 + $0xdc] sm:$0xf]
      %v1616 = vld [vmem:[%s6 + $0xe0] sm:$0xf]
      %v1617 = vld [vmem:[%s6 + $0xe4] sm:$0xf]
      %v1618 = vld [vmem:[%s6 + $0xe8] sm:$0xf]
      %v1619 = vld [vmem:[%s6 + $0xec] sm:$0xf]
      %v1620 = vld [vmem:[%s6 + $0xf0] sm:$0xf]
      %v1621 = vld [vmem:[%s6 + $0xf4] sm:$0xf]
      %v1622 = vld [vmem:[%s6 + $0xf8] sm:$0xf]
      %v1623 = vld [vmem:[%s6 + $0xfc] sm:$0xf]
      %v1624 = vld [vmem:[%s432] sm:$0xf]
      %v1625 = vld [vmem:[%s432 + $0x4] sm:$0xf]
      %v1690 = vunpack.c.l.b16 %v1560
      %v1691 = vunpack.c.l.b16 %v1561
      %v1692 = vunpack.c.l.b16 %v1562
      %v1693 = vunpack.c.l.b16 %v1563
      %v1694 = vunpack.c.l.b16 %v1564
      %v1695 = vunpack.c.l.b16 %v1565
      %v1696 = vunpack.c.l.b16 %v1566
      %v1697 = vunpack.c.l.b16 %v1567
      %v1698 = vunpack.c.l.b16 %v1568
      %v1699 = vunpack.c.l.b16 %v1569
      %v1700 = vunpack.c.l.b16 %v1570
      %v1701 = vunpack.c.l.b16 %v1571
      %v1702 = vunpack.c.l.b16 %v1572
      %v1703 = vunpack.c.l.b16 %v1573
      %v1704 = vunpack.c.l.b16 %v1574
      %v1705 = vunpack.c.l.b16 %v1575
      %v1706 = vunpack.c.l.b16 %v1576
      %v1707 = vunpack.c.l.b16 %v1577
      %v1708 = vunpack.c.l.b16 %v1578
      %v1709 = vunpack.c.l.b16 %v1579
      %v1710 = vunpack.c.l.b16 %v1580
      %v1711 = vunpack.c.l.b16 %v1581
      %v1712 = vunpack.c.l.b16 %v1582
      %v1713 = vunpack.c.l.b16 %v1583
      %v1714 = vunpack.c.l.b16 %v1584
      %v1715 = vunpack.c.l.b16 %v1585
      %v1716 = vunpack.c.l.b16 %v1586
      %v1717 = vunpack.c.l.b16 %v1587
      %v1718 = vunpack.c.l.b16 %v1588
      %v1719 = vunpack.c.l.b16 %v1589
      %v1720 = vunpack.c.l.b16 %v1590
      %v1721 = vunpack.c.l.b16 %v1591
      %v1722 = vunpack.c.l.b16 %v1592
      %v1723 = vunpack.c.l.b16 %v1593
      %v1724 = vunpack.c.l.b16 %v1594
      %v1725 = vunpack.c.l.b16 %v1595
      %v1726 = vunpack.c.l.b16 %v1596
      %v1727 = vunpack.c.l.b16 %v1597
      %v1728 = vunpack.c.l.b16 %v1598
      %v1729 = vunpack.c.l.b16 %v1599
      %v1730 = vunpack.c.l.b16 %v1600
      %v1731 = vunpack.c.l.b16 %v1601
      %v1732 = vunpack.c.l.b16 %v1602
      %v1733 = vunpack.c.l.b16 %v1603
      %v1734 = vunpack.c.l.b16 %v1604
      %v1735 = vunpack.c.l.b16 %v1605
      %v1736 = vunpack.c.l.b16 %v1606
      %v1737 = vunpack.c.l.b16 %v1607
      %v1738 = vunpack.c.l.b16 %v1608
      %v1739 = vunpack.c.l.b16 %v1609
      %v1740 = vunpack.c.l.b16 %v1610
      %v1741 = vunpack.c.l.b16 %v1611
      %v1742 = vunpack.c.l.b16 %v1612
      %v1743 = vunpack.c.l.b16 %v1613
      %v1744 = vunpack.c.l.b16 %v1614
      %v1745 = vunpack.c.l.b16 %v1615
      %v1746 = vunpack.c.l.b16 %v1616
      %v1747 = vunpack.c.l.b16 %v1617
      %v1748 = vunpack.c.l.b16 %v1618
      %v1749 = vunpack.c.l.b16 %v1619
      %v1750 = vunpack.c.l.b16 %v1620
      %v1751 = vunpack.c.l.b16 %v1621
      %v1752 = vunpack.c.l.b16 %v1622
      %v1753 = vunpack.c.l.b16 %v1623
      %v1754 = vpack.c.b16 %v1691, %v1690
      %v1755 = vpack.c.b16 %v1693, %v1692
      %v1756 = vpack.c.b16 %v1695, %v1694
      %v1757 = vpack.c.b16 %v1697, %v1696
      %v1758 = vpack.c.b16 %v1699, %v1698
      %v1759 = vpack.c.b16 %v1701, %v1700
      %v1760 = vpack.c.b16 %v1703, %v1702
      %v1761 = vpack.c.b16 %v1705, %v1704
      %v1762 = vpack.c.b16 %v1707, %v1706
      %v1763 = vpack.c.b16 %v1709, %v1708
      %v1764 = vpack.c.b16 %v1711, %v1710
      %v1765 = vpack.c.b16 %v1713, %v1712
      %v1766 = vpack.c.b16 %v1715, %v1714
      %v1767 = vpack.c.b16 %v1717, %v1716
      %v1768 = vpack.c.b16 %v1719, %v1718
      %v1769 = vpack.c.b16 %v1721, %v1720
      %v1770 = vpack.c.b16 %v1723, %v1722
      %v1771 = vpack.c.b16 %v1725, %v1724
      %v1772 = vpack.c.b16 %v1727, %v1726
      %v1773 = vpack.c.b16 %v1729, %v1728
      %v1774 = vpack.c.b16 %v1731, %v1730
      %v1775 = vpack.c.b16 %v1733, %v1732
      %v1776 = vpack.c.b16 %v1735, %v1734
      %v1777 = vpack.c.b16 %v1737, %v1736
      %v1778 = vpack.c.b16 %v1739, %v1738
      %v1779 = vpack.c.b16 %v1741, %v1740
      %v1780 = vpack.c.b16 %v1743, %v1742
      %v1781 = vpack.c.b16 %v1745, %v1744
      %v1782 = vpack.c.b16 %v1747, %v1746
      %v1783 = vpack.c.b16 %v1749, %v1748
      %v1784 = vpack.c.b16 %v1751, %v1750
      %v1785 = vpack.c.b16 %v1753, %v1752
      %v1820 = vunpack.c.l.b16 %v1624
      %v1821 = vunpack.c.l.b16 %v1625
      %v1822 = vpack.c.b16 %v1821, %v1820
      %1824 = vmatprep.subr.bf16.mxu0 0
      %1825 = vmatpush1.bf16.xpose.msra.mxu0 %v1822
      %1826 = vmatprep.subr.bf16.mxu0 0
      %1827 = vmatpush1.bf16.xpose.msra.mxu0 0
      %1828 = vmatprep.subr.bf16.mxu0 0
      %1829 = vmatpush1.bf16.xpose.msra.mxu0 0
      %1830 = vmatprep.subr.bf16.mxu0 0
      %1831 = vmatpush1.bf16.xpose.msra.mxu0 0
      %1832 = vmatprep.subr.bf16.mxu0 0
      %1833 = vmatpush1.bf16.xpose.msra.mxu0 0
      %1834 = vmatprep.subr.bf16.mxu0 0
      %1835 = vmatpush1.bf16.xpose.msra.mxu0 0
      %1836 = vmatprep.subr.bf16.mxu0 0
      %1837 = vmatpush1.bf16.xpose.msra.mxu0 0
      %1838 = vmatprep.subr.bf16.mxu0 0
      %1839 = vmatpush1.bf16.xpose.msra.mxu0 0
      %1840 = vmatprep.subr.bf16.mxu0 0
      %1841 = vmatpush1.bf16.xpose.msra.mxu0 0
      %1842 = vmatprep.subr.bf16.mxu0 0
      %1843 = vmatpush1.bf16.xpose.msra.mxu0 0
      %1844 = vmatprep.subr.bf16.mxu0 0
      %1845 = vmatpush1.bf16.xpose.msra.mxu0 0
      %1846 = vmatprep.subr.bf16.mxu0 0
      %1847 = vmatpush1.bf16.xpose.msra.mxu0 0
      %1848 = vmatprep.subr.bf16.mxu0 0
      %1849 = vmatpush1.bf16.xpose.msra.mxu0 0
      %1850 = vmatprep.subr.bf16.mxu0 0
      %1851 = vmatpush1.bf16.xpose.msra.mxu0 0
      %1852 = vmatprep.subr.bf16.mxu0 0
      %1853 = vmatpush1.bf16.xpose.msra.mxu0 0
      %1854 = vmatprep.subr.bf16.mxu0 0
      %1855 = vmatpush1.bf16.xpose.msra.mxu0 0
      %1856 = vmatprep.mubr.bf16.mxu0 0
      %1857 = vmatmul.mubr.bf16.gmra.mrb[0].mxu0 %v1754
      %v1858 = vpop.f32.mrb[0].mxu0
      %v1859 = vadd.f32 0.0, %v1858
      %v1860 = vpop.f32.mrb[0].mxu0
      %v1861 = vpop.f32.mrb[0].mxu0
      %v1862 = vadd.f32 0.0, %v1861
      %v1863 = vpop.f32.mrb[0].mxu0
      %1864 = vmatprep.mubr.bf16.mxu0 0
      %1865 = vmatmul.mubr.bf16.gmra.mrb[0].mxu0 %v1755
      %v1866 = vpop.f32.mrb[0].mxu0
      %v1867 = vadd.f32 0.0, %v1866
      %v1868 = vpop.f32.mrb[0].mxu0
      %v1869 = vpop.f32.mrb[0].mxu0
      %v1870 = vadd.f32 0.0, %v1869
      %v1871 = vpop.f32.mrb[0].mxu0
      %1872 = vmatprep.mubr.bf16.mxu0 0
      %1873 = vmatmul.mubr.bf16.gmra.mrb[0].mxu0 %v1756
      %v1874 = vpop.f32.mrb[0].mxu0
      %v1875 = vadd.f32 0.0, %v1874
      %v1876 = vpop.f32.mrb[0].mxu0
      %v1877 = vpop.f32.mrb[0].mxu0
      %v1878 = vadd.f32 0.0, %v1877
      %v1879 = vpop.f32.mrb[0].mxu0
      %1880 = vmatprep.mubr.bf16.mxu0 0
      %1881 = vmatmul.mubr.bf16.gmra.mrb[0].mxu0 %v1757
      %v1882 = vpop.f32.mrb[0].mxu0
      %v1883 = vadd.f32 0.0, %v1882
      %v1884 = vpop.f32.mrb[0].mxu0
      %v1885 = vpop.f32.mrb[0].mxu0
      %v1886 = vadd.f32 0.0, %v1885
      %v1887 = vpop.f32.mrb[0].mxu0
      %1888 = vmatprep.mubr.bf16.mxu0 0
      %1889 = vmatmul.mubr.bf16.gmra.mrb[0].mxu0 %v1758
      %v1890 = vpop.f32.mrb[0].mxu0
      %v1891 = vadd.f32 0.0, %v1890
      %v1892 = vpop.f32.mrb[0].mxu0
      %v1893 = vpop.f32.mrb[0].mxu0
      %v1894 = vadd.f32 0.0, %v1893
      %v1895 = vpop.f32.mrb[0].mxu0
      %1896 = vmatprep.mubr.bf16.mxu0 0
      %1897 = vmatmul.mubr.bf16.gmra.mrb[0].mxu0 %v1759
      %v1898 = vpop.f32.mrb[0].mxu0
      %v1899 = vadd.f32 0.0, %v1898
      %v1900 = vpop.f32.mrb[0].mxu0
      %v1901 = vpop.f32.mrb[0].mxu0
      %v1902 = vadd.f32 0.0, %v1901
      %v1903 = vpop.f32.mrb[0].mxu0
      %1904 = vmatprep.mubr.bf16.mxu0 0
      %1905 = vmatmul.mubr.bf16.gmra.mrb[0].mxu0 %v1760
      %v1906 = vpop.f32.mrb[0].mxu0
      %v1907 = vadd.f32 0.0, %v1906
      %v1908 = vpop.f32.mrb[0].mxu0
      %v1909 = vpop.f32.mrb[0].mxu0
      %v1910 = vadd.f32 0.0, %v1909
      %v1911 = vpop.f32.mrb[0].mxu0
      %1912 = vmatprep.mubr.bf16.mxu0 0
      %1913 = vmatmul.mubr.bf16.gmra.mrb[0].mxu0 %v1761
      %v1914 = vpop.f32.mrb[0].mxu0
      %v1915 = vadd.f32 0.0, %v1914
      %v1916 = vpop.f32.mrb[0].mxu0
      %v1917 = vpop.f32.mrb[0].mxu0
      %v1918 = vadd.f32 0.0, %v1917
      %v1919 = vpop.f32.mrb[0].mxu0
      %1920 = vmatprep.mubr.bf16.mxu0 0
      %1921 = vmatmul.mubr.bf16.gmra.mrb[0].mxu0 %v1762
      %v1922 = vpop.f32.mrb[0].mxu0
      %v1923 = vadd.f32 0.0, %v1922
      %v1924 = vpop.f32.mrb[0].mxu0
      %v1925 = vpop.f32.mrb[0].mxu0
      %v1926 = vadd.f32 0.0, %v1925
      %v1927 = vpop.f32.mrb[0].mxu0
      %1928 = vmatprep.mubr.bf16.mxu0 0
      %1929 = vmatmul.mubr.bf16.gmra.mrb[0].mxu0 %v1763
      %v1930 = vpop.f32.mrb[0].mxu0
      %v1931 = vadd.f32 0.0, %v1930
      %v1932 = vpop.f32.mrb[0].mxu0
      %v1933 = vpop.f32.mrb[0].mxu0
      %v1934 = vadd.f32 0.0, %v1933
      %v1935 = vpop.f32.mrb[0].mxu0
      %1936 = vmatprep.mubr.bf16.mxu0 0
      %1937 = vmatmul.mubr.bf16.gmra.mrb[0].mxu0 %v1764
      %v1938 = vpop.f32.mrb[0].mxu0
      %v1939 = vadd.f32 0.0, %v1938
      %v1940 = vpop.f32.mrb[0].mxu0
      %v1941 = vpop.f32.mrb[0].mxu0
      %v1942 = vadd.f32 0.0, %v1941
      %v1943 = vpop.f32.mrb[0].mxu0
      %1944 = vmatprep.mubr.bf16.mxu0 0
      %1945 = vmatmul.mubr.bf16.gmra.mrb[0].mxu0 %v1765
      %v1946 = vpop.f32.mrb[0].mxu0
      %v1947 = vadd.f32 0.0, %v1946
      %v1948 = vpop.f32.mrb[0].mxu0
      %v1949 = vpop.f32.mrb[0].mxu0
      %v1950 = vadd.f32 0.0, %v1949
      %v1951 = vpop.f32.mrb[0].mxu0
      %1952 = vmatprep.mubr.bf16.mxu0 0
      %1953 = vmatmul.mubr.bf16.gmra.mrb[0].mxu0 %v1766
      %v1954 = vpop.f32.mrb[0].mxu0
      %v1955 = vadd.f32 0.0, %v1954
      %v1956 = vpop.f32.mrb[0].mxu0
      %v1957 = vpop.f32.mrb[0].mxu0
      %v1958 = vadd.f32 0.0, %v1957
      %v1959 = vpop.f32.mrb[0].mxu0
      %1960 = vmatprep.mubr.bf16.mxu0 0
      %1961 = vmatmul.mubr.bf16.gmra.mrb[0].mxu0 %v1767
      %v1962 = vpop.f32.mrb[0].mxu0
      %v1963 = vadd.f32 0.0, %v1962
      %v1964 = vpop.f32.mrb[0].mxu0
      %v1965 = vpop.f32.mrb[0].mxu0
      %v1966 = vadd.f32 0.0, %v1965
      %v1967 = vpop.f32.mrb[0].mxu0
      %1968 = vmatprep.mubr.bf16.mxu0 0
      %1969 = vmatmul.mubr.bf16.gmra.mrb[0].mxu0 %v1768
      %v1970 = vpop.f32.mrb[0].mxu0
      %v1971 = vadd.f32 0.0, %v1970
      %v1972 = vpop.f32.mrb[0].mxu0
      %v1973 = vpop.f32.mrb[0].mxu0
      %v1974 = vadd.f32 0.0, %v1973
      %v1975 = vpop.f32.mrb[0].mxu0
      %1976 = vmatprep.mubr.bf16.mxu0 0
      %1977 = vmatmul.mubr.bf16.gmra.mrb[0].mxu0 %v1769
      %v1978 = vpop.f32.mrb[0].mxu0
      %v1979 = vadd.f32 0.0, %v1978
      %v1980 = vpop.f32.mrb[0].mxu0
      %v1981 = vpop.f32.mrb[0].mxu0
      %v1982 = vadd.f32 0.0, %v1981
      %v1983 = vpop.f32.mrb[0].mxu0
      %1984 = vmatprep.mubr.bf16.mxu0 0
      %1985 = vmatmul.mubr.bf16.gmra.mrb[0].mxu0 %v1770
      %v1986 = vpop.f32.mrb[0].mxu0
      %v1987 = vadd.f32 0.0, %v1986
      %v1988 = vpop.f32.mrb[0].mxu0
      %v1989 = vpop.f32.mrb[0].mxu0
      %v1990 = vadd.f32 0.0, %v1989
      %v1991 = vpop.f32.mrb[0].mxu0
      %1992 = vmatprep.mubr.bf16.mxu0 0
      %1993 = vmatmul.mubr.bf16.gmra.mrb[0].mxu0 %v1771
      %v1994 = vpop.f32.mrb[0].mxu0
      %v1995 = vadd.f32 0.0, %v1994
      %v1996 = vpop.f32.mrb[0].mxu0
      %v1997 = vpop.f32.mrb[0].mxu0
      %v1998 = vadd.f32 0.0, %v1997
      %v1999 = vpop.f32.mrb[0].mxu0
      %2000 = vmatprep.mubr.bf16.mxu0 0
      %2001 = vmatmul.mubr.bf16.gmra.mrb[0].mxu0 %v1772
      %v2002 = vpop.f32.mrb[0].mxu0
      %v2003 = vadd.f32 0.0, %v2002
      %v2004 = vpop.f32.mrb[0].mxu0
      %v2005 = vpop.f32.mrb[0].mxu0
      %v2006 = vadd.f32 0.0, %v2005
      %v2007 = vpop.f32.mrb[0].mxu0
      %2008 = vmatprep.mubr.bf16.mxu0 0
      %2009 = vmatmul.mubr.bf16.gmra.mrb[0].mxu0 %v1773
      %v2010 = vpop.f32.mrb[0].mxu0
      %v2011 = vadd.f32 0.0, %v2010
      %v2012 = vpop.f32.mrb[0].mxu0
      %v2013 = vpop.f32.mrb[0].mxu0
      %v2014 = vadd.f32 0.0, %v2013
      %v2015 = vpop.f32.mrb[0].mxu0
      %2016 = vmatprep.mubr.bf16.mxu0 0
      %2017 = vmatmul.mubr.bf16.gmra.mrb[0].mxu0 %v1774
      %v2018 = vpop.f32.mrb[0].mxu0
      %v2019 = vadd.f32 0.0, %v2018
      %v2020 = vpop.f32.mrb[0].mxu0
      %v2021 = vpop.f32.mrb[0].mxu0
      %v2022 = vadd.f32 0.0, %v2021
      %v2023 = vpop.f32.mrb[0].mxu0
      %2024 = vmatprep.mubr.bf16.mxu0 0
      %2025 = vmatmul.mubr.bf16.gmra.mrb[0].mxu0 %v1775
      %v2026 = vpop.f32.mrb[0].mxu0
      %v2027 = vadd.f32 0.0, %v2026
      %v2028 = vpop.f32.mrb[0].mxu0
      %v2029 = vpop.f32.mrb[0].mxu0
      %v2030 = vadd.f32 0.0, %v2029
      %v2031 = vpop.f32.mrb[0].mxu0
      %2032 = vmatprep.mubr.bf16.mxu0 0
      %2033 = vmatmul.mubr.bf16.gmra.mrb[0].mxu0 %v1776
      %v2034 = vpop.f32.mrb[0].mxu0
      %v2035 = vadd.f32 0.0, %v2034
      %v2036 = vpop.f32.mrb[0].mxu0
      %v2037 = vpop.f32.mrb[0].mxu0
      %v2038 = vadd.f32 0.0, %v2037
      %v2039 = vpop.f32.mrb[0].mxu0
      %2040 = vmatprep.mubr.bf16.mxu0 0
      %2041 = vmatmul.mubr.bf16.gmra.mrb[0].mxu0 %v1777
      %v2042 = vpop.f32.mrb[0].mxu0
      %v2043 = vadd.f32 0.0, %v2042
      %v2044 = vpop.f32.mrb[0].mxu0
      %v2045 = vpop.f32.mrb[0].mxu0
      %v2046 = vadd.f32 0.0, %v2045
      %v2047 = vpop.f32.mrb[0].mxu0
      %2048 = vmatprep.mubr.bf16.mxu0 0
      %2049 = vmatmul.mubr.bf16.gmra.mrb[0].mxu0 %v1778
      %v2050 = vpop.f32.mrb[0].mxu0
      %v2051 = vadd.f32 0.0, %v2050
      %v2052 = vpop.f32.mrb[0].mxu0
      %v2053 = vpop.f32.mrb[0].mxu0
      %v2054 = vadd.f32 0.0, %v2053
      %v2055 = vpop.f32.mrb[0].mxu0
      %2056 = vmatprep.mubr.bf16.mxu0 0
      %2057 = vmatmul.mubr.bf16.gmra.mrb[0].mxu0 %v1779
      %v2058 = vpop.f32.mrb[0].mxu0
      %v2059 = vadd.f32 0.0, %v2058
      %v2060 = vpop.f32.mrb[0].mxu0
      %v2061 = vpop.f32.mrb[0].mxu0
      %v2062 = vadd.f32 0.0, %v2061
      %v2063 = vpop.f32.mrb[0].mxu0
      %2064 = vmatprep.mubr.bf16.mxu0 0
      %2065 = vmatmul.mubr.bf16.gmra.mrb[0].mxu0 %v1780
      %v2066 = vpop.f32.mrb[0].mxu0
      %v2067 = vadd.f32 0.0, %v2066
      %v2068 = vpop.f32.mrb[0].mxu0
      %v2069 = vpop.f32.mrb[0].mxu0
      %v2070 = vadd.f32 0.0, %v2069
      %v2071 = vpop.f32.mrb[0].mxu0
      %2072 = vmatprep.mubr.bf16.mxu0 0
      %2073 = vmatmul.mubr.bf16.gmra.mrb[0].mxu0 %v1781
      %v2074 = vpop.f32.mrb[0].mxu0
      %v2075 = vadd.f32 0.0, %v2074
      %v2076 = vpop.f32.mrb[0].mxu0
      %v2077 = vpop.f32.mrb[0].mxu0
      %v2078 = vadd.f32 0.0, %v2077
      %v2079 = vpop.f32.mrb[0].mxu0
      %2080 = vmatprep.mubr.bf16.mxu0 0
      %2081 = vmatmul.mubr.bf16.gmra.mrb[0].mxu0 %v1782
      %v2082 = vpop.f32.mrb[0].mxu0
      %v2083 = vadd.f32 0.0, %v2082
      %v2084 = vpop.f32.mrb[0].mxu0
      %v2085 = vpop.f32.mrb[0].mxu0
      %v2086 = vadd.f32 0.0, %v2085
      %v2087 = vpop.f32.mrb[0].mxu0
      %2088 = vmatprep.mubr.bf16.mxu0 0
      %2089 = vmatmul.mubr.bf16.gmra.mrb[0].mxu0 %v1783
      %v2090 = vpop.f32.mrb[0].mxu0
      %v2091 = vadd.f32 0.0, %v2090
      %v2092 = vpop.f32.mrb[0].mxu0
      %v2093 = vpop.f32.mrb[0].mxu0
      %v2094 = vadd.f32 0.0, %v2093
      %v2095 = vpop.f32.mrb[0].mxu0
      %2096 = vmatprep.mubr.bf16.mxu0 0
      %2097 = vmatmul.mubr.bf16.gmra.mrb[0].mxu0 %v1784
      %v2098 = vpop.f32.mrb[0].mxu0
      %v2099 = vadd.f32 0.0, %v2098
      %v2100 = vpop.f32.mrb[0].mxu0
      %v2101 = vpop.f32.mrb[0].mxu0
      %v2102 = vadd.f32 0.0, %v2101
      %v2103 = vpop.f32.mrb[0].mxu0
      %2104 = vmatprep.mubr.bf16.mxu0 0
      %2105 = vmatmul.mubr.bf16.gmra.mrb[0].mxu0 %v1785
      %v2106 = vpop.f32.mrb[0].mxu0
      %v2107 = vadd.f32 0.0, %v2106
      %v2108 = vpop.f32.mrb[0].mxu0
      %v2109 = vpop.f32.mrb[0].mxu0
      %v2110 = vadd.f32 0.0, %v2109
      %v2111 = vpop.f32.mrb[0].mxu0
      %2112 = vdwg.mxu0
      %v2113 = vadd.f32 %v1306, %v1859
      %v2114 = vadd.f32 %v1309, %v1862
      %v2115 = vadd.f32 %v1314, %v1867
      %v2116 = vadd.f32 %v1317, %v1870
      %v2117 = vadd.f32 %v1322, %v1875
      %v2118 = vadd.f32 %v1325, %v1878
      %v2119 = vadd.f32 %v1330, %v1883
      %v2120 = vadd.f32 %v1333, %v1886
      %v2121 = vadd.f32 %v1338, %v1891
      %v2122 = vadd.f32 %v1341, %v1894
      %v2123 = vadd.f32 %v1346, %v1899
      %v2124 = vadd.f32 %v1349, %v1902
      %v2125 = vadd.f32 %v1354, %v1907
      %v2126 = vadd.f32 %v1357, %v1910
      %v2127 = vadd.f32 %v1362, %v1915
      %v2128 = vadd.f32 %v1365, %v1918
      %v2129 = vadd.f32 %v1370, %v1923
      %v2130 = vadd.f32 %v1373, %v1926
      %v2131 = vadd.f32 %v1378, %v1931
      %v2132 = vadd.f32 %v1381, %v1934
      %v2133 = vadd.f32 %v1386, %v1939
      %v2134 = vadd.f32 %v1389, %v1942
      %v2135 = vadd.f32 %v1394, %v1947
      %v2136 = vadd.f32 %v1397, %v1950
      %v2137 = vadd.f32 %v1402, %v1955
      %v2138 = vadd.f32 %v1405, %v1958
      %v2139 = vadd.f32 %v1410, %v1963
      %v2140 = vadd.f32 %v1413, %v1966
      %v2141 = vadd.f32 %v1418, %v1971
      %v2142 = vadd.f32 %v1421, %v1974
      %v2143 = vadd.f32 %v1426, %v1979
      %v2144 = vadd.f32 %v1429, %v1982
      %v2145 = vadd.f32 %v1434, %v1987
      %v2146 = vadd.f32 %v1437, %v1990
      %v2147 = vadd.f32 %v1442, %v1995
      %v2148 = vadd.f32 %v1445, %v1998
      %v2149 = vadd.f32 %v1450, %v2003
      %v2150 = vadd.f32 %v1453, %v2006
      %v2151 = vadd.f32 %v1458, %v2011
      %v2152 = vadd.f32 %v1461, %v2014
      %v2153 = vadd.f32 %v1466, %v2019
      %v2154 = vadd.f32 %v1469, %v2022
      %v2155 = vadd.f32 %v1474, %v2027
      %v2156 = vadd.f32 %v1477, %v2030
      %v2157 = vadd.f32 %v1482, %v2035
      %v2158 = vadd.f32 %v1485, %v2038
      %v2159 = vadd.f32 %v1490, %v2043
      %v2160 = vadd.f32 %v1493, %v2046
      %v2161 = vadd.f32 %v1498, %v2051
      %v2162 = vadd.f32 %v1501, %v2054
      %v2163 = vadd.f32 %v1506, %v2059
      %v2164 = vadd.f32 %v1509, %v2062
      %v2165 = vadd.f32 %v1514, %v2067
      %v2166 = vadd.f32 %v1517, %v2070
      %v2167 = vadd.f32 %v1522, %v2075
      %v2168 = vadd.f32 %v1525, %v2078
      %v2169 = vadd.f32 %v1530, %v2083
      %v2170 = vadd.f32 %v1533, %v2086
      %v2171 = vadd.f32 %v1538, %v2091
      %v2172 = vadd.f32 %v1541, %v2094
      %v2173 = vadd.f32 %v1546, %v2099
      %v2174 = vadd.f32 %v1549, %v2102
      %v2175 = vadd.f32 %v1554, %v2107
      %v2176 = vadd.f32 %v1557, %v2110
      %v2177 = vld [vmem:[%s7] sm:$0xff]
      %v2178 = vld [vmem:[%s7 + $0x8] sm:$0xff]
      %v2179 = vld [vmem:[%s7 + $0x10] sm:$0xff]
      %v2180 = vld [vmem:[%s7 + $0x18] sm:$0xff]
      %v2181 = vld [vmem:[%s7 + $0x20] sm:$0xff]
      %v2182 = vld [vmem:[%s7 + $0x28] sm:$0xff]
      %v2183 = vld [vmem:[%s7 + $0x30] sm:$0xff]
      %v2184 = vld [vmem:[%s7 + $0x38] sm:$0xff]
      %v2185 = vld [vmem:[%s7 + $0x40] sm:$0xff]
      %v2186 = vld [vmem:[%s7 + $0x48] sm:$0xff]
      %v2187 = vld [vmem:[%s7 + $0x50] sm:$0xff]
      %v2188 = vld [vmem:[%s7 + $0x58] sm:$0xff]
      %v2189 = vld [vmem:[%s7 + $0x60] sm:$0xff]
      %v2190 = vld [vmem:[%s7 + $0x68] sm:$0xff]
      %v2191 = vld [vmem:[%s7 + $0x70] sm:$0xff]
      %v2192 = vld [vmem:[%s7 + $0x78] sm:$0xff]
      %v2193 = vld [vmem:[%s7 + $0x80] sm:$0xff]
      %v2194 = vld [vmem:[%s7 + $0x88] sm:$0xff]
      %v2195 = vld [vmem:[%s7 + $0x90] sm:$0xff]
      %v2196 = vld [vmem:[%s7 + $0x98] sm:$0xff]
      %v2197 = vld [vmem:[%s7 + $0xa0] sm:$0xff]
      %v2198 = vld [vmem:[%s7 + $0xa8] sm:$0xff]
      %v2199 = vld [vmem:[%s7 + $0xb0] sm:$0xff]
      %v2200 = vld [vmem:[%s7 + $0xb8] sm:$0xff]
      %v2201 = vld [vmem:[%s7 + $0xc0] sm:$0xff]
      %v2202 = vld [vmem:[%s7 + $0xc8] sm:$0xff]
      %v2203 = vld [vmem:[%s7 + $0xd0] sm:$0xff]
      %v2204 = vld [vmem:[%s7 + $0xd8] sm:$0xff]
      %v2205 = vld [vmem:[%s7 + $0xe0] sm:$0xff]
      %v2206 = vld [vmem:[%s7 + $0xe8] sm:$0xff]
      %v2207 = vld [vmem:[%s7 + $0xf0] sm:$0xff]
      %v2208 = vld [vmem:[%s7 + $0xf8] sm:$0xff]
      %v2209 = vld [vmem:[%s7 + $0x100] sm:$0xff]
      %v2210 = vld [vmem:[%s7 + $0x108] sm:$0xff]
      %v2211 = vld [vmem:[%s7 + $0x110] sm:$0xff]
      %v2212 = vld [vmem:[%s7 + $0x118] sm:$0xff]
      %v2213 = vld [vmem:[%s7 + $0x120] sm:$0xff]
      %v2214 = vld [vmem:[%s7 + $0x128] sm:$0xff]
      %v2215 = vld [vmem:[%s7 + $0x130] sm:$0xff]
      %v2216 = vld [vmem:[%s7 + $0x138] sm:$0xff]
      %v2217 = vld [vmem:[%s7 + $0x140] sm:$0xff]
      %v2218 = vld [vmem:[%s7 + $0x148] sm:$0xff]
      %v2219 = vld [vmem:[%s7 + $0x150] sm:$0xff]
      %v2220 = vld [vmem:[%s7 + $0x158] sm:$0xff]
      %v2221 = vld [vmem:[%s7 + $0x160] sm:$0xff]
      %v2222 = vld [vmem:[%s7 + $0x168] sm:$0xff]
      %v2223 = vld [vmem:[%s7 + $0x170] sm:$0xff]
      %v2224 = vld [vmem:[%s7 + $0x178] sm:$0xff]
      %v2225 = vld [vmem:[%s7 + $0x180] sm:$0xff]
      %v2226 = vld [vmem:[%s7 + $0x188] sm:$0xff]
      %v2227 = vld [vmem:[%s7 + $0x190] sm:$0xff]
      %v2228 = vld [vmem:[%s7 + $0x198] sm:$0xff]
      %v2229 = vld [vmem:[%s7 + $0x1a0] sm:$0xff]
      %v2230 = vld [vmem:[%s7 + $0x1a8] sm:$0xff]
      %v2231 = vld [vmem:[%s7 + $0x1b0] sm:$0xff]
      %v2232 = vld [vmem:[%s7 + $0x1b8] sm:$0xff]
      %v2233 = vld [vmem:[%s7 + $0x1c0] sm:$0xff]
      %v2234 = vld [vmem:[%s7 + $0x1c8] sm:$0xff]
      %v2235 = vld [vmem:[%s7 + $0x1d0] sm:$0xff]
      %v2236 = vld [vmem:[%s7 + $0x1d8] sm:$0xff]
      %v2237 = vld [vmem:[%s7 + $0x1e0] sm:$0xff]
      %v2238 = vld [vmem:[%s7 + $0x1e8] sm:$0xff]
      %v2239 = vld [vmem:[%s7 + $0x1f0] sm:$0xff]
      %v2240 = vld [vmem:[%s7 + $0x1f8] sm:$0xff]
      %v2241 = vld [vmem:[%s443] sm:$0xff]
      %v2242 = vld [vmem:[%s443 + $0x8] sm:$0xff]
      %v2307 = vunpack.c.l.b16 %v2177
      %v2308 = vunpack.c.h.b16 %v2177
      %v2309 = vunpack.c.l.b16 %v2178
      %v2310 = vunpack.c.h.b16 %v2178
      %v2311 = vunpack.c.l.b16 %v2179
      %v2312 = vunpack.c.h.b16 %v2179
      %v2313 = vunpack.c.l.b16 %v2180
      %v2314 = vunpack.c.h.b16 %v2180
      %v2315 = vunpack.c.l.b16 %v2181
      %v2316 = vunpack.c.h.b16 %v2181
      %v2317 = vunpack.c.l.b16 %v2182
      %v2318 = vunpack.c.h.b16 %v2182
      %v2319 = vunpack.c.l.b16 %v2183
      %v2320 = vunpack.c.h.b16 %v2183
      %v2321 = vunpack.c.l.b16 %v2184
      %v2322 = vunpack.c.h.b16 %v2184
      %v2323 = vunpack.c.l.b16 %v2185
      %v2324 = vunpack.c.h.b16 %v2185
      %v2325 = vunpack.c.l.b16 %v2186
      %v2326 = vunpack.c.h.b16 %v2186
      %v2327 = vunpack.c.l.b16 %v2187
      %v2328 = vunpack.c.h.b16 %v2187
      %v2329 = vunpack.c.l.b16 %v2188
      %v2330 = vunpack.c.h.b16 %v2188
      %v2331 = vunpack.c.l.b16 %v2189
      %v2332 = vunpack.c.h.b16 %v2189
      %v2333 = vunpack.c.l.b16 %v2190
      %v2334 = vunpack.c.h.b16 %v2190
      %v2335 = vunpack.c.l.b16 %v2191
      %v2336 = vunpack.c.h.b16 %v2191
      %v2337 = vunpack.c.l.b16 %v2192
      %v2338 = vunpack.c.h.b16 %v2192
      %v2339 = vunpack.c.l.b16 %v2193
      %v2340 = vunpack.c.h.b16 %v2193
      %v2341 = vunpack.c.l.b16 %v2194
      %v2342 = vunpack.c.h.b16 %v2194
      %v2343 = vunpack.c.l.b16 %v2195
      %v2344 = vunpack.c.h.b16 %v2195
      %v2345 = vunpack.c.l.b16 %v2196
      %v2346 = vunpack.c.h.b16 %v2196
      %v2347 = vunpack.c.l.b16 %v2197
      %v2348 = vunpack.c.h.b16 %v2197
      %v2349 = vunpack.c.l.b16 %v2198
      %v2350 = vunpack.c.h.b16 %v2198
      %v2351 = vunpack.c.l.b16 %v2199
      %v2352 = vunpack.c.h.b16 %v2199
      %v2353 = vunpack.c.l.b16 %v2200
      %v2354 = vunpack.c.h.b16 %v2200
      %v2355 = vunpack.c.l.b16 %v2201
      %v2356 = vunpack.c.h.b16 %v2201
      %v2357 = vunpack.c.l.b16 %v2202
      %v2358 = vunpack.c.h.b16 %v2202
      %v2359 = vunpack.c.l.b16 %v2203
      %v2360 = vunpack.c.h.b16 %v2203
      %v2361 = vunpack.c.l.b16 %v2204
      %v2362 = vunpack.c.h.b16 %v2204
      %v2363 = vunpack.c.l.b16 %v2205
      %v2364 = vunpack.c.h.b16 %v2205
      %v2365 = vunpack.c.l.b16 %v2206
      %v2366 = vunpack.c.h.b16 %v2206
      %v2367 = vunpack.c.l.b16 %v2207
      %v2368 = vunpack.c.h.b16 %v2207
      %v2369 = vunpack.c.l.b16 %v2208
      %v2370 = vunpack.c.h.b16 %v2208
      %v2371 = vunpack.c.l.b16 %v2209
      %v2372 = vunpack.c.h.b16 %v2209
      %v2373 = vunpack.c.l.b16 %v2210
      %v2374 = vunpack.c.h.b16 %v2210
      %v2375 = vunpack.c.l.b16 %v2211
      %v2376 = vunpack.c.h.b16 %v2211
      %v2377 = vunpack.c.l.b16 %v2212
      %v2378 = vunpack.c.h.b16 %v2212
      %v2379 = vunpack.c.l.b16 %v2213
      %v2380 = vunpack.c.h.b16 %v2213
      %v2381 = vunpack.c.l.b16 %v2214
      %v2382 = vunpack.c.h.b16 %v2214
      %v2383 = vunpack.c.l.b16 %v2215
      %v2384 = vunpack.c.h.b16 %v2215
      %v2385 = vunpack.c.l.b16 %v2216
      %v2386 = vunpack.c.h.b16 %v2216
      %v2387 = vunpack.c.l.b16 %v2217
      %v2388 = vunpack.c.h.b16 %v2217
      %v2389 = vunpack.c.l.b16 %v2218
      %v2390 = vunpack.c.h.b16 %v2218
      %v2391 = vunpack.c.l.b16 %v2219
      %v2392 = vunpack.c.h.b16 %v2219
      %v2393 = vunpack.c.l.b16 %v2220
      %v2394 = vunpack.c.h.b16 %v2220
      %v2395 = vunpack.c.l.b16 %v2221
      %v2396 = vunpack.c.h.b16 %v2221
      %v2397 = vunpack.c.l.b16 %v2222
      %v2398 = vunpack.c.h.b16 %v2222
      %v2399 = vunpack.c.l.b16 %v2223
      %v2400 = vunpack.c.h.b16 %v2223
      %v2401 = vunpack.c.l.b16 %v2224
      %v2402 = vunpack.c.h.b16 %v2224
      %v2403 = vunpack.c.l.b16 %v2225
      %v2404 = vunpack.c.h.b16 %v2225
      %v2405 = vunpack.c.l.b16 %v2226
      %v2406 = vunpack.c.h.b16 %v2226
      %v2407 = vunpack.c.l.b16 %v2227
      %v2408 = vunpack.c.h.b16 %v2227
      %v2409 = vunpack.c.l.b16 %v2228
      %v2410 = vunpack.c.h.b16 %v2228
      %v2411 = vunpack.c.l.b16 %v2229
      %v2412 = vunpack.c.h.b16 %v2229
      %v2413 = vunpack.c.l.b16 %v2230
      %v2414 = vunpack.c.h.b16 %v2230
      %v2415 = vunpack.c.l.b16 %v2231
      %v2416 = vunpack.c.h.b16 %v2231
      %v2417 = vunpack.c.l.b16 %v2232
      %v2418 = vunpack.c.h.b16 %v2232
      %v2419 = vunpack.c.l.b16 %v2233
      %v2420 = vunpack.c.h.b16 %v2233
      %v2421 = vunpack.c.l.b16 %v2234
      %v2422 = vunpack.c.h.b16 %v2234
      %v2423 = vunpack.c.l.b16 %v2235
      %v2424 = vunpack.c.h.b16 %v2235
      %v2425 = vunpack.c.l.b16 %v2236
      %v2426 = vunpack.c.h.b16 %v2236
      %v2427 = vunpack.c.l.b16 %v2237
      %v2428 = vunpack.c.h.b16 %v2237
      %v2429 = vunpack.c.l.b16 %v2238
      %v2430 = vunpack.c.h.b16 %v2238
      %v2431 = vunpack.c.l.b16 %v2239
      %v2432 = vunpack.c.h.b16 %v2239
      %v2433 = vunpack.c.l.b16 %v2240
      %v2434 = vunpack.c.h.b16 %v2240
      %v2435 = vpack.c.b16 %v2309, %v2307
      %v2436 = vpack.c.b16 %v2310, %v2308
      %v2437 = vpack.c.b16 %v2313, %v2311
      %v2438 = vpack.c.b16 %v2314, %v2312
      %v2439 = vpack.c.b16 %v2317, %v2315
      %v2440 = vpack.c.b16 %v2318, %v2316
      %v2441 = vpack.c.b16 %v2321, %v2319
      %v2442 = vpack.c.b16 %v2322, %v2320
      %v2443 = vpack.c.b16 %v2325, %v2323
      %v2444 = vpack.c.b16 %v2326, %v2324
      %v2445 = vpack.c.b16 %v2329, %v2327
      %v2446 = vpack.c.b16 %v2330, %v2328
      %v2447 = vpack.c.b16 %v2333, %v2331
      %v2448 = vpack.c.b16 %v2334, %v2332
      %v2449 = vpack.c.b16 %v2337, %v2335
      %v2450 = vpack.c.b16 %v2338, %v2336
      %v2451 = vpack.c.b16 %v2341, %v2339
      %v2452 = vpack.c.b16 %v2342, %v2340
      %v2453 = vpack.c.b16 %v2345, %v2343
      %v2454 = vpack.c.b16 %v2346, %v2344
      %v2455 = vpack.c.b16 %v2349, %v2347
      %v2456 = vpack.c.b16 %v2350, %v2348
      %v2457 = vpack.c.b16 %v2353, %v2351
      %v2458 = vpack.c.b16 %v2354, %v2352
      %v2459 = vpack.c.b16 %v2357, %v2355
      %v2460 = vpack.c.b16 %v2358, %v2356
      %v2461 = vpack.c.b16 %v2361, %v2359
      %v2462 = vpack.c.b16 %v2362, %v2360
      %v2463 = vpack.c.b16 %v2365, %v2363
      %v2464 = vpack.c.b16 %v2366, %v2364
      %v2465 = vpack.c.b16 %v2369, %v2367
      %v2466 = vpack.c.b16 %v2370, %v2368
      %v2467 = vpack.c.b16 %v2373, %v2371
      %v2468 = vpack.c.b16 %v2374, %v2372
      %v2469 = vpack.c.b16 %v2377, %v2375
      %v2470 = vpack.c.b16 %v2378, %v2376
      %v2471 = vpack.c.b16 %v2381, %v2379
      %v2472 = vpack.c.b16 %v2382, %v2380
      %v2473 = vpack.c.b16 %v2385, %v2383
      %v2474 = vpack.c.b16 %v2386, %v2384
      %v2475 = vpack.c.b16 %v2389, %v2387
      %v2476 = vpack.c.b16 %v2390, %v2388
      %v2477 = vpack.c.b16 %v2393, %v2391
      %v2478 = vpack.c.b16 %v2394, %v2392
      %v2479 = vpack.c.b16 %v2397, %v2395
      %v2480 = vpack.c.b16 %v2398, %v2396
      %v2481 = vpack.c.b16 %v2401, %v2399
      %v2482 = vpack.c.b16 %v2402, %v2400
      %v2483 = vpack.c.b16 %v2405, %v2403
      %v2484 = vpack.c.b16 %v2406, %v2404
      %v2485 = vpack.c.b16 %v2409, %v2407
      %v2486 = vpack.c.b16 %v2410, %v2408
      %v2487 = vpack.c.b16 %v2413, %v2411
      %v2488 = vpack.c.b16 %v2414, %v2412
      %v2489 = vpack.c.b16 %v2417, %v2415
      %v2490 = vpack.c.b16 %v2418, %v2416
      %v2491 = vpack.c.b16 %v2421, %v2419
      %v2492 = vpack.c.b16 %v2422, %v2420
      %v2493 = vpack.c.b16 %v2425, %v2423
      %v2494 = vpack.c.b16 %v2426, %v2424
      %v2495 = vpack.c.b16 %v2429, %v2427
      %v2496 = vpack.c.b16 %v2430, %v2428
      %v2497 = vpack.c.b16 %v2433, %v2431
      %v2498 = vpack.c.b16 %v2434, %v2432
      %v2565 = vunpack.c.l.b16 %v2241
      %v2566 = vunpack.c.h.b16 %v2241
      %v2567 = vunpack.c.l.b16 %v2242
      %v2568 = vunpack.c.h.b16 %v2242
      %v2569 = vpack.c.b16 %v2567, %v2565
      %v2570 = vpack.c.b16 %v2568, %v2566
      %2573 = vmatprep.subr.bf16.mxu0 %v2570
      %2574 = vmatpush1.bf16.xpose.msra.mxu0 %v2569
      %2575 = vmatprep.subr.bf16.mxu0 0
      %2576 = vmatpush1.bf16.xpose.msra.mxu0 0
      %2577 = vmatprep.subr.bf16.mxu0 0
      %2578 = vmatpush1.bf16.xpose.msra.mxu0 0
      %2579 = vmatprep.subr.bf16.mxu0 0
      %2580 = vmatpush1.bf16.xpose.msra.mxu0 0
      %2581 = vmatprep.subr.bf16.mxu0 0
      %2582 = vmatpush1.bf16.xpose.msra.mxu0 0
      %2583 = vmatprep.subr.bf16.mxu0 0
      %2584 = vmatpush1.bf16.xpose.msra.mxu0 0
      %2585 = vmatprep.subr.bf16.mxu0 0
      %2586 = vmatpush1.bf16.xpose.msra.mxu0 0
      %2587 = vmatprep.subr.bf16.mxu0 0
      %2588 = vmatpush1.bf16.xpose.msra.mxu0 0
      %2589 = vmatprep.subr.bf16.mxu0 0
      %2590 = vmatpush1.bf16.xpose.msra.mxu0 0
      %2591 = vmatprep.subr.bf16.mxu0 0
      %2592 = vmatpush1.bf16.xpose.msra.mxu0 0
      %2593 = vmatprep.subr.bf16.mxu0 0
      %2594 = vmatpush1.bf16.xpose.msra.mxu0 0
      %2595 = vmatprep.subr.bf16.mxu0 0
      %2596 = vmatpush1.bf16.xpose.msra.mxu0 0
      %2597 = vmatprep.subr.bf16.mxu0 0
      %2598 = vmatpush1.bf16.xpose.msra.mxu0 0
      %2599 = vmatprep.subr.bf16.mxu0 0
      %2600 = vmatpush1.bf16.xpose.msra.mxu0 0
      %2601 = vmatprep.subr.bf16.mxu0 0
      %2602 = vmatpush1.bf16.xpose.msra.mxu0 0
      %2603 = vmatprep.subr.bf16.mxu0 0
      %2604 = vmatpush1.bf16.xpose.msra.mxu0 0
      %2605 = vmatprep.mubr.bf16.mxu0 %v2436
      %2606 = vmatmul.mubr.bf16.gmra.mrb[0].mxu0 %v2435
      %v2607 = vpop.f32.mrb[0].mxu0
      %v2608 = vadd.f32 0.0, %v2607
      %v2609 = vpop.f32.mrb[0].mxu0
      %v2610 = vpop.f32.mrb[0].mxu0
      %v2611 = vadd.f32 0.0, %v2610
      %v2612 = vpop.f32.mrb[0].mxu0
      %2613 = vmatprep.mubr.bf16.mxu0 %v2438
      %2614 = vmatmul.mubr.bf16.gmra.mrb[0].mxu0 %v2437
      %v2615 = vpop.f32.mrb[0].mxu0
      %v2616 = vadd.f32 0.0, %v2615
      %v2617 = vpop.f32.mrb[0].mxu0
      %v2618 = vpop.f32.mrb[0].mxu0
      %v2619 = vadd.f32 0.0, %v2618
      %v2620 = vpop.f32.mrb[0].mxu0
      %2621 = vmatprep.mubr.bf16.mxu0 %v2440
      %2622 = vmatmul.mubr.bf16.gmra.mrb[0].mxu0 %v2439
      %v2623 = vpop.f32.mrb[0].mxu0
      %v2624 = vadd.f32 0.0, %v2623
      %v2625 = vpop.f32.mrb[0].mxu0
      %v2626 = vpop.f32.mrb[0].mxu0
      %v2627 = vadd.f32 0.0, %v2626
      %v2628 = vpop.f32.mrb[0].mxu0
      %2629 = vmatprep.mubr.bf16.mxu0 %v2442
      %2630 = vmatmul.mubr.bf16.gmra.mrb[0].mxu0 %v2441
      %v2631 = vpop.f32.mrb[0].mxu0
      %v2632 = vadd.f32 0.0, %v2631
      %v2633 = vpop.f32.mrb[0].mxu0
      %v2634 = vpop.f32.mrb[0].mxu0
      %v2635 = vadd.f32 0.0, %v2634
      %v2636 = vpop.f32.mrb[0].mxu0
      %2637 = vmatprep.mubr.bf16.mxu0 %v2444
      %2638 = vmatmul.mubr.bf16.gmra.mrb[0].mxu0 %v2443
      %v2639 = vpop.f32.mrb[0].mxu0
      %v2640 = vadd.f32 0.0, %v2639
      %v2641 = vpop.f32.mrb[0].mxu0
      %v2642 = vpop.f32.mrb[0].mxu0
      %v2643 = vadd.f32 0.0, %v2642
      %v2644 = vpop.f32.mrb[0].mxu0
      %2645 = vmatprep.mubr.bf16.mxu0 %v2446
      %2646 = vmatmul.mubr.bf16.gmra.mrb[0].mxu0 %v2445
      %v2647 = vpop.f32.mrb[0].mxu0
      %v2648 = vadd.f32 0.0, %v2647
      %v2649 = vpop.f32.mrb[0].mxu0
      %v2650 = vpop.f32.mrb[0].mxu0
      %v2651 = vadd.f32 0.0, %v2650
      %v2652 = vpop.f32.mrb[0].mxu0
      %2653 = vmatprep.mubr.bf16.mxu0 %v2448
      %2654 = vmatmul.mubr.bf16.gmra.mrb[0].mxu0 %v2447
      %v2655 = vpop.f32.mrb[0].mxu0
      %v2656 = vadd.f32 0.0, %v2655
      %v2657 = vpop.f32.mrb[0].mxu0
      %v2658 = vpop.f32.mrb[0].mxu0
      %v2659 = vadd.f32 0.0, %v2658
      %v2660 = vpop.f32.mrb[0].mxu0
      %2661 = vmatprep.mubr.bf16.mxu0 %v2450
      %2662 = vmatmul.mubr.bf16.gmra.mrb[0].mxu0 %v2449
      %v2663 = vpop.f32.mrb[0].mxu0
      %v2664 = vadd.f32 0.0, %v2663
      %v2665 = vpop.f32.mrb[0].mxu0
      %v2666 = vpop.f32.mrb[0].mxu0
      %v2667 = vadd.f32 0.0, %v2666
      %v2668 = vpop.f32.mrb[0].mxu0
      %2669 = vmatprep.mubr.bf16.mxu0 %v2452
      %2670 = vmatmul.mubr.bf16.gmra.mrb[0].mxu0 %v2451
      %v2671 = vpop.f32.mrb[0].mxu0
      %v2672 = vadd.f32 0.0, %v2671
      %v2673 = vpop.f32.mrb[0].mxu0
      %v2674 = vpop.f32.mrb[0].mxu0
      %v2675 = vadd.f32 0.0, %v2674
      %v2676 = vpop.f32.mrb[0].mxu0
      %2677 = vmatprep.mubr.bf16.mxu0 %v2454
      %2678 = vmatmul.mubr.bf16.gmra.mrb[0].mxu0 %v2453
      %v2679 = vpop.f32.mrb[0].mxu0
      %v2680 = vadd.f32 0.0, %v2679
      %v2681 = vpop.f32.mrb[0].mxu0
      %v2682 = vpop.f32.mrb[0].mxu0
      %v2683 = vadd.f32 0.0, %v2682
      %v2684 = vpop.f32.mrb[0].mxu0
      %2685 = vmatprep.mubr.bf16.mxu0 %v2456
      %2686 = vmatmul.mubr.bf16.gmra.mrb[0].mxu0 %v2455
      %v2687 = vpop.f32.mrb[0].mxu0
      %v2688 = vadd.f32 0.0, %v2687
      %v2689 = vpop.f32.mrb[0].mxu0
      %v2690 = vpop.f32.mrb[0].mxu0
      %v2691 = vadd.f32 0.0, %v2690
      %v2692 = vpop.f32.mrb[0].mxu0
      %2693 = vmatprep.mubr.bf16.mxu0 %v2458
      %2694 = vmatmul.mubr.bf16.gmra.mrb[0].mxu0 %v2457
      %v2695 = vpop.f32.mrb[0].mxu0
      %v2696 = vadd.f32 0.0, %v2695
      %v2697 = vpop.f32.mrb[0].mxu0
      %v2698 = vpop.f32.mrb[0].mxu0
      %v2699 = vadd.f32 0.0, %v2698
      %v2700 = vpop.f32.mrb[0].mxu0
      %2701 = vmatprep.mubr.bf16.mxu0 %v2460
      %2702 = vmatmul.mubr.bf16.gmra.mrb[0].mxu0 %v2459
      %v2703 = vpop.f32.mrb[0].mxu0
      %v2704 = vadd.f32 0.0, %v2703
      %v2705 = vpop.f32.mrb[0].mxu0
      %v2706 = vpop.f32.mrb[0].mxu0
      %v2707 = vadd.f32 0.0, %v2706
      %v2708 = vpop.f32.mrb[0].mxu0
      %2709 = vmatprep.mubr.bf16.mxu0 %v2462
      %2710 = vmatmul.mubr.bf16.gmra.mrb[0].mxu0 %v2461
      %v2711 = vpop.f32.mrb[0].mxu0
      %v2712 = vadd.f32 0.0, %v2711
      %v2713 = vpop.f32.mrb[0].mxu0
      %v2714 = vpop.f32.mrb[0].mxu0
      %v2715 = vadd.f32 0.0, %v2714
      %v2716 = vpop.f32.mrb[0].mxu0
      %2717 = vmatprep.mubr.bf16.mxu0 %v2464
      %2718 = vmatmul.mubr.bf16.gmra.mrb[0].mxu0 %v2463
      %v2719 = vpop.f32.mrb[0].mxu0
      %v2720 = vadd.f32 0.0, %v2719
      %v2721 = vpop.f32.mrb[0].mxu0
      %v2722 = vpop.f32.mrb[0].mxu0
      %v2723 = vadd.f32 0.0, %v2722
      %v2724 = vpop.f32.mrb[0].mxu0
      %2725 = vmatprep.mubr.bf16.mxu0 %v2466
      %2726 = vmatmul.mubr.bf16.gmra.mrb[0].mxu0 %v2465
      %v2727 = vpop.f32.mrb[0].mxu0
      %v2728 = vadd.f32 0.0, %v2727
      %v2729 = vpop.f32.mrb[0].mxu0
      %v2730 = vpop.f32.mrb[0].mxu0
      %v2731 = vadd.f32 0.0, %v2730
      %v2732 = vpop.f32.mrb[0].mxu0
      %2733 = vmatprep.mubr.bf16.mxu0 %v2468
      %2734 = vmatmul.mubr.bf16.gmra.mrb[0].mxu0 %v2467
      %v2735 = vpop.f32.mrb[0].mxu0
      %v2736 = vadd.f32 0.0, %v2735
      %v2737 = vpop.f32.mrb[0].mxu0
      %v2738 = vpop.f32.mrb[0].mxu0
      %v2739 = vadd.f32 0.0, %v2738
      %v2740 = vpop.f32.mrb[0].mxu0
      %2741 = vmatprep.mubr.bf16.mxu0 %v2470
      %2742 = vmatmul.mubr.bf16.gmra.mrb[0].mxu0 %v2469
      %v2743 = vpop.f32.mrb[0].mxu0
      %v2744 = vadd.f32 0.0, %v2743
      %v2745 = vpop.f32.mrb[0].mxu0
      %v2746 = vpop.f32.mrb[0].mxu0
      %v2747 = vadd.f32 0.0, %v2746
      %v2748 = vpop.f32.mrb[0].mxu0
      %2749 = vmatprep.mubr.bf16.mxu0 %v2472
      %2750 = vmatmul.mubr.bf16.gmra.mrb[0].mxu0 %v2471
      %v2751 = vpop.f32.mrb[0].mxu0
      %v2752 = vadd.f32 0.0, %v2751
      %v2753 = vpop.f32.mrb[0].mxu0
      %v2754 = vpop.f32.mrb[0].mxu0
      %v2755 = vadd.f32 0.0, %v2754
      %v2756 = vpop.f32.mrb[0].mxu0
      %2757 = vmatprep.mubr.bf16.mxu0 %v2474
      %2758 = vmatmul.mubr.bf16.gmra.mrb[0].mxu0 %v2473
      %v2759 = vpop.f32.mrb[0].mxu0
      %v2760 = vadd.f32 0.0, %v2759
      %v2761 = vpop.f32.mrb[0].mxu0
      %v2762 = vpop.f32.mrb[0].mxu0
      %v2763 = vadd.f32 0.0, %v2762
      %v2764 = vpop.f32.mrb[0].mxu0
      %2765 = vmatprep.mubr.bf16.mxu0 %v2476
      %2766 = vmatmul.mubr.bf16.gmra.mrb[0].mxu0 %v2475
      %v2767 = vpop.f32.mrb[0].mxu0
      %v2768 = vadd.f32 0.0, %v2767
      %v2769 = vpop.f32.mrb[0].mxu0
      %v2770 = vpop.f32.mrb[0].mxu0
      %v2771 = vadd.f32 0.0, %v2770
      %v2772 = vpop.f32.mrb[0].mxu0
      %2773 = vmatprep.mubr.bf16.mxu0 %v2478
      %2774 = vmatmul.mubr.bf16.gmra.mrb[0].mxu0 %v2477
      %v2775 = vpop.f32.mrb[0].mxu0
      %v2776 = vadd.f32 0.0, %v2775
      %v2777 = vpop.f32.mrb[0].mxu0
      %v2778 = vpop.f32.mrb[0].mxu0
      %v2779 = vadd.f32 0.0, %v2778
      %v2780 = vpop.f32.mrb[0].mxu0
      %2781 = vmatprep.mubr.bf16.mxu0 %v2480
      %2782 = vmatmul.mubr.bf16.gmra.mrb[0].mxu0 %v2479
      %v2783 = vpop.f32.mrb[0].mxu0
      %v2784 = vadd.f32 0.0, %v2783
      %v2785 = vpop.f32.mrb[0].mxu0
      %v2786 = vpop.f32.mrb[0].mxu0
      %v2787 = vadd.f32 0.0, %v2786
      %v2788 = vpop.f32.mrb[0].mxu0
      %2789 = vmatprep.mubr.bf16.mxu0 %v2482
      %2790 = vmatmul.mubr.bf16.gmra.mrb[0].mxu0 %v2481
      %v2791 = vpop.f32.mrb[0].mxu0
      %v2792 = vadd.f32 0.0, %v2791
      %v2793 = vpop.f32.mrb[0].mxu0
      %v2794 = vpop.f32.mrb[0].mxu0
      %v2795 = vadd.f32 0.0, %v2794
      %v2796 = vpop.f32.mrb[0].mxu0
      %2797 = vmatprep.mubr.bf16.mxu0 %v2484
      %2798 = vmatmul.mubr.bf16.gmra.mrb[0].mxu0 %v2483
      %v2799 = vpop.f32.mrb[0].mxu0
      %v2800 = vadd.f32 0.0, %v2799
      %v2801 = vpop.f32.mrb[0].mxu0
      %v2802 = vpop.f32.mrb[0].mxu0
      %v2803 = vadd.f32 0.0, %v2802
      %v2804 = vpop.f32.mrb[0].mxu0
      %2805 = vmatprep.mubr.bf16.mxu0 %v2486
      %2806 = vmatmul.mubr.bf16.gmra.mrb[0].mxu0 %v2485
      %v2807 = vpop.f32.mrb[0].mxu0
      %v2808 = vadd.f32 0.0, %v2807
      %v2809 = vpop.f32.mrb[0].mxu0
      %v2810 = vpop.f32.mrb[0].mxu0
      %v2811 = vadd.f32 0.0, %v2810
      %v2812 = vpop.f32.mrb[0].mxu0
      %2813 = vmatprep.mubr.bf16.mxu0 %v2488
      %2814 = vmatmul.mubr.bf16.gmra.mrb[0].mxu0 %v2487
      %v2815 = vpop.f32.mrb[0].mxu0
      %v2816 = vadd.f32 0.0, %v2815
      %v2817 = vpop.f32.mrb[0].mxu0
      %v2818 = vpop.f32.mrb[0].mxu0
      %v2819 = vadd.f32 0.0, %v2818
      %v2820 = vpop.f32.mrb[0].mxu0
      %2821 = vmatprep.mubr.bf16.mxu0 %v2490
      %2822 = vmatmul.mubr.bf16.gmra.mrb[0].mxu0 %v2489
      %v2823 = vpop.f32.mrb[0].mxu0
      %v2824 = vadd.f32 0.0, %v2823
      %v2825 = vpop.f32.mrb[0].mxu0
      %v2826 = vpop.f32.mrb[0].mxu0
      %v2827 = vadd.f32 0.0, %v2826
      %v2828 = vpop.f32.mrb[0].mxu0
      %2829 = vmatprep.mubr.bf16.mxu0 %v2492
      %2830 = vmatmul.mubr.bf16.gmra.mrb[0].mxu0 %v2491
      %v2831 = vpop.f32.mrb[0].mxu0
      %v2832 = vadd.f32 0.0, %v2831
      %v2833 = vpop.f32.mrb[0].mxu0
      %v2834 = vpop.f32.mrb[0].mxu0
      %v2835 = vadd.f32 0.0, %v2834
      %v2836 = vpop.f32.mrb[0].mxu0
      %2837 = vmatprep.mubr.bf16.mxu0 %v2494
      %2838 = vmatmul.mubr.bf16.gmra.mrb[0].mxu0 %v2493
      %v2839 = vpop.f32.mrb[0].mxu0
      %v2840 = vadd.f32 0.0, %v2839
      %v2841 = vpop.f32.mrb[0].mxu0
      %v2842 = vpop.f32.mrb[0].mxu0
      %v2843 = vadd.f32 0.0, %v2842
      %v2844 = vpop.f32.mrb[0].mxu0
      %2845 = vmatprep.mubr.bf16.mxu0 %v2496
      %2846 = vmatmul.mubr.bf16.gmra.mrb[0].mxu0 %v2495
      %v2847 = vpop.f32.mrb[0].mxu0
      %v2848 = vadd.f32 0.0, %v2847
      %v2849 = vpop.f32.mrb[0].mxu0
      %v2850 = vpop.f32.mrb[0].mxu0
      %v2851 = vadd.f32 0.0, %v2850
      %v2852 = vpop.f32.mrb[0].mxu0
      %2853 = vmatprep.mubr.bf16.mxu0 %v2498
      %2854 = vmatmul.mubr.bf16.gmra.mrb[0].mxu0 %v2497
      %v2855 = vpop.f32.mrb[0].mxu0
      %v2856 = vadd.f32 0.0, %v2855
      %v2857 = vpop.f32.mrb[0].mxu0
      %v2858 = vpop.f32.mrb[0].mxu0
      %v2859 = vadd.f32 0.0, %v2858
      %v2860 = vpop.f32.mrb[0].mxu0
      %2861 = vdwg.mxu0
      %v2862 = vadd.f32 %v2113, %v2608
      %v2863 = vadd.f32 %v2114, %v2611
      %v2864 = vadd.f32 %v2115, %v2616
      %v2865 = vadd.f32 %v2116, %v2619
      %v2866 = vadd.f32 %v2117, %v2624
      %v2867 = vadd.f32 %v2118, %v2627
      %v2868 = vadd.f32 %v2119, %v2632
      %v2869 = vadd.f32 %v2120, %v2635
      %v2870 = vadd.f32 %v2121, %v2640
      %v2871 = vadd.f32 %v2122, %v2643
      %v2872 = vadd.f32 %v2123, %v2648
      %v2873 = vadd.f32 %v2124, %v2651
      %v2874 = vadd.f32 %v2125, %v2656
      %v2875 = vadd.f32 %v2126, %v2659
      %v2876 = vadd.f32 %v2127, %v2664
      %v2877 = vadd.f32 %v2128, %v2667
      %v2878 = vadd.f32 %v2129, %v2672
      %v2879 = vadd.f32 %v2130, %v2675
      %v2880 = vadd.f32 %v2131, %v2680
      %v2881 = vadd.f32 %v2132, %v2683
      %v2882 = vadd.f32 %v2133, %v2688
      %v2883 = vadd.f32 %v2134, %v2691
      %v2884 = vadd.f32 %v2135, %v2696
      %v2885 = vadd.f32 %v2136, %v2699
      %v2886 = vadd.f32 %v2137, %v2704
      %v2887 = vadd.f32 %v2138, %v2707
      %v2888 = vadd.f32 %v2139, %v2712
      %v2889 = vadd.f32 %v2140, %v2715
      %v2890 = vadd.f32 %v2141, %v2720
      %v2891 = vadd.f32 %v2142, %v2723
      %v2892 = vadd.f32 %v2143, %v2728
      %v2893 = vadd.f32 %v2144, %v2731
      %v2894 = vadd.f32 %v2145, %v2736
      %v2895 = vadd.f32 %v2146, %v2739
      %v2896 = vadd.f32 %v2147, %v2744
      %v2897 = vadd.f32 %v2148, %v2747
      %v2898 = vadd.f32 %v2149, %v2752
      %v2899 = vadd.f32 %v2150, %v2755
      %v2900 = vadd.f32 %v2151, %v2760
      %v2901 = vadd.f32 %v2152, %v2763
      %v2902 = vadd.f32 %v2153, %v2768
      %v2903 = vadd.f32 %v2154, %v2771
      %v2904 = vadd.f32 %v2155, %v2776
      %v2905 = vadd.f32 %v2156, %v2779
      %v2906 = vadd.f32 %v2157, %v2784
      %v2907 = vadd.f32 %v2158, %v2787
      %v2908 = vadd.f32 %v2159, %v2792
      %v2909 = vadd.f32 %v2160, %v2795
      %v2910 = vadd.f32 %v2161, %v2800
      %v2911 = vadd.f32 %v2162, %v2803
      %v2912 = vadd.f32 %v2163, %v2808
      %v2913 = vadd.f32 %v2164, %v2811
      %v2914 = vadd.f32 %v2165, %v2816
      %v2915 = vadd.f32 %v2166, %v2819
      %v2916 = vadd.f32 %v2167, %v2824
      %v2917 = vadd.f32 %v2168, %v2827
      %v2918 = vadd.f32 %v2169, %v2832
      %v2919 = vadd.f32 %v2170, %v2835
      %v2920 = vadd.f32 %v2171, %v2840
      %v2921 = vadd.f32 %v2172, %v2843
      %v2922 = vadd.f32 %v2173, %v2848
      %v2923 = vadd.f32 %v2174, %v2851
      %v2924 = vadd.f32 %v2175, %v2856
      %v2925 = vadd.f32 %v2176, %v2859
      %v2926 = vtanh.pop %v2862
      %v2927 = vtanh.pop %v2863
      %v2928 = vtanh.pop %v2864
      %v2929 = vtanh.pop %v2865
      %v2930 = vtanh.pop %v2866
      %v2931 = vtanh.pop %v2867
      %v2932 = vtanh.pop %v2868
      %v2933 = vtanh.pop %v2869
      %v2934 = vtanh.pop %v2870
      %v2935 = vtanh.pop %v2871
      %v2936 = vtanh.pop %v2872
      %v2937 = vtanh.pop %v2873
      %v2938 = vtanh.pop %v2874
      %v2939 = vtanh.pop %v2875
      %v2940 = vtanh.pop %v2876
      %v2941 = vtanh.pop %v2877
      %v2942 = vtanh.pop %v2878
      %v2943 = vtanh.pop %v2879
      %v2944 = vtanh.pop %v2880
      %v2945 = vtanh.pop %v2881
      %v2946 = vtanh.pop %v2882
      %v2947 = vtanh.pop %v2883
      %v2948 = vtanh.pop %v2884
      %v2949 = vtanh.pop %v2885
      %v2950 = vtanh.pop %v2886
      %v2951 = vtanh.pop %v2887
      %v2952 = vtanh.pop %v2888
      %v2953 = vtanh.pop %v2889
      %v2954 = vtanh.pop %v2890
      %v2955 = vtanh.pop %v2891
      %v2956 = vtanh.pop %v2892
      %v2957 = vtanh.pop %v2893
      %v2958 = vtanh.pop %v2894
      %v2959 = vtanh.pop %v2895
      %v2960 = vtanh.pop %v2896
      %v2961 = vtanh.pop %v2897
      %v2962 = vtanh.pop %v2898
      %v2963 = vtanh.pop %v2899
      %v2964 = vtanh.pop %v2900
      %v2965 = vtanh.pop %v2901
      %v2966 = vtanh.pop %v2902
      %v2967 = vtanh.pop %v2903
      %v2968 = vtanh.pop %v2904
      %v2969 = vtanh.pop %v2905
      %v2970 = vtanh.pop %v2906
      %v2971 = vtanh.pop %v2907
      %v2972 = vtanh.pop %v2908
      %v2973 = vtanh.pop %v2909
      %v2974 = vtanh.pop %v2910
      %v2975 = vtanh.pop %v2911
      %v2976 = vtanh.pop %v2912
      %v2977 = vtanh.pop %v2913
      %v2978 = vtanh.pop %v2914
      %v2979 = vtanh.pop %v2915
      %v2980 = vtanh.pop %v2916
      %v2981 = vtanh.pop %v2917
      %v2982 = vtanh.pop %v2918
      %v2983 = vtanh.pop %v2919
      %v2984 = vtanh.pop %v2920
      %v2985 = vtanh.pop %v2921
      %v2986 = vtanh.pop %v2922
      %v2987 = vtanh.pop %v2923
      %v2988 = vtanh.pop %v2924
      %v2989 = vtanh.pop %v2925
      %vm2990 = vcmask 130048
      %2991 = vst.msk [vmem:[%s452] sm:$0xff] %vm2990, %v2926
      %2992 = vst.msk [vmem:[%s452 + $0x8] sm:$0xff] %vm2990, %v2927
      %2993 = vst.msk [vmem:[%s452 + $0x10] sm:$0xff] %vm2990, %v2928
      %2994 = vst.msk [vmem:[%s452 + $0x18] sm:$0xff] %vm2990, %v2929
      %2995 = vst.msk [vmem:[%s452 + $0x20] sm:$0xff] %vm2990, %v2930
      %2996 = vst.msk [vmem:[%s452 + $0x28] sm:$0xff] %vm2990, %v2931
      %2997 = vst.msk [vmem:[%s452 + $0x30] sm:$0xff] %vm2990, %v2932
      %2998 = vst.msk [vmem:[%s452 + $0x38] sm:$0xff] %vm2990, %v2933
      %2999 = vst.msk [vmem:[%s452 + $0x40] sm:$0xff] %vm2990, %v2934
      %3000 = vst.msk [vmem:[%s452 + $0x48] sm:$0xff] %vm2990, %v2935
      %3001 = vst.msk [vmem:[%s452 + $0x50] sm:$0xff] %vm2990, %v2936
      %3002 = vst.msk [vmem:[%s452 + $0x58] sm:$0xff] %vm2990, %v2937
      %3003 = vst.msk [vmem:[%s452 + $0x60] sm:$0xff] %vm2990, %v2938
      %3004 = vst.msk [vmem:[%s452 + $0x68] sm:$0xff] %vm2990, %v2939
      %3005 = vst.msk [vmem:[%s452 + $0x70] sm:$0xff] %vm2990, %v2940
      %3006 = vst.msk [vmem:[%s452 + $0x78] sm:$0xff] %vm2990, %v2941
      %3007 = vst.msk [vmem:[%s452 + $0x80] sm:$0xff] %vm2990, %v2942
      %3008 = vst.msk [vmem:[%s452 + $0x88] sm:$0xff] %vm2990, %v2943
      %3009 = vst.msk [vmem:[%s452 + $0x90] sm:$0xff] %vm2990, %v2944
      %3010 = vst.msk [vmem:[%s452 + $0x98] sm:$0xff] %vm2990, %v2945
      %3011 = vst.msk [vmem:[%s452 + $0xa0] sm:$0xff] %vm2990, %v2946
      %3012 = vst.msk [vmem:[%s452 + $0xa8] sm:$0xff] %vm2990, %v2947
      %3013 = vst.msk [vmem:[%s452 + $0xb0] sm:$0xff] %vm2990, %v2948
      %3014 = vst.msk [vmem:[%s452 + $0xb8] sm:$0xff] %vm2990, %v2949
      %3015 = vst.msk [vmem:[%s452 + $0xc0] sm:$0xff] %vm2990, %v2950
      %3016 = vst.msk [vmem:[%s452 + $0xc8] sm:$0xff] %vm2990, %v2951
      %3017 = vst.msk [vmem:[%s452 + $0xd0] sm:$0xff] %vm2990, %v2952
      %3018 = vst.msk [vmem:[%s452 + $0xd8] sm:$0xff] %vm2990, %v2953
      %3019 = vst.msk [vmem:[%s452 + $0xe0] sm:$0xff] %vm2990, %v2954
      %3020 = vst.msk [vmem:[%s452 + $0xe8] sm:$0xff] %vm2990, %v2955
      %3021 = vst.msk [vmem:[%s452 + $0xf0] sm:$0xff] %vm2990, %v2956
      %3022 = vst.msk [vmem:[%s452 + $0xf8] sm:$0xff] %vm2990, %v2957
      %3023 = vst.msk [vmem:[%s452 + $0x100] sm:$0xff] %vm2990, %v2958
      %3024 = vst.msk [vmem:[%s452 + $0x108] sm:$0xff] %vm2990, %v2959
      %3025 = vst.msk [vmem:[%s452 + $0x110] sm:$0xff] %vm2990, %v2960
      %3026 = vst.msk [vmem:[%s452 + $0x118] sm:$0xff] %vm2990, %v2961
      %3027 = vst.msk [vmem:[%s452 + $0x120] sm:$0xff] %vm2990, %v2962
      %3028 = vst.msk [vmem:[%s452 + $0x128] sm:$0xff] %vm2990, %v2963
      %3029 = vst.msk [vmem:[%s452 + $0x130] sm:$0xff] %vm2990, %v2964
      %3030 = vst.msk [vmem:[%s452 + $0x138] sm:$0xff] %vm2990, %v2965
      %3031 = vst.msk [vmem:[%s452 + $0x140] sm:$0xff] %vm2990, %v2966
      %3032 = vst.msk [vmem:[%s452 + $0x148] sm:$0xff] %vm2990, %v2967
      %3033 = vst.msk [vmem:[%s452 + $0x150] sm:$0xff] %vm2990, %v2968
      %3034 = vst.msk [vmem:[%s452 + $0x158] sm:$0xff] %vm2990, %v2969
      %3035 = vst.msk [vmem:[%s452 + $0x160] sm:$0xff] %vm2990, %v2970
      %3036 = vst.msk [vmem:[%s452 + $0x168] sm:$0xff] %vm2990, %v2971
      %3037 = vst.msk [vmem:[%s452 + $0x170] sm:$0xff] %vm2990, %v2972
      %3038 = vst.msk [vmem:[%s452 + $0x178] sm:$0xff] %vm2990, %v2973
      %3039 = vst.msk [vmem:[%s452 + $0x180] sm:$0xff] %vm2990, %v2974
      %3040 = vst.msk [vmem:[%s452 + $0x188] sm:$0xff] %vm2990, %v2975
      %3041 = vst.msk [vmem:[%s452 + $0x190] sm:$0xff] %vm2990, %v2976
      %3042 = vst.msk [vmem:[%s452 + $0x198] sm:$0xff] %vm2990, %v2977
      %3043 = vst.msk [vmem:[%s452 + $0x1a0] sm:$0xff] %vm2990, %v2978
      %3044 = vst.msk [vmem:[%s452 + $0x1a8] sm:$0xff] %vm2990, %v2979
      %3045 = vst.msk [vmem:[%s452 + $0x1b0] sm:$0xff] %vm2990, %v2980
      %3046 = vst.msk [vmem:[%s452 + $0x1b8] sm:$0xff] %vm2990, %v2981
      %3047 = vst.msk [vmem:[%s452 + $0x1c0] sm:$0xff] %vm2990, %v2982
      %3048 = vst.msk [vmem:[%s452 + $0x1c8] sm:$0xff] %vm2990, %v2983
      %3049 = vst.msk [vmem:[%s452 + $0x1d0] sm:$0xff] %vm2990, %v2984
      %3050 = vst.msk [vmem:[%s452 + $0x1d8] sm:$0xff] %vm2990, %v2985
      %3051 = vst.msk [vmem:[%s452 + $0x1e0] sm:$0xff] %vm2990, %v2986
      %3052 = vst.msk [vmem:[%s452 + $0x1e8] sm:$0xff] %vm2990, %v2987
      %3053 = vst.msk [vmem:[%s452 + $0x1f0] sm:$0xff] %vm2990, %v2988
      %3054 = vst.msk [vmem:[%s452 + $0x1f8] sm:$0xff] %vm2990, %v2989
      %p3055 = scmp.lt.s32.totalorder %s23, 1
      %s3056 = scalar_select %p3055, %s23, 1
      %p3057 = scmp.lt.s32.totalorder %s24, 0
      %s3058 = scalar_select %p3057, %s24, 0
      %s3059 = smul.addr %s3056, 64
      %s3060 = sadd.s32 %s3058, %s3059
      %s3061 = smul.addr %s3060, 8
      %s3062 = scalar_lea.vmem %s8, %s3061
      // Predicated region
      $region53: #{dgcnn_forward.17} parent=51 // pred_check
        %p3063 = pneg %p247
      $region54: #{dgcnn_forward.17} parent=51 // pred_check_branch
        %3065 = sbr.rel (%p3063) target = $region56
      $region55: #{dgcnn_forward.17} parent=51 // pred_region
        _
      $region56: #{dgcnn_forward.17} parent=51 // pred_fallthru
        _
    $region52: #{dgcnn_forward.17} parent=5 // pred_fallthru
      _
    %p3066 = scmp.le.s32.totalorder 2, %s14
    // Predicated region
    $region57: #{dgcnn_forward.17} parent=5 // pred_check
      %p3067 = pneg %p3066
    $region58: #{dgcnn_forward.17} parent=5 // pred_check_branch
      %3069 = sbr.rel (%p3067) target = $region60
    $region59: #{dgcnn_forward.17} parent=5 // pred_region
      %s3070 = ssub.s32 %s14, 2
      // Predicated region
      $region61: #{dgcnn_forward.17} parent=59 // pred_check
        %p3071 = pneg %p253
      $region62: #{dgcnn_forward.17} parent=59 // pred_check_branch
        %3073 = sbr.rel (%p3071) target = $region64
      $region63: #{dgcnn_forward.17} parent=59 // pred_region
        %p3074 = scmp.lt.s32.totalorder %s25, 1
        %s3075 = scalar_select %p3074, %s25, 1
        %p3076 = scmp.lt.s32.totalorder %s26, 0
        %s3077 = scalar_select %p3076, %s26, 0
        %s3078 = smul.addr %s3075, 64
        %s3079 = sadd.s32 %s3077, %s3078
        %s3080 = smul.addr %s3079, 8
        %s3081 = scalar_lea.vmem %s8, %s3080
      $region64: #{dgcnn_forward.17} parent=59 // pred_fallthru
        _
    $region60: #{dgcnn_forward.17} parent=5 // pred_fallthru
      _
  $region6: #{dgcnn_forward.17} parent=0 // loop_footer
    %s18 = sadd.s32 1, %s14
  $region7: #{dgcnn_forward.17} parent=0 // loop_footer_branch
    %13 = sbr.rel target = $region3
  $region8: #{dgcnn_forward.17} parent=0 // loop_exit
    _

</llo_original>
